<compile_context>
chip_gen: v5e
topology: v5e:2x2
jax: 0.10.0
libtpu: 0.0.40
codegen_flags: <defaults>
</compile_context>

<pallas_src>
import functools

import jax
import jax.numpy as jnp
from jax import lax
from jax.experimental import pallas as pl
from jax.experimental.pallas import tpu as pltpu


# ----------------------------------------------------------------------------
# Config / parameters
# ----------------------------------------------------------------------------
class Config:
    num_nodes = 8
    day_fea_dim = 5            # 4 real features + 1 weekday index
    date_emb_dim = 4
    cnn_dim = 16
    cnn_kernel_size = 3
    rnn_dim = 16
    rnn_dups = 2
    gcn_dim = 16
    edge_fea_dim = 3           # unused by simplified GAT
    gcn_type = "gat"
    gcn_aggr = "max"
    gcn_norm = False
    lookahead_days = 4


def _uniform(key, shape, scale=0.1):
    return jax.random.uniform(key, shape, jnp.float32, -scale, scale)


def init_encoder_params(key, cfg, in_dim):
    ks = jax.random.split(key, 2 + 4 * cfg.rnn_dups)
    p = {
        # conv weight layout: (kernel_tap, in_dim, out_dim)
        # (a PyTorch Conv1d weight (out, in, k) must be permuted (2, 1, 0) to match)
        "conv_w": _uniform(ks[0], (cfg.cnn_kernel_size, in_dim, cfg.cnn_dim)),
        "conv_b": _uniform(ks[1], (cfg.cnn_dim,)),
        "gru": [],
    }
    for d in range(cfg.rnn_dups):
        kk = ks[2 + 4 * d:2 + 4 * (d + 1)]
        p["gru"].append({
            "wx": _uniform(kk[0], (cfg.cnn_dim, 3 * cfg.rnn_dim)),
            "bx": _uniform(kk[1], (3 * cfg.rnn_dim,)),
            "wh": _uniform(kk[2], (cfg.rnn_dim, 3 * cfg.rnn_dim)),
            "bh": _uniform(kk[3], (3 * cfg.rnn_dim,)),
        })
    return p


def init_params(key, cfg):
    keys = jax.random.split(key, 10)
    day_in = cfg.day_fea_dim - 1 + cfg.date_emb_dim
    return {
        "week_em": _uniform(keys[0], (7, cfg.date_emb_dim), scale=1.0),
        "enc1": init_encoder_params(keys[1], cfg, day_in),
        "gcn_w": _uniform(keys[2], (cfg.rnn_dim, cfg.gcn_dim)),
        "gcn_b": _uniform(keys[3], (cfg.gcn_dim,)),
        "gcn_asrc": _uniform(keys[4], (cfg.gcn_dim,), scale=0.5),
        "gcn_adst": _uniform(keys[5], (cfg.gcn_dim,), scale=0.5),
        "enc2": init_encoder_params(keys[6], cfg, cfg.gcn_dim),
        "fc_w": _uniform(keys[7], (cfg.rnn_dim, cfg.lookahead_days)),
        "fc_b": _uniform(keys[8], (cfg.lookahead_days,)),
    }


# ----------------------------------------------------------------------------
# The single fused Pallas kernel
# ----------------------------------------------------------------------------
def _sandwich_kernel(x_ref, adj_ref,
                     cw1_ref, cb1_ref, wx1_ref, bx1_ref, wh1_ref, bh1_ref,
                     gcn_w_ref, gcn_b_ref, asrc_ref, adst_ref,
                     cw2_ref, cb2_ref, wx2_ref, bx2_ref, wh2_ref, bh2_ref,
                     fcw_ref, fcb_ref,
                     out_ref,
                     gx_ref, seq_ref,
                     *, T, R, H, n_dups, leaky_slope=0.2):
    """Rows everywhere are ordered (t, b, n); R = B*N; TR = T*R."""
    HD = n_dups * H            # width of the fused per-dup hidden state
    TR = T * R

    def encoder(x2d, cw_ref, cb_ref, wx_ref, bx_ref, wh_ref, bh_ref, is_first):
        # --- same-padded conv1d over time (+ReLU): one timestep == R rows ----
        F = x2d.shape[-1]
        zero_rows = jnp.zeros((R, F), jnp.float32)
        x_prev = jnp.concatenate([zero_rows, x2d[:TR - R, :]], axis=0)   # x[t-1]
        x_next = jnp.concatenate([x2d[R:, :], zero_rows], axis=0)        # x[t+1]
        c = (jnp.dot(x_prev, cw_ref[0], preferred_element_type=jnp.float32)
             + jnp.dot(x2d, cw_ref[1], preferred_element_type=jnp.float32)
             + jnp.dot(x_next, cw_ref[2], preferred_element_type=jnp.float32)
             + cb_ref[...])
        c = jnp.maximum(c, 0.0)                                          # (TR, C)
        # --- GRU input projection for all timesteps and all dups at once ----
        gx_ref[...] = jnp.dot(c, wx_ref[...],
                              preferred_element_type=jnp.float32) + bx_ref[...]
        wh = wh_ref[...]
        bh = bh_ref[...]

        def step(t, carry):
            h, acc = carry                                               # h: (R, HD)
            row0 = pl.multiple_of(t * R, R)
            gxt = gx_ref[pl.ds(row0, R), :]                              # (R, 3*HD)
            gh = jnp.dot(h, wh, preferred_element_type=jnp.float32) + bh
            r = jax.nn.sigmoid(gxt[:, :HD] + gh[:, :HD])
            z = jax.nn.sigmoid(gxt[:, HD:2 * HD] + gh[:, HD:2 * HD])
            n = jnp.tanh(gxt[:, 2 * HD:] + r * gh[:, 2 * HD:])
            h = (1.0 - z) * n + z * h
            o = h[:, 0:H]
            for d in range(1, n_dups):                                   # average the dups
                o = o + h[:, d * H:(d + 1) * H]
            o = o * (1.0 / n_dups)
            if is_first:
                seq_ref[pl.ds(row0, R), :] = o                           # first_out[t]
            else:
                # residual add + running max over time (fused pooling)
                acc = jnp.maximum(acc, seq_ref[pl.ds(row0, R), :] + o)
            return h, acc

        init = (jnp.zeros((R, HD), jnp.float32),
                jnp.full((R, H), -jnp.inf, jnp.float32))
        _, acc = lax.fori_loop(0, T, step, init, unroll=True)
        return acc

    # ---- first CNN+GRU encoder: writes first_out into seq_ref --------------
    encoder(x_ref[...], cw1_ref, cb1_ref, wx1_ref, bx1_ref, wh1_ref, bh1_ref, True)

    # ---- GCN block: single-head GAT over nodes, fully vectorised -----------
    # adj_ref is the block-diagonal mask kron(I_{T*B}, adj): attention only mixes
    # rows that share the same (t, b) group.
    h_lin = jnp.dot(seq_ref[...], gcn_w_ref[...],
                    preferred_element_type=jnp.float32) + gcn_b_ref[...]      # (TR, Dg)
    s_src = jnp.sum(h_lin * asrc_ref[...], axis=1, keepdims=True)             # (TR, 1)
    s_dst = lax.dot_general(adst_ref[...], h_lin,                             # (8, TR) -> row 0
                            (((1,), (1,)), ((), ())),
                            preferred_element_type=jnp.float32)[0:1, :]       # (1, TR)
    e = s_src + s_dst                                                         # (TR, TR)
    e = jnp.where(e > 0, e, leaky_slope * e)                                  # LeakyReLU(0.2)
    mask = adj_ref[...] > 0.0
    e = jnp.where(mask, e, -1e9)
    e = e - jnp.max(e, axis=-1, keepdims=True)
    p = jnp.where(mask, jnp.exp(e), 0.0)
    denom = jnp.maximum(jnp.sum(p, axis=-1, keepdims=True), 1e-9)             # neighbour-less safe
    alpha = p * pl.reciprocal(denom, approx=True)
    gcn = jnp.maximum(jnp.dot(alpha, h_lin, preferred_element_type=jnp.float32),
                      0.0)                                                    # ReLU, (TR, Dg)

    # ---- second encoder + fused residual-add + max-over-time ---------------
    pooled = encoder(gcn, cw2_ref, cb2_ref, wx2_ref, bx2_ref, wh2_ref, bh2_ref, False)

    # ---- output FC (weights padded to 128 lanes -> lane-dense store) -------
    out_ref[...] = (jnp.dot(pooled, fcw_ref[...], preferred_element_type=jnp.float32)
                    + fcb_ref[...])


# ----------------------------------------------------------------------------
# Host-side parameter packing + forward wrapper
# ----------------------------------------------------------------------------
def _combine_gru_dups(dups):
    """Pack n_dups independent GRUs into gate-major / dup-minor block weights.

    Column layout (width n_dups*H per gate group, gate order r, z, n):
        [r_dup0 | r_dup1 | ... | z_dup0 | ... | n_dup0 | ...]
    wh becomes block-diagonal per gate so one matmul advances every dup.
    """
    H = dups[0]["wh"].shape[0]
    D = len(dups)
    wx_cols, bx_cols, bh_cols, wh_cols = [], [], [], []
    for g in range(3):
        sl = slice(g * H, (g + 1) * H)
        wx_cols.append(jnp.concatenate([d["wx"][:, sl] for d in dups], axis=1))
        bx_cols.append(jnp.concatenate([d["bx"][sl] for d in dups], axis=0))
        bh_cols.append(jnp.concatenate([d["bh"][sl] for d in dups], axis=0))
        rows = []
        for i in range(D):
            blocks = [dups[i]["wh"][:, sl] if j == i else
                      jnp.zeros((H, H), jnp.float32) for j in range(D)]
            rows.append(jnp.concatenate(blocks, axis=1))
        wh_cols.append(jnp.concatenate(rows, axis=0))
    wx_big = jnp.concatenate(wx_cols, axis=1)            # (C, 3*D*H)
    bx_big = jnp.concatenate(bx_cols, axis=0)[None, :]   # (1, 3*D*H)
    wh_big = jnp.concatenate(wh_cols, axis=1)            # (D*H, 3*D*H)
    bh_big = jnp.concatenate(bh_cols, axis=0)[None, :]
    return wx_big, bx_big, wh_big, bh_big


def _forward_impl(params, input_day, adj, cfg):
    B, N, T, _ = input_day.shape
    R = B * N
    TRN = T * R
    H = cfg.rnn_dim
    C = cfg.cnn_dim
    Dg = cfg.gcn_dim
    L = cfg.lookahead_days
    LPAD = max(128, ((L + 127) // 128) * 128)
    n_dups = cfg.rnn_dups
    HD = n_dups * H

    # --- date embedding (gather + concat, fused into the XLA prologue) ------
    x_cont = input_day[..., :-1]
    weekday = input_day[..., -1].astype(jnp.int32)
    wk = jnp.take(params["week_em"], weekday, axis=0)                 # (B,N,T,E)
    x = jnp.concatenate([x_cont, wk], axis=-1)                        # (B,N,T,Fin)
    x2d = jnp.transpose(x, (2, 0, 1, 3)).reshape(TRN, -1)             # rows (t,b,n)

    # --- block-diagonal neighbour mask for the vectorised GAT ---------------
    big_adj = jnp.kron(jnp.eye(T * B, dtype=jnp.float32), adj.astype(jnp.float32))

    # --- pack parameters into MXU-friendly shapes ----------------------------
    e1, e2 = params["enc1"], params["enc2"]
    wx1, bx1, wh1, bh1 = _combine_gru_dups(e1["gru"])
    wx2, bx2, wh2, bh2 = _combine_gru_dups(e2["gru"])
    cb1 = e1["conv_b"][None, :]
    cb2 = e2["conv_b"][None, :]
    gcn_b = params["gcn_b"][None, :]
    asrc = params["gcn_asrc"][None, :]                                # (1, Dg)
    adst = jnp.zeros((8, Dg), jnp.float32).at[0].set(params["gcn_adst"])
    fcw = jnp.pad(params["fc_w"], ((0, 0), (0, LPAD - L)))            # lane-dense output
    fcb = jnp.pad(params["fc_b"], (0, LPAD - L))[None, :]

    args = (x2d, big_adj,
            e1["conv_w"], cb1, wx1, bx1, wh1, bh1,
            params["gcn_w"], gcn_b, asrc, adst,
            e2["conv_w"], cb2, wx2, bx2, wh2, bh2,
            fcw, fcb)

    # --- advisory cost estimate ----------------------------------------------
    Fin = int(x2d.shape[-1])
    k = cfg.cnn_kernel_size
    flops = 2 * TRN * (k * Fin * C + k * Dg * C + 2 * C * 3 * HD)     # convs + gx proj
    flops += 2 * 2 * T * R * HD * 3 * HD                              # recurrences
    flops += 2 * TRN * H * Dg + 2 * TRN * TRN * Dg + 4 * TRN * Dg     # GCN / GAT
    flops += 2 * R * H * LPAD                                         # output FC
    transcendentals = 2 * T * R * 3 * HD + TRN * TRN
    bytes_accessed = 4 * (sum(int(a.size) for a in args) + R * LPAD)

    kernel = functools.partial(_sandwich_kernel, T=T, R=R, H=H, n_dups=n_dups)
    vspec = pl.BlockSpec(memory_space=pltpu.MemorySpace.VMEM)
    out = pl.pallas_call(
        kernel,
        out_shape=jax.ShapeDtypeStruct((R, LPAD), jnp.float32),
        in_specs=[vspec] * len(args),
        out_specs=vspec,
        scratch_shapes=[pltpu.VMEM((TRN, 3 * HD), jnp.float32),       # gx (x-projections)
                        pltpu.VMEM((TRN, H), jnp.float32)],           # first_out sequence
        compiler_params=pltpu.CompilerParams(vmem_limit_bytes=32 * 1024 * 1024),
        cost_estimate=pl.CostEstimate(flops=int(flops),
                                      transcendentals=int(transcendentals),
                                      bytes_accessed=int(bytes_accessed)),
    )(*args)

    return out[:, :L].reshape(B, N, L)


@functools.lru_cache(maxsize=None)
def _jitted_forward(cfg):
    return jax.jit(functools.partial(_forward_impl, cfg=cfg))


def sandwich_forward(params, input_day, g, cfg):
    if g["type"] not in ("dataflow", "subgraph"):
        raise Exception("Unsupported graph type: {}".format(g["type"]))
    # TODO(synk): graph_n_id / cent_n_id accepted but unused (source of CNNKRNNEncoder
    # not provided; the documented I/O shapes are preserved).
    return _jitted_forward(cfg)(params, input_day, g["adj"])


# ----------------------------------------------------------------------------
if __name__ == "__main__":
    cfg = Config()
    B, N, T = 2, cfg.num_nodes, 8

    root = jax.random.PRNGKey(0)
    k_in, k_wd, k_par = jax.random.split(root, 3)

    feats = jax.random.normal(k_in, (B, N, T, cfg.day_fea_dim - 1), jnp.float32)
    weekday = jax.random.randint(k_wd, (B, N, T, 1), 0, 7).astype(jnp.float32)
    input_day = jnp.concatenate([feats, weekday], axis=-1)            # (2, 8, 8, 5)

    # deterministic ring graph with self loops
    idx = jnp.arange(N)
    adj = ((idx[:, None] == idx[None, :]) |
           (idx[:, None] == (idx[None, :] + 1) % N) |
           (idx[:, None] == (idx[None, :] - 1) % N)).astype(jnp.float32)
    g = {"type": "dataflow", "graph_n_id": idx, "cent_n_id": idx, "adj": adj}

    params = init_params(k_par, cfg)

    out = sandwich_forward(params, input_day, g, cfg)
    out = jax.block_until_ready(out)

    assert out.shape == (B, N, cfg.lookahead_days), out.shape
    assert bool(jnp.all(jnp.isfinite(out)))
    print("KERNEL_OK")
</pallas_src>

<mosaic_0001>
module attributes {stable_mosaic.version = 11 : i64} {
  func.func @_sandwich_kernel(%arg0: memref<128x8xf32, #tpu.memory_space<vmem>>, %arg1: memref<128x128xf32, #tpu.memory_space<vmem>>, %arg2: memref<3x8x16xf32, #tpu.memory_space<vmem>>, %arg3: memref<1x16xf32, #tpu.memory_space<vmem>>, %arg4: memref<16x96xf32, #tpu.memory_space<vmem>>, %arg5: memref<1x96xf32, #tpu.memory_space<vmem>>, %arg6: memref<32x96xf32, #tpu.memory_space<vmem>>, %arg7: memref<1x96xf32, #tpu.memory_space<vmem>>, %arg8: memref<16x16xf32, #tpu.memory_space<vmem>>, %arg9: memref<1x16xf32, #tpu.memory_space<vmem>>, %arg10: memref<1x16xf32, #tpu.memory_space<vmem>>, %arg11: memref<8x16xf32, #tpu.memory_space<vmem>>, %arg12: memref<3x16x16xf32, #tpu.memory_space<vmem>>, %arg13: memref<1x16xf32, #tpu.memory_space<vmem>>, %arg14: memref<16x96xf32, #tpu.memory_space<vmem>>, %arg15: memref<1x96xf32, #tpu.memory_space<vmem>>, %arg16: memref<32x96xf32, #tpu.memory_space<vmem>>, %arg17: memref<1x96xf32, #tpu.memory_space<vmem>>, %arg18: memref<16x128xf32, #tpu.memory_space<vmem>>, %arg19: memref<1x128xf32, #tpu.memory_space<vmem>>, %arg20: memref<16x128xf32, #tpu.memory_space<vmem>>, %arg21: memref<128x96xf32, #tpu.memory_space<vmem>>, %arg22: memref<128x16xf32, #tpu.memory_space<vmem>>) attributes {dimension_semantics = [], scalar_prefetch = 0 : i64, scratch_operands = 2 : i64, tpu.core_type = #tpu.core_type<tc>} {
    %c0 = arith.constant 0 : index
    %c0_0 = arith.constant 0 : index
    %0 = vector.load %arg0[%c0, %c0_0] : memref<128x8xf32, #tpu.memory_space<vmem>>, vector<128x8xf32>
    %cst = arith.constant 0.000000e+00 : f32
    %1 = vector.broadcast %cst : f32 to vector<16x8xf32>
    %2 = vector.extract_strided_slice %0 {offsets = [0, 0], sizes = [112, 8], strides = [1, 1]} : vector<128x8xf32> to vector<112x8xf32>
    %3 = tpu.concatenate %1, %2 in 0 : vector<16x8xf32>, vector<112x8xf32> -> vector<128x8xf32>
    %4 = vector.extract_strided_slice %0 {offsets = [16, 0], sizes = [112, 8], strides = [1, 1]} : vector<128x8xf32> to vector<112x8xf32>
    %5 = tpu.concatenate %4, %1 in 0 : vector<112x8xf32>, vector<16x8xf32> -> vector<128x8xf32>
    %c0_1 = arith.constant 0 : index
    %c0_2 = arith.constant 0 : index
    %c0_3 = arith.constant 0 : index
    %6 = vector.load %arg2[%c0_1, %c0_2, %c0_3] : memref<3x8x16xf32, #tpu.memory_space<vmem>>, vector<1x8x16xf32>
    %7 = vector.shape_cast %6 : vector<1x8x16xf32> to vector<8x16xf32>
    %cst_4 = arith.constant dense<0.000000e+00> : vector<128x16xf32>
    %8 = tpu.matmul %3, %7, %cst_4 {dimension_numbers = #tpu.dot_dimension_numbers<[1], [0], [0], [1], [0, 0, 1, 1], [], []>} : vector<128x8xf32>, vector<8x16xf32>, vector<128x16xf32> -> vector<128x16xf32>
    %c1 = arith.constant 1 : index
    %c0_5 = arith.constant 0 : index
    %c0_6 = arith.constant 0 : index
    %9 = vector.load %arg2[%c1, %c0_5, %c0_6] : memref<3x8x16xf32, #tpu.memory_space<vmem>>, vector<1x8x16xf32>
    %10 = vector.shape_cast %9 : vector<1x8x16xf32> to vector<8x16xf32>
    %cst_7 = arith.constant dense<0.000000e+00> : vector<128x16xf32>
    %11 = tpu.matmul %0, %10, %cst_7 {dimension_numbers = #tpu.dot_dimension_numbers<[1], [0], [0], [1], [0, 0, 1, 1], [], []>} : vector<128x8xf32>, vector<8x16xf32>, vector<128x16xf32> -> vector<128x16xf32>
    %12 = arith.addf %8, %11 : vector<128x16xf32>
    %c2 = arith.constant 2 : index
    %c0_8 = arith.constant 0 : index
    %c0_9 = arith.constant 0 : index
    %13 = vector.load %arg2[%c2, %c0_8, %c0_9] : memref<3x8x16xf32, #tpu.memory_space<vmem>>, vector<1x8x16xf32>
    %14 = vector.shape_cast %13 : vector<1x8x16xf32> to vector<8x16xf32>
    %cst_10 = arith.constant dense<0.000000e+00> : vector<128x16xf32>
    %15 = tpu.matmul %5, %14, %cst_10 {dimension_numbers = #tpu.dot_dimension_numbers<[1], [0], [0], [1], [0, 0, 1, 1], [], []>} : vector<128x8xf32>, vector<8x16xf32>, vector<128x16xf32> -> vector<128x16xf32>
    %16 = arith.addf %12, %15 : vector<128x16xf32>
    %c0_11 = arith.constant 0 : index
    %c0_12 = arith.constant 0 : index
    %17 = vector.load %arg3[%c0_11, %c0_12] : memref<1x16xf32, #tpu.memory_space<vmem>>, vector<1x16xf32>
    %18 = vector.broadcast %17 : vector<1x16xf32> to vector<128x16xf32>
    %19 = arith.addf %16, %18 : vector<128x16xf32>
    %cst_13 = arith.constant 0.000000e+00 : f32
    %20 = vector.broadcast %cst_13 : f32 to vector<128x16xf32>
    %21 = arith.maximumf %19, %20 : vector<128x16xf32>
    %c0_14 = arith.constant 0 : index
    %c0_15 = arith.constant 0 : index
    %22 = vector.load %arg4[%c0_14, %c0_15] : memref<16x96xf32, #tpu.memory_space<vmem>>, vector<16x96xf32>
    %cst_16 = arith.constant dense<0.000000e+00> : vector<128x96xf32>
    %23 = tpu.matmul %21, %22, %cst_16 {dimension_numbers = #tpu.dot_dimension_numbers<[1], [0], [0], [1], [0, 0, 1, 1], [], []>} : vector<128x16xf32>, vector<16x96xf32>, vector<128x96xf32> -> vector<128x96xf32>
    %c0_17 = arith.constant 0 : index
    %c0_18 = arith.constant 0 : index
    %24 = vector.load %arg5[%c0_17, %c0_18] : memref<1x96xf32, #tpu.memory_space<vmem>>, vector<1x96xf32>
    %25 = vector.broadcast %24 : vector<1x96xf32> to vector<128x96xf32>
    %26 = arith.addf %23, %25 : vector<128x96xf32>
    %c0_19 = arith.constant 0 : index
    %c0_20 = arith.constant 0 : index
    %27 = vector.load %arg21[%c0_19, %c0_20] : memref<128x96xf32, #tpu.memory_space<vmem>>, vector<128x96xf32>
    tpu.vector_store %arg21[%c0_19, %c0_20], %26 {strides = array<i32>} : memref<128x96xf32, #tpu.memory_space<vmem>>, vector<128x96xf32>,
    %c0_21 = arith.constant 0 : index
    %c0_22 = arith.constant 0 : index
    %28 = vector.load %arg6[%c0_21, %c0_22] : memref<32x96xf32, #tpu.memory_space<vmem>>, vector<32x96xf32>
    %c0_23 = arith.constant 0 : index
    %c0_24 = arith.constant 0 : index
    %29 = vector.load %arg7[%c0_23, %c0_24] : memref<1x96xf32, #tpu.memory_space<vmem>>, vector<1x96xf32>
    %cst_25 = arith.constant 0.000000e+00 : f32
    %30 = vector.broadcast %cst_25 : f32 to vector<16x32xf32>
    %c0_i32 = arith.constant 0 : i32
    %c16_i32 = arith.constant 16 : i32
    %31 = arith.muli %c0_i32, %c16_i32 : i32
    %32 = tpu.assume_multiple %31, 16 : i32
    %33 = arith.index_cast %32 : i32 to index
    %c0_26 = arith.constant 0 : index
    %34 = vector.load %arg21[%33, %c0_26] : memref<128x96xf32, #tpu.memory_space<vmem>>, vector<16x96xf32>
    %cst_27 = arith.constant dense<0.000000e+00> : vector<16x96xf32>
    %35 = tpu.matmul %30, %28, %cst_27 {dimension_numbers = #tpu.dot_dimension_numbers<[1], [0], [0], [1], [0, 0, 1, 1], [], []>} : vector<16x32xf32>, vector<32x96xf32>, vector<16x96xf32> -> vector<16x96xf32>
    %36 = vector.broadcast %29 : vector<1x96xf32> to vector<16x96xf32>
    %37 = arith.addf %35, %36 : vector<16x96xf32>
    %38 = vector.extract_strided_slice %34 {offsets = [0, 0], sizes = [16, 32], strides = [1, 1]} : vector<16x96xf32> to vector<16x32xf32>
    %39 = vector.extract_strided_slice %37 {offsets = [0, 0], sizes = [16, 32], strides = [1, 1]} : vector<16x96xf32> to vector<16x32xf32>
    %40 = arith.addf %38, %39 : vector<16x32xf32>
    %41 = arith.negf %40 : vector<16x32xf32>
    %42 = math.exp %41 : vector<16x32xf32>
    %cst_28 = arith.constant 1.000000e+00 : f32
    %43 = vector.broadcast %cst_28 : f32 to vector<16x32xf32>
    %44 = arith.addf %43, %42 : vector<16x32xf32>
    %45 = arith.divf %43, %44 : vector<16x32xf32>
    %46 = vector.extract_strided_slice %34 {offsets = [0, 32], sizes = [16, 32], strides = [1, 1]} : vector<16x96xf32> to vector<16x32xf32>
    %47 = vector.extract_strided_slice %37 {offsets = [0, 32], sizes = [16, 32], strides = [1, 1]} : vector<16x96xf32> to vector<16x32xf32>
    %48 = arith.addf %46, %47 : vector<16x32xf32>
    %49 = arith.negf %48 : vector<16x32xf32>
    %50 = math.exp %49 : vector<16x32xf32>
    %cst_29 = arith.constant 1.000000e+00 : f32
    %51 = vector.broadcast %cst_29 : f32 to vector<16x32xf32>
    %52 = arith.addf %51, %50 : vector<16x32xf32>
    %53 = arith.divf %51, %52 : vector<16x32xf32>
    %54 = vector.extract_strided_slice %34 {offsets = [0, 64], sizes = [16, 32], strides = [1, 1]} : vector<16x96xf32> to vector<16x32xf32>
    %55 = vector.extract_strided_slice %37 {offsets = [0, 64], sizes = [16, 32], strides = [1, 1]} : vector<16x96xf32> to vector<16x32xf32>
    %56 = arith.mulf %45, %55 : vector<16x32xf32>
    %57 = arith.addf %54, %56 : vector<16x32xf32>
    %58 = math.tanh %57 : vector<16x32xf32>
    %cst_30 = arith.constant 1.000000e+00 : f32
    %59 = vector.broadcast %cst_30 : f32 to vector<16x32xf32>
    %60 = arith.subf %59, %53 : vector<16x32xf32>
    %61 = arith.mulf %60, %58 : vector<16x32xf32>
    %62 = arith.mulf %53, %30 : vector<16x32xf32>
    %63 = arith.addf %61, %62 : vector<16x32xf32>
    %64 = vector.extract_strided_slice %63 {offsets = [0, 0], sizes = [16, 16], strides = [1, 1]} : vector<16x32xf32> to vector<16x16xf32>
    %65 = vector.extract_strided_slice %63 {offsets = [0, 16], sizes = [16, 16], strides = [1, 1]} : vector<16x32xf32> to vector<16x16xf32>
    %66 = arith.addf %64, %65 : vector<16x16xf32>
    %cst_31 = arith.constant 5.000000e-01 : f32
    %67 = vector.broadcast %cst_31 : f32 to vector<16x16xf32>
    %68 = arith.mulf %66, %67 : vector<16x16xf32>
    %69 = arith.index_cast %32 : i32 to index
    %c0_32 = arith.constant 0 : index
    %70 = vector.load %arg22[%69, %c0_32] : memref<128x16xf32, #tpu.memory_space<vmem>>, vector<16x16xf32>
    tpu.vector_store %arg22[%69, %c0_32], %68 {strides = array<i32>} : memref<128x16xf32, #tpu.memory_space<vmem>>, vector<16x16xf32>,
    %c1_i32 = arith.constant 1 : i32
    %c16_i32_33 = arith.constant 16 : i32
    %71 = arith.muli %c1_i32, %c16_i32_33 : i32
    %72 = tpu.assume_multiple %71, 16 : i32
    %73 = arith.index_cast %72 : i32 to index
    %c0_34 = arith.constant 0 : index
    %74 = vector.load %arg21[%73, %c0_34] : memref<128x96xf32, #tpu.memory_space<vmem>>, vector<16x96xf32>
    %cst_35 = arith.constant dense<0.000000e+00> : vector<16x96xf32>
    %75 = tpu.matmul %63, %28, %cst_35 {dimension_numbers = #tpu.dot_dimension_numbers<[1], [0], [0], [1], [0, 0, 1, 1], [], []>} : vector<16x32xf32>, vector<32x96xf32>, vector<16x96xf32> -> vector<16x96xf32>
    %76 = vector.broadcast %29 : vector<1x96xf32> to vector<16x96xf32>
    %77 = arith.addf %75, %76 : vector<16x96xf32>
    %78 = vector.extract_strided_slice %74 {offsets = [0, 0], sizes = [16, 32], strides = [1, 1]} : vector<16x96xf32> to vector<16x32xf32>
    %79 = vector.extract_strided_slice %77 {offsets = [0, 0], sizes = [16, 32], strides = [1, 1]} : vector<16x96xf32> to vector<16x32xf32>
    %80 = arith.addf %78, %79 : vector<16x32xf32>
    %81 = arith.negf %80 : vector<16x32xf32>
    %82 = math.exp %81 : vector<16x32xf32>
    %cst_36 = arith.constant 1.000000e+00 : f32
    %83 = vector.broadcast %cst_36 : f32 to vector<16x32xf32>
    %84 = arith.addf %83, %82 : vector<16x32xf32>
    %85 = arith.divf %83, %84 : vector<16x32xf32>
    %86 = vector.extract_strided_slice %74 {offsets = [0, 32], sizes = [16, 32], strides = [1, 1]} : vector<16x96xf32> to vector<16x32xf32>
    %87 = vector.extract_strided_slice %77 {offsets = [0, 32], sizes = [16, 32], strides = [1, 1]} : vector<16x96xf32> to vector<16x32xf32>
    %88 = arith.addf %86, %87 : vector<16x32xf32>
    %89 = arith.negf %88 : vector<16x32xf32>
    %90 = math.exp %89 : vector<16x32xf32>
    %cst_37 = arith.constant 1.000000e+00 : f32
    %91 = vector.broadcast %cst_37 : f32 to vector<16x32xf32>
    %92 = arith.addf %91, %90 : vector<16x32xf32>
    %93 = arith.divf %91, %92 : vector<16x32xf32>
    %94 = vector.extract_strided_slice %74 {offsets = [0, 64], sizes = [16, 32], strides = [1, 1]} : vector<16x96xf32> to vector<16x32xf32>
    %95 = vector.extract_strided_slice %77 {offsets = [0, 64], sizes = [16, 32], strides = [1, 1]} : vector<16x96xf32> to vector<16x32xf32>
    %96 = arith.mulf %85, %95 : vector<16x32xf32>
    %97 = arith.addf %94, %96 : vector<16x32xf32>
    %98 = math.tanh %97 : vector<16x32xf32>
    %cst_38 = arith.constant 1.000000e+00 : f32
    %99 = vector.broadcast %cst_38 : f32 to vector<16x32xf32>
    %100 = arith.subf %99, %93 : vector<16x32xf32>
    %101 = arith.mulf %100, %98 : vector<16x32xf32>
    %102 = arith.mulf %93, %63 : vector<16x32xf32>
    %103 = arith.addf %101, %102 : vector<16x32xf32>
    %104 = vector.extract_strided_slice %103 {offsets = [0, 0], sizes = [16, 16], strides = [1, 1]} : vector<16x32xf32> to vector<16x16xf32>
    %105 = vector.extract_strided_slice %103 {offsets = [0, 16], sizes = [16, 16], strides = [1, 1]} : vector<16x32xf32> to vector<16x16xf32>
    %106 = arith.addf %104, %105 : vector<16x16xf32>
    %cst_39 = arith.constant 5.000000e-01 : f32
    %107 = vector.broadcast %cst_39 : f32 to vector<16x16xf32>
    %108 = arith.mulf %106, %107 : vector<16x16xf32>
    %109 = arith.index_cast %72 : i32 to index
    %c0_40 = arith.constant 0 : index
    %110 = vector.load %arg22[%109, %c0_40] : memref<128x16xf32, #tpu.memory_space<vmem>>, vector<16x16xf32>
    tpu.vector_store %arg22[%109, %c0_40], %108 {strides = array<i32>} : memref<128x16xf32, #tpu.memory_space<vmem>>, vector<16x16xf32>,
    %c2_i32 = arith.constant 2 : i32
    %c16_i32_41 = arith.constant 16 : i32
    %111 = arith.muli %c2_i32, %c16_i32_41 : i32
    %112 = tpu.assume_multiple %111, 16 : i32
    %113 = arith.index_cast %112 : i32 to index
    %c0_42 = arith.constant 0 : index
    %114 = vector.load %arg21[%113, %c0_42] : memref<128x96xf32, #tpu.memory_space<vmem>>, vector<16x96xf32>
    %cst_43 = arith.constant dense<0.000000e+00> : vector<16x96xf32>
    %115 = tpu.matmul %103, %28, %cst_43 {dimension_numbers = #tpu.dot_dimension_numbers<[1], [0], [0], [1], [0, 0, 1, 1], [], []>} : vector<16x32xf32>, vector<32x96xf32>, vector<16x96xf32> -> vector<16x96xf32>
    %116 = vector.broadcast %29 : vector<1x96xf32> to vector<16x96xf32>
    %117 = arith.addf %115, %116 : vector<16x96xf32>
    %118 = vector.extract_strided_slice %114 {offsets = [0, 0], sizes = [16, 32], strides = [1, 1]} : vector<16x96xf32> to vector<16x32xf32>
    %119 = vector.extract_strided_slice %117 {offsets = [0, 0], sizes = [16, 32], strides = [1, 1]} : vector<16x96xf32> to vector<16x32xf32>
    %120 = arith.addf %118, %119 : vector<16x32xf32>
    %121 = arith.negf %120 : vector<16x32xf32>
    %122 = math.exp %121 : vector<16x32xf32>
    %cst_44 = arith.constant 1.000000e+00 : f32
    %123 = vector.broadcast %cst_44 : f32 to vector<16x32xf32>
    %124 = arith.addf %123, %122 : vector<16x32xf32>
    %125 = arith.divf %123, %124 : vector<16x32xf32>
    %126 = vector.extract_strided_slice %114 {offsets = [0, 32], sizes = [16, 32], strides = [1, 1]} : vector<16x96xf32> to vector<16x32xf32>
    %127 = vector.extract_strided_slice %117 {offsets = [0, 32], sizes = [16, 32], strides = [1, 1]} : vector<16x96xf32> to vector<16x32xf32>
    %128 = arith.addf %126, %127 : vector<16x32xf32>
    %129 = arith.negf %128 : vector<16x32xf32>
    %130 = math.exp %129 : vector<16x32xf32>
    %cst_45 = arith.constant 1.000000e+00 : f32
    %131 = vector.broadcast %cst_45 : f32 to vector<16x32xf32>
    %132 = arith.addf %131, %130 : vector<16x32xf32>
    %133 = arith.divf %131, %132 : vector<16x32xf32>
    %134 = vector.extract_strided_slice %114 {offsets = [0, 64], sizes = [16, 32], strides = [1, 1]} : vector<16x96xf32> to vector<16x32xf32>
    %135 = vector.extract_strided_slice %117 {offsets = [0, 64], sizes = [16, 32], strides = [1, 1]} : vector<16x96xf32> to vector<16x32xf32>
    %136 = arith.mulf %125, %135 : vector<16x32xf32>
    %137 = arith.addf %134, %136 : vector<16x32xf32>
    %138 = math.tanh %137 : vector<16x32xf32>
    %cst_46 = arith.constant 1.000000e+00 : f32
    %139 = vector.broadcast %cst_46 : f32 to vector<16x32xf32>
    %140 = arith.subf %139, %133 : vector<16x32xf32>
    %141 = arith.mulf %140, %138 : vector<16x32xf32>
    %142 = arith.mulf %133, %103 : vector<16x32xf32>
    %143 = arith.addf %141, %142 : vector<16x32xf32>
    %144 = vector.extract_strided_slice %143 {offsets = [0, 0], sizes = [16, 16], strides = [1, 1]} : vector<16x32xf32> to vector<16x16xf32>
    %145 = vector.extract_strided_slice %143 {offsets = [0, 16], sizes = [16, 16], strides = [1, 1]} : vector<16x32xf32> to vector<16x16xf32>
    %146 = arith.addf %144, %145 : vector<16x16xf32>
    %cst_47 = arith.constant 5.000000e-01 : f32
    %147 = vector.broadcast %cst_47 : f32 to vector<16x16xf32>
    %148 = arith.mulf %146, %147 : vector<16x16xf32>
    %149 = arith.index_cast %112 : i32 to index
    %c0_48 = arith.constant 0 : index
    %150 = vector.load %arg22[%149, %c0_48] : memref<128x16xf32, #tpu.memory_space<vmem>>, vector<16x16xf32>
    tpu.vector_store %arg22[%149, %c0_48], %148 {strides = array<i32>} : memref<128x16xf32, #tpu.memory_space<vmem>>, vector<16x16xf32>,
    %c3_i32 = arith.constant 3 : i32
    %c16_i32_49 = arith.constant 16 : i32
    %151 = arith.muli %c3_i32, %c16_i32_49 : i32
    %152 = tpu.assume_multiple %151, 16 : i32
    %153 = arith.index_cast %152 : i32 to index
    %c0_50 = arith.constant 0 : index
    %154 = vector.load %arg21[%153, %c0_50] : memref<128x96xf32, #tpu.memory_space<vmem>>, vector<16x96xf32>
    %cst_51 = arith.constant dense<0.000000e+00> : vector<16x96xf32>
    %155 = tpu.matmul %143, %28, %cst_51 {dimension_numbers = #tpu.dot_dimension_numbers<[1], [0], [0], [1], [0, 0, 1, 1], [], []>} : vector<16x32xf32>, vector<32x96xf32>, vector<16x96xf32> -> vector<16x96xf32>
    %156 = vector.broadcast %29 : vector<1x96xf32> to vector<16x96xf32>
    %157 = arith.addf %155, %156 : vector<16x96xf32>
    %158 = vector.extract_strided_slice %154 {offsets = [0, 0], sizes = [16, 32], strides = [1, 1]} : vector<16x96xf32> to vector<16x32xf32>
    %159 = vector.extract_strided_slice %157 {offsets = [0, 0], sizes = [16, 32], strides = [1, 1]} : vector<16x96xf32> to vector<16x32xf32>
    %160 = arith.addf %158, %159 : vector<16x32xf32>
    %161 = arith.negf %160 : vector<16x32xf32>
    %162 = math.exp %161 : vector<16x32xf32>
    %cst_52 = arith.constant 1.000000e+00 : f32
    %163 = vector.broadcast %cst_52 : f32 to vector<16x32xf32>
    %164 = arith.addf %163, %162 : vector<16x32xf32>
    %165 = arith.divf %163, %164 : vector<16x32xf32>
    %166 = vector.extract_strided_slice %154 {offsets = [0, 32], sizes = [16, 32], strides = [1, 1]} : vector<16x96xf32> to vector<16x32xf32>
    %167 = vector.extract_strided_slice %157 {offsets = [0, 32], sizes = [16, 32], strides = [1, 1]} : vector<16x96xf32> to vector<16x32xf32>
    %168 = arith.addf %166, %167 : vector<16x32xf32>
    %169 = arith.negf %168 : vector<16x32xf32>
    %170 = math.exp %169 : vector<16x32xf32>
    %cst_53 = arith.constant 1.000000e+00 : f32
    %171 = vector.broadcast %cst_53 : f32 to vector<16x32xf32>
    %172 = arith.addf %171, %170 : vector<16x32xf32>
    %173 = arith.divf %171, %172 : vector<16x32xf32>
    %174 = vector.extract_strided_slice %154 {offsets = [0, 64], sizes = [16, 32], strides = [1, 1]} : vector<16x96xf32> to vector<16x32xf32>
    %175 = vector.extract_strided_slice %157 {offsets = [0, 64], sizes = [16, 32], strides = [1, 1]} : vector<16x96xf32> to vector<16x32xf32>
    %176 = arith.mulf %165, %175 : vector<16x32xf32>
    %177 = arith.addf %174, %176 : vector<16x32xf32>
    %178 = math.tanh %177 : vector<16x32xf32>
    %cst_54 = arith.constant 1.000000e+00 : f32
    %179 = vector.broadcast %cst_54 : f32 to vector<16x32xf32>
    %180 = arith.subf %179, %173 : vector<16x32xf32>
    %181 = arith.mulf %180, %178 : vector<16x32xf32>
    %182 = arith.mulf %173, %143 : vector<16x32xf32>
    %183 = arith.addf %181, %182 : vector<16x32xf32>
    %184 = vector.extract_strided_slice %183 {offsets = [0, 0], sizes = [16, 16], strides = [1, 1]} : vector<16x32xf32> to vector<16x16xf32>
    %185 = vector.extract_strided_slice %183 {offsets = [0, 16], sizes = [16, 16], strides = [1, 1]} : vector<16x32xf32> to vector<16x16xf32>
    %186 = arith.addf %184, %185 : vector<16x16xf32>
    %cst_55 = arith.constant 5.000000e-01 : f32
    %187 = vector.broadcast %cst_55 : f32 to vector<16x16xf32>
    %188 = arith.mulf %186, %187 : vector<16x16xf32>
    %189 = arith.index_cast %152 : i32 to index
    %c0_56 = arith.constant 0 : index
    %190 = vector.load %arg22[%189, %c0_56] : memref<128x16xf32, #tpu.memory_space<vmem>>, vector<16x16xf32>
    tpu.vector_store %arg22[%189, %c0_56], %188 {strides = array<i32>} : memref<128x16xf32, #tpu.memory_space<vmem>>, vector<16x16xf32>,
    %c4_i32 = arith.constant 4 : i32
    %c16_i32_57 = arith.constant 16 : i32
    %191 = arith.muli %c4_i32, %c16_i32_57 : i32
    %192 = tpu.assume_multiple %191, 16 : i32
    %193 = arith.index_cast %192 : i32 to index
    %c0_58 = arith.constant 0 : index
    %194 = vector.load %arg21[%193, %c0_58] : memref<128x96xf32, #tpu.memory_space<vmem>>, vector<16x96xf32>
    %cst_59 = arith.constant dense<0.000000e+00> : vector<16x96xf32>
    %195 = tpu.matmul %183, %28, %cst_59 {dimension_numbers = #tpu.dot_dimension_numbers<[1], [0], [0], [1], [0, 0, 1, 1], [], []>} : vector<16x32xf32>, vector<32x96xf32>, vector<16x96xf32> -> vector<16x96xf32>
    %196 = vector.broadcast %29 : vector<1x96xf32> to vector<16x96xf32>
    %197 = arith.addf %195, %196 : vector<16x96xf32>
    %198 = vector.extract_strided_slice %194 {offsets = [0, 0], sizes = [16, 32], strides = [1, 1]} : vector<16x96xf32> to vector<16x32xf32>
    %199 = vector.extract_strided_slice %197 {offsets = [0, 0], sizes = [16, 32], strides = [1, 1]} : vector<16x96xf32> to vector<16x32xf32>
    %200 = arith.addf %198, %199 : vector<16x32xf32>
    %201 = arith.negf %200 : vector<16x32xf32>
    %202 = math.exp %201 : vector<16x32xf32>
    %cst_60 = arith.constant 1.000000e+00 : f32
    %203 = vector.broadcast %cst_60 : f32 to vector<16x32xf32>
    %204 = arith.addf %203, %202 : vector<16x32xf32>
    %205 = arith.divf %203, %204 : vector<16x32xf32>
    %206 = vector.extract_strided_slice %194 {offsets = [0, 32], sizes = [16, 32], strides = [1, 1]} : vector<16x96xf32> to vector<16x32xf32>
    %207 = vector.extract_strided_slice %197 {offsets = [0, 32], sizes = [16, 32], strides = [1, 1]} : vector<16x96xf32> to vector<16x32xf32>
    %208 = arith.addf %206, %207 : vector<16x32xf32>
    %209 = arith.negf %208 : vector<16x32xf32>
    %210 = math.exp %209 : vector<16x32xf32>
    %cst_61 = arith.constant 1.000000e+00 : f32
    %211 = vector.broadcast %cst_61 : f32 to vector<16x32xf32>
    %212 = arith.addf %211, %210 : vector<16x32xf32>
    %213 = arith.divf %211, %212 : vector<16x32xf32>
    %214 = vector.extract_strided_slice %194 {offsets = [0, 64], sizes = [16, 32], strides = [1, 1]} : vector<16x96xf32> to vector<16x32xf32>
    %215 = vector.extract_strided_slice %197 {offsets = [0, 64], sizes = [16, 32], strides = [1, 1]} : vector<16x96xf32> to vector<16x32xf32>
    %216 = arith.mulf %205, %215 : vector<16x32xf32>
    %217 = arith.addf %214, %216 : vector<16x32xf32>
    %218 = math.tanh %217 : vector<16x32xf32>
    %cst_62 = arith.constant 1.000000e+00 : f32
    %219 = vector.broadcast %cst_62 : f32 to vector<16x32xf32>
    %220 = arith.subf %219, %213 : vector<16x32xf32>
    %221 = arith.mulf %220, %218 : vector<16x32xf32>
    %222 = arith.mulf %213, %183 : vector<16x32xf32>
    %223 = arith.addf %221, %222 : vector<16x32xf32>
    %224 = vector.extract_strided_slice %223 {offsets = [0, 0], sizes = [16, 16], strides = [1, 1]} : vector<16x32xf32> to vector<16x16xf32>
    %225 = vector.extract_strided_slice %223 {offsets = [0, 16], sizes = [16, 16], strides = [1, 1]} : vector<16x32xf32> to vector<16x16xf32>
    %226 = arith.addf %224, %225 : vector<16x16xf32>
    %cst_63 = arith.constant 5.000000e-01 : f32
    %227 = vector.broadcast %cst_63 : f32 to vector<16x16xf32>
    %228 = arith.mulf %226, %227 : vector<16x16xf32>
    %229 = arith.index_cast %192 : i32 to index
    %c0_64 = arith.constant 0 : index
    %230 = vector.load %arg22[%229, %c0_64] : memref<128x16xf32, #tpu.memory_space<vmem>>, vector<16x16xf32>
    tpu.vector_store %arg22[%229, %c0_64], %228 {strides = array<i32>} : memref<128x16xf32, #tpu.memory_space<vmem>>, vector<16x16xf32>,
    %c5_i32 = arith.constant 5 : i32
    %c16_i32_65 = arith.constant 16 : i32
    %231 = arith.muli %c5_i32, %c16_i32_65 : i32
    %232 = tpu.assume_multiple %231, 16 : i32
    %233 = arith.index_cast %232 : i32 to index
    %c0_66 = arith.constant 0 : index
    %234 = vector.load %arg21[%233, %c0_66] : memref<128x96xf32, #tpu.memory_space<vmem>>, vector<16x96xf32>
    %cst_67 = arith.constant dense<0.000000e+00> : vector<16x96xf32>
    %235 = tpu.matmul %223, %28, %cst_67 {dimension_numbers = #tpu.dot_dimension_numbers<[1], [0], [0], [1], [0, 0, 1, 1], [], []>} : vector<16x32xf32>, vector<32x96xf32>, vector<16x96xf32> -> vector<16x96xf32>
    %236 = vector.broadcast %29 : vector<1x96xf32> to vector<16x96xf32>
    %237 = arith.addf %235, %236 : vector<16x96xf32>
    %238 = vector.extract_strided_slice %234 {offsets = [0, 0], sizes = [16, 32], strides = [1, 1]} : vector<16x96xf32> to vector<16x32xf32>
    %239 = vector.extract_strided_slice %237 {offsets = [0, 0], sizes = [16, 32], strides = [1, 1]} : vector<16x96xf32> to vector<16x32xf32>
    %240 = arith.addf %238, %239 : vector<16x32xf32>
    %241 = arith.negf %240 : vector<16x32xf32>
    %242 = math.exp %241 : vector<16x32xf32>
    %cst_68 = arith.constant 1.000000e+00 : f32
    %243 = vector.broadcast %cst_68 : f32 to vector<16x32xf32>
    %244 = arith.addf %243, %242 : vector<16x32xf32>
    %245 = arith.divf %243, %244 : vector<16x32xf32>
    %246 = vector.extract_strided_slice %234 {offsets = [0, 32], sizes = [16, 32], strides = [1, 1]} : vector<16x96xf32> to vector<16x32xf32>
    %247 = vector.extract_strided_slice %237 {offsets = [0, 32], sizes = [16, 32], strides = [1, 1]} : vector<16x96xf32> to vector<16x32xf32>
    %248 = arith.addf %246, %247 : vector<16x32xf32>
    %249 = arith.negf %248 : vector<16x32xf32>
    %250 = math.exp %249 : vector<16x32xf32>
    %cst_69 = arith.constant 1.000000e+00 : f32
    %251 = vector.broadcast %cst_69 : f32 to vector<16x32xf32>
    %252 = arith.addf %251, %250 : vector<16x32xf32>
    %253 = arith.divf %251, %252 : vector<16x32xf32>
    %254 = vector.extract_strided_slice %234 {offsets = [0, 64], sizes = [16, 32], strides = [1, 1]} : vector<16x96xf32> to vector<16x32xf32>
    %255 = vector.extract_strided_slice %237 {offsets = [0, 64], sizes = [16, 32], strides = [1, 1]} : vector<16x96xf32> to vector<16x32xf32>
    %256 = arith.mulf %245, %255 : vector<16x32xf32>
    %257 = arith.addf %254, %256 : vector<16x32xf32>
    %258 = math.tanh %257 : vector<16x32xf32>
    %cst_70 = arith.constant 1.000000e+00 : f32
    %259 = vector.broadcast %cst_70 : f32 to vector<16x32xf32>
    %260 = arith.subf %259, %253 : vector<16x32xf32>
    %261 = arith.mulf %260, %258 : vector<16x32xf32>
    %262 = arith.mulf %253, %223 : vector<16x32xf32>
    %263 = arith.addf %261, %262 : vector<16x32xf32>
    %264 = vector.extract_strided_slice %263 {offsets = [0, 0], sizes = [16, 16], strides = [1, 1]} : vector<16x32xf32> to vector<16x16xf32>
    %265 = vector.extract_strided_slice %263 {offsets = [0, 16], sizes = [16, 16], strides = [1, 1]} : vector<16x32xf32> to vector<16x16xf32>
    %266 = arith.addf %264, %265 : vector<16x16xf32>
    %cst_71 = arith.constant 5.000000e-01 : f32
    %267 = vector.broadcast %cst_71 : f32 to vector<16x16xf32>
    %268 = arith.mulf %266, %267 : vector<16x16xf32>
    %269 = arith.index_cast %232 : i32 to index
    %c0_72 = arith.constant 0 : index
    %270 = vector.load %arg22[%269, %c0_72] : memref<128x16xf32, #tpu.memory_space<vmem>>, vector<16x16xf32>
    tpu.vector_store %arg22[%269, %c0_72], %268 {strides = array<i32>} : memref<128x16xf32, #tpu.memory_space<vmem>>, vector<16x16xf32>,
    %c6_i32 = arith.constant 6 : i32
    %c16_i32_73 = arith.constant 16 : i32
    %271 = arith.muli %c6_i32, %c16_i32_73 : i32
    %272 = tpu.assume_multiple %271, 16 : i32
    %273 = arith.index_cast %272 : i32 to index
    %c0_74 = arith.constant 0 : index
    %274 = vector.load %arg21[%273, %c0_74] : memref<128x96xf32, #tpu.memory_space<vmem>>, vector<16x96xf32>
    %cst_75 = arith.constant dense<0.000000e+00> : vector<16x96xf32>
    %275 = tpu.matmul %263, %28, %cst_75 {dimension_numbers = #tpu.dot_dimension_numbers<[1], [0], [0], [1], [0, 0, 1, 1], [], []>} : vector<16x32xf32>, vector<32x96xf32>, vector<16x96xf32> -> vector<16x96xf32>
    %276 = vector.broadcast %29 : vector<1x96xf32> to vector<16x96xf32>
    %277 = arith.addf %275, %276 : vector<16x96xf32>
    %278 = vector.extract_strided_slice %274 {offsets = [0, 0], sizes = [16, 32], strides = [1, 1]} : vector<16x96xf32> to vector<16x32xf32>
    %279 = vector.extract_strided_slice %277 {offsets = [0, 0], sizes = [16, 32], strides = [1, 1]} : vector<16x96xf32> to vector<16x32xf32>
    %280 = arith.addf %278, %279 : vector<16x32xf32>
    %281 = arith.negf %280 : vector<16x32xf32>
    %282 = math.exp %281 : vector<16x32xf32>
    %cst_76 = arith.constant 1.000000e+00 : f32
    %283 = vector.broadcast %cst_76 : f32 to vector<16x32xf32>
    %284 = arith.addf %283, %282 : vector<16x32xf32>
    %285 = arith.divf %283, %284 : vector<16x32xf32>
    %286 = vector.extract_strided_slice %274 {offsets = [0, 32], sizes = [16, 32], strides = [1, 1]} : vector<16x96xf32> to vector<16x32xf32>
    %287 = vector.extract_strided_slice %277 {offsets = [0, 32], sizes = [16, 32], strides = [1, 1]} : vector<16x96xf32> to vector<16x32xf32>
    %288 = arith.addf %286, %287 : vector<16x32xf32>
    %289 = arith.negf %288 : vector<16x32xf32>
    %290 = math.exp %289 : vector<16x32xf32>
    %cst_77 = arith.constant 1.000000e+00 : f32
    %291 = vector.broadcast %cst_77 : f32 to vector<16x32xf32>
    %292 = arith.addf %291, %290 : vector<16x32xf32>
    %293 = arith.divf %291, %292 : vector<16x32xf32>
    %294 = vector.extract_strided_slice %274 {offsets = [0, 64], sizes = [16, 32], strides = [1, 1]} : vector<16x96xf32> to vector<16x32xf32>
    %295 = vector.extract_strided_slice %277 {offsets = [0, 64], sizes = [16, 32], strides = [1, 1]} : vector<16x96xf32> to vector<16x32xf32>
    %296 = arith.mulf %285, %295 : vector<16x32xf32>
    %297 = arith.addf %294, %296 : vector<16x32xf32>
    %298 = math.tanh %297 : vector<16x32xf32>
    %cst_78 = arith.constant 1.000000e+00 : f32
    %299 = vector.broadcast %cst_78 : f32 to vector<16x32xf32>
    %300 = arith.subf %299, %293 : vector<16x32xf32>
    %301 = arith.mulf %300, %298 : vector<16x32xf32>
    %302 = arith.mulf %293, %263 : vector<16x32xf32>
    %303 = arith.addf %301, %302 : vector<16x32xf32>
    %304 = vector.extract_strided_slice %303 {offsets = [0, 0], sizes = [16, 16], strides = [1, 1]} : vector<16x32xf32> to vector<16x16xf32>
    %305 = vector.extract_strided_slice %303 {offsets = [0, 16], sizes = [16, 16], strides = [1, 1]} : vector<16x32xf32> to vector<16x16xf32>
    %306 = arith.addf %304, %305 : vector<16x16xf32>
    %cst_79 = arith.constant 5.000000e-01 : f32
    %307 = vector.broadcast %cst_79 : f32 to vector<16x16xf32>
    %308 = arith.mulf %306, %307 : vector<16x16xf32>
    %309 = arith.index_cast %272 : i32 to index
    %c0_80 = arith.constant 0 : index
    %310 = vector.load %arg22[%309, %c0_80] : memref<128x16xf32, #tpu.memory_space<vmem>>, vector<16x16xf32>
    tpu.vector_store %arg22[%309, %c0_80], %308 {strides = array<i32>} : memref<128x16xf32, #tpu.memory_space<vmem>>, vector<16x16xf32>,
    %c7_i32 = arith.constant 7 : i32
    %c16_i32_81 = arith.constant 16 : i32
    %311 = arith.muli %c7_i32, %c16_i32_81 : i32
    %312 = tpu.assume_multiple %311, 16 : i32
    %313 = arith.index_cast %312 : i32 to index
    %c0_82 = arith.constant 0 : index
    %314 = vector.load %arg21[%313, %c0_82] : memref<128x96xf32, #tpu.memory_space<vmem>>, vector<16x96xf32>
    %cst_83 = arith.constant dense<0.000000e+00> : vector<16x96xf32>
    %315 = tpu.matmul %303, %28, %cst_83 {dimension_numbers = #tpu.dot_dimension_numbers<[1], [0], [0], [1], [0, 0, 1, 1], [], []>} : vector<16x32xf32>, vector<32x96xf32>, vector<16x96xf32> -> vector<16x96xf32>
    %316 = vector.broadcast %29 : vector<1x96xf32> to vector<16x96xf32>
    %317 = arith.addf %315, %316 : vector<16x96xf32>
    %318 = vector.extract_strided_slice %314 {offsets = [0, 0], sizes = [16, 32], strides = [1, 1]} : vector<16x96xf32> to vector<16x32xf32>
    %319 = vector.extract_strided_slice %317 {offsets = [0, 0], sizes = [16, 32], strides = [1, 1]} : vector<16x96xf32> to vector<16x32xf32>
    %320 = arith.addf %318, %319 : vector<16x32xf32>
    %321 = arith.negf %320 : vector<16x32xf32>
    %322 = math.exp %321 : vector<16x32xf32>
    %cst_84 = arith.constant 1.000000e+00 : f32
    %323 = vector.broadcast %cst_84 : f32 to vector<16x32xf32>
    %324 = arith.addf %323, %322 : vector<16x32xf32>
    %325 = arith.divf %323, %324 : vector<16x32xf32>
    %326 = vector.extract_strided_slice %314 {offsets = [0, 32], sizes = [16, 32], strides = [1, 1]} : vector<16x96xf32> to vector<16x32xf32>
    %327 = vector.extract_strided_slice %317 {offsets = [0, 32], sizes = [16, 32], strides = [1, 1]} : vector<16x96xf32> to vector<16x32xf32>
    %328 = arith.addf %326, %327 : vector<16x32xf32>
    %329 = arith.negf %328 : vector<16x32xf32>
    %330 = math.exp %329 : vector<16x32xf32>
    %cst_85 = arith.constant 1.000000e+00 : f32
    %331 = vector.broadcast %cst_85 : f32 to vector<16x32xf32>
    %332 = arith.addf %331, %330 : vector<16x32xf32>
    %333 = arith.divf %331, %332 : vector<16x32xf32>
    %334 = vector.extract_strided_slice %314 {offsets = [0, 64], sizes = [16, 32], strides = [1, 1]} : vector<16x96xf32> to vector<16x32xf32>
    %335 = vector.extract_strided_slice %317 {offsets = [0, 64], sizes = [16, 32], strides = [1, 1]} : vector<16x96xf32> to vector<16x32xf32>
    %336 = arith.mulf %325, %335 : vector<16x32xf32>
    %337 = arith.addf %334, %336 : vector<16x32xf32>
    %338 = math.tanh %337 : vector<16x32xf32>
    %cst_86 = arith.constant 1.000000e+00 : f32
    %339 = vector.broadcast %cst_86 : f32 to vector<16x32xf32>
    %340 = arith.subf %339, %333 : vector<16x32xf32>
    %341 = arith.mulf %340, %338 : vector<16x32xf32>
    %342 = arith.mulf %333, %303 : vector<16x32xf32>
    %343 = arith.addf %341, %342 : vector<16x32xf32>
    %344 = vector.extract_strided_slice %343 {offsets = [0, 0], sizes = [16, 16], strides = [1, 1]} : vector<16x32xf32> to vector<16x16xf32>
    %345 = vector.extract_strided_slice %343 {offsets = [0, 16], sizes = [16, 16], strides = [1, 1]} : vector<16x32xf32> to vector<16x16xf32>
    %346 = arith.addf %344, %345 : vector<16x16xf32>
    %cst_87 = arith.constant 5.000000e-01 : f32
    %347 = vector.broadcast %cst_87 : f32 to vector<16x16xf32>
    %348 = arith.mulf %346, %347 : vector<16x16xf32>
    %349 = arith.index_cast %312 : i32 to index
    %c0_88 = arith.constant 0 : index
    %350 = vector.load %arg22[%349, %c0_88] : memref<128x16xf32, #tpu.memory_space<vmem>>, vector<16x16xf32>
    tpu.vector_store %arg22[%349, %c0_88], %348 {strides = array<i32>} : memref<128x16xf32, #tpu.memory_space<vmem>>, vector<16x16xf32>,
    %c8_i32 = arith.constant 8 : i32
    %c0_89 = arith.constant 0 : index
    %c0_90 = arith.constant 0 : index
    %351 = vector.load %arg22[%c0_89, %c0_90] : memref<128x16xf32, #tpu.memory_space<vmem>>, vector<128x16xf32>
    %c0_91 = arith.constant 0 : index
    %c0_92 = arith.constant 0 : index
    %352 = vector.load %arg8[%c0_91, %c0_92] : memref<16x16xf32, #tpu.memory_space<vmem>>, vector<16x16xf32>
    %cst_93 = arith.constant dense<0.000000e+00> : vector<128x16xf32>
    %353 = tpu.matmul %351, %352, %cst_93 {dimension_numbers = #tpu.dot_dimension_numbers<[1], [0], [0], [1], [0, 0, 1, 1], [], []>} : vector<128x16xf32>, vector<16x16xf32>, vector<128x16xf32> -> vector<128x16xf32>
    %c0_94 = arith.constant 0 : index
    %c0_95 = arith.constant 0 : index
    %354 = vector.load %arg9[%c0_94, %c0_95] : memref<1x16xf32, #tpu.memory_space<vmem>>, vector<1x16xf32>
    %355 = vector.broadcast %354 : vector<1x16xf32> to vector<128x16xf32>
    %356 = arith.addf %353, %355 : vector<128x16xf32>
    %c0_96 = arith.constant 0 : index
    %c0_97 = arith.constant 0 : index
    %357 = vector.load %arg10[%c0_96, %c0_97] : memref<1x16xf32, #tpu.memory_space<vmem>>, vector<1x16xf32>
    %358 = vector.broadcast %357 : vector<1x16xf32> to vector<128x16xf32>
    %359 = arith.mulf %356, %358 : vector<128x16xf32>
    %cst_98 = arith.constant dense<0.000000e+00> : vector<128xf32>
    %360 = vector.multi_reduction <add>, %359, %cst_98 [1] : vector<128x16xf32> to vector<128xf32>
    %361 = vector.shape_cast %360 : vector<128xf32> to vector<128x1xf32>
    %c0_99 = arith.constant 0 : index
    %c0_100 = arith.constant 0 : index
    %362 = vector.load %arg11[%c0_99, %c0_100] : memref<8x16xf32, #tpu.memory_space<vmem>>, vector<8x16xf32>
    %cst_101 = arith.constant dense<0.000000e+00> : vector<8x128xf32>
    %363 = tpu.matmul %362, %356, %cst_101 {dimension_numbers = #tpu.dot_dimension_numbers<[1], [1], [0], [0], [0, 0, 1, 0], [], []>} : vector<8x16xf32>, vector<128x16xf32>, vector<8x128xf32> -> vector<8x128xf32>
    %364 = vector.extract_strided_slice %363 {offsets = [0, 0], sizes = [1, 128], strides = [1, 1]} : vector<8x128xf32> to vector<1x128xf32>
    %365 = vector.broadcast %361 : vector<128x1xf32> to vector<128x128xf32>
    %366 = vector.broadcast %364 : vector<1x128xf32> to vector<128x128xf32>
    %367 = arith.addf %365, %366 : vector<128x128xf32>
    %cst_102 = arith.constant 0.000000e+00 : f32
    %368 = vector.broadcast %cst_102 : f32 to vector<128x128xf32>
    %369 = arith.cmpf ogt, %367, %368 : vector<128x128xf32>
    %cst_103 = arith.constant 2.000000e-01 : f32
    %370 = vector.broadcast %cst_103 : f32 to vector<128x128xf32>
    %371 = arith.mulf %370, %367 : vector<128x128xf32>
    %372 = arith.select %369, %367, %371 : vector<128x128xi1>, vector<128x128xf32>
    %c0_104 = arith.constant 0 : index
    %c0_105 = arith.constant 0 : index
    %373 = vector.load %arg1[%c0_104, %c0_105] : memref<128x128xf32, #tpu.memory_space<vmem>>, vector<128x128xf32>
    %cst_106 = arith.constant 0.000000e+00 : f32
    %374 = vector.broadcast %cst_106 : f32 to vector<128x128xf32>
    %375 = arith.cmpf ogt, %373, %374 : vector<128x128xf32>
    %cst_107 = arith.constant -1.000000e+09 : f32
    %376 = vector.broadcast %cst_107 : f32 to vector<128x128xf32>
    %377 = arith.select %375, %372, %376 : vector<128x128xi1>, vector<128x128xf32>
    %cst_108 = arith.constant dense<0xFF800000> : vector<128xf32>
    %378 = vector.multi_reduction <maximumf>, %377, %cst_108 [1] : vector<128x128xf32> to vector<128xf32>
    %379 = vector.shape_cast %378 : vector<128xf32> to vector<128x1xf32>
    %380 = vector.broadcast %379 : vector<128x1xf32> to vector<128x128xf32>
    %381 = arith.subf %377, %380 : vector<128x128xf32>
    %382 = math.exp %381 : vector<128x128xf32>
    %cst_109 = arith.constant 0.000000e+00 : f32
    %383 = vector.broadcast %cst_109 : f32 to vector<128x128xf32>
    %384 = arith.select %375, %382, %383 : vector<128x128xi1>, vector<128x128xf32>
    %cst_110 = arith.constant dense<0.000000e+00> : vector<128xf32>
    %385 = vector.multi_reduction <add>, %384, %cst_110 [1] : vector<128x128xf32> to vector<128xf32>
    %386 = vector.shape_cast %385 : vector<128xf32> to vector<128x1xf32>
    %cst_111 = arith.constant 9.99999971E-10 : f32
    %387 = vector.broadcast %cst_111 : f32 to vector<128x1xf32>
    %388 = arith.maximumf %386, %387 : vector<128x1xf32>
    %389 = tpu.reciprocal %388 {approx = true} : vector<128x1xf32> -> vector<128x1xf32>
    %390 = vector.broadcast %389 : vector<128x1xf32> to vector<128x128xf32>
    %391 = arith.mulf %384, %390 : vector<128x128xf32>
    %cst_112 = arith.constant dense<0.000000e+00> : vector<128x16xf32>
    %392 = tpu.matmul %391, %356, %cst_112 {dimension_numbers = #tpu.dot_dimension_numbers<[1], [0], [0], [1], [0, 0, 1, 1], [], []>} : vector<128x128xf32>, vector<128x16xf32>, vector<128x16xf32> -> vector<128x16xf32>
    %cst_113 = arith.constant 0.000000e+00 : f32
    %393 = vector.broadcast %cst_113 : f32 to vector<128x16xf32>
    %394 = arith.maximumf %392, %393 : vector<128x16xf32>
    %cst_114 = arith.constant 0.000000e+00 : f32
    %395 = vector.broadcast %cst_114 : f32 to vector<16x16xf32>
    %396 = vector.extract_strided_slice %394 {offsets = [0, 0], sizes = [112, 16], strides = [1, 1]} : vector<128x16xf32> to vector<112x16xf32>
    %397 = tpu.concatenate %395, %396 in 0 : vector<16x16xf32>, vector<112x16xf32> -> vector<128x16xf32>
    %398 = vector.extract_strided_slice %394 {offsets = [16, 0], sizes = [112, 16], strides = [1, 1]} : vector<128x16xf32> to vector<112x16xf32>
    %399 = tpu.concatenate %398, %395 in 0 : vector<112x16xf32>, vector<16x16xf32> -> vector<128x16xf32>
    %c0_115 = arith.constant 0 : index
    %c0_116 = arith.constant 0 : index
    %c0_117 = arith.constant 0 : index
    %400 = vector.load %arg12[%c0_115, %c0_116, %c0_117] : memref<3x16x16xf32, #tpu.memory_space<vmem>>, vector<1x16x16xf32>
    %401 = vector.shape_cast %400 : vector<1x16x16xf32> to vector<16x16xf32>
    %cst_118 = arith.constant dense<0.000000e+00> : vector<128x16xf32>
    %402 = tpu.matmul %397, %401, %cst_118 {dimension_numbers = #tpu.dot_dimension_numbers<[1], [0], [0], [1], [0, 0, 1, 1], [], []>} : vector<128x16xf32>, vector<16x16xf32>, vector<128x16xf32> -> vector<128x16xf32>
    %c1_119 = arith.constant 1 : index
    %c0_120 = arith.constant 0 : index
    %c0_121 = arith.constant 0 : index
    %403 = vector.load %arg12[%c1_119, %c0_120, %c0_121] : memref<3x16x16xf32, #tpu.memory_space<vmem>>, vector<1x16x16xf32>
    %404 = vector.shape_cast %403 : vector<1x16x16xf32> to vector<16x16xf32>
    %cst_122 = arith.constant dense<0.000000e+00> : vector<128x16xf32>
    %405 = tpu.matmul %394, %404, %cst_122 {dimension_numbers = #tpu.dot_dimension_numbers<[1], [0], [0], [1], [0, 0, 1, 1], [], []>} : vector<128x16xf32>, vector<16x16xf32>, vector<128x16xf32> -> vector<128x16xf32>
    %406 = arith.addf %402, %405 : vector<128x16xf32>
    %c2_123 = arith.constant 2 : index
    %c0_124 = arith.constant 0 : index
    %c0_125 = arith.constant 0 : index
    %407 = vector.load %arg12[%c2_123, %c0_124, %c0_125] : memref<3x16x16xf32, #tpu.memory_space<vmem>>, vector<1x16x16xf32>
    %408 = vector.shape_cast %407 : vector<1x16x16xf32> to vector<16x16xf32>
    %cst_126 = arith.constant dense<0.000000e+00> : vector<128x16xf32>
    %409 = tpu.matmul %399, %408, %cst_126 {dimension_numbers = #tpu.dot_dimension_numbers<[1], [0], [0], [1], [0, 0, 1, 1], [], []>} : vector<128x16xf32>, vector<16x16xf32>, vector<128x16xf32> -> vector<128x16xf32>
    %410 = arith.addf %406, %409 : vector<128x16xf32>
    %c0_127 = arith.constant 0 : index
    %c0_128 = arith.constant 0 : index
    %411 = vector.load %arg13[%c0_127, %c0_128] : memref<1x16xf32, #tpu.memory_space<vmem>>, vector<1x16xf32>
    %412 = vector.broadcast %411 : vector<1x16xf32> to vector<128x16xf32>
    %413 = arith.addf %410, %412 : vector<128x16xf32>
    %cst_129 = arith.constant 0.000000e+00 : f32
    %414 = vector.broadcast %cst_129 : f32 to vector<128x16xf32>
    %415 = arith.maximumf %413, %414 : vector<128x16xf32>
    %c0_130 = arith.constant 0 : index
    %c0_131 = arith.constant 0 : index
    %416 = vector.load %arg14[%c0_130, %c0_131] : memref<16x96xf32, #tpu.memory_space<vmem>>, vector<16x96xf32>
    %cst_132 = arith.constant dense<0.000000e+00> : vector<128x96xf32>
    %417 = tpu.matmul %415, %416, %cst_132 {dimension_numbers = #tpu.dot_dimension_numbers<[1], [0], [0], [1], [0, 0, 1, 1], [], []>} : vector<128x16xf32>, vector<16x96xf32>, vector<128x96xf32> -> vector<128x96xf32>
    %c0_133 = arith.constant 0 : index
    %c0_134 = arith.constant 0 : index
    %418 = vector.load %arg15[%c0_133, %c0_134] : memref<1x96xf32, #tpu.memory_space<vmem>>, vector<1x96xf32>
    %419 = vector.broadcast %418 : vector<1x96xf32> to vector<128x96xf32>
    %420 = arith.addf %417, %419 : vector<128x96xf32>
    %c0_135 = arith.constant 0 : index
    %c0_136 = arith.constant 0 : index
    %421 = vector.load %arg21[%c0_135, %c0_136] : memref<128x96xf32, #tpu.memory_space<vmem>>, vector<128x96xf32>
    tpu.vector_store %arg21[%c0_135, %c0_136], %420 {strides = array<i32>} : memref<128x96xf32, #tpu.memory_space<vmem>>, vector<128x96xf32>,
    %c0_137 = arith.constant 0 : index
    %c0_138 = arith.constant 0 : index
    %422 = vector.load %arg16[%c0_137, %c0_138] : memref<32x96xf32, #tpu.memory_space<vmem>>, vector<32x96xf32>
    %c0_139 = arith.constant 0 : index
    %c0_140 = arith.constant 0 : index
    %423 = vector.load %arg17[%c0_139, %c0_140] : memref<1x96xf32, #tpu.memory_space<vmem>>, vector<1x96xf32>
    %cst_141 = arith.constant 0.000000e+00 : f32
    %424 = vector.broadcast %cst_141 : f32 to vector<16x32xf32>
    %cst_142 = arith.constant 0xFF800000 : f32
    %425 = vector.broadcast %cst_142 : f32 to vector<16x16xf32>
    %c0_i32_143 = arith.constant 0 : i32
    %c16_i32_144 = arith.constant 16 : i32
    %426 = arith.muli %c0_i32_143, %c16_i32_144 : i32
    %427 = tpu.assume_multiple %426, 16 : i32
    %428 = arith.index_cast %427 : i32 to index
    %c0_145 = arith.constant 0 : index
    %429 = vector.load %arg21[%428, %c0_145] : memref<128x96xf32, #tpu.memory_space<vmem>>, vector<16x96xf32>
    %cst_146 = arith.constant dense<0.000000e+00> : vector<16x96xf32>
    %430 = tpu.matmul %424, %422, %cst_146 {dimension_numbers = #tpu.dot_dimension_numbers<[1], [0], [0], [1], [0, 0, 1, 1], [], []>} : vector<16x32xf32>, vector<32x96xf32>, vector<16x96xf32> -> vector<16x96xf32>
    %431 = vector.broadcast %423 : vector<1x96xf32> to vector<16x96xf32>
    %432 = arith.addf %430, %431 : vector<16x96xf32>
    %433 = vector.extract_strided_slice %429 {offsets = [0, 0], sizes = [16, 32], strides = [1, 1]} : vector<16x96xf32> to vector<16x32xf32>
    %434 = vector.extract_strided_slice %432 {offsets = [0, 0], sizes = [16, 32], strides = [1, 1]} : vector<16x96xf32> to vector<16x32xf32>
    %435 = arith.addf %433, %434 : vector<16x32xf32>
    %436 = arith.negf %435 : vector<16x32xf32>
    %437 = math.exp %436 : vector<16x32xf32>
    %cst_147 = arith.constant 1.000000e+00 : f32
    %438 = vector.broadcast %cst_147 : f32 to vector<16x32xf32>
    %439 = arith.addf %438, %437 : vector<16x32xf32>
    %440 = arith.divf %438, %439 : vector<16x32xf32>
    %441 = vector.extract_strided_slice %429 {offsets = [0, 32], sizes = [16, 32], strides = [1, 1]} : vector<16x96xf32> to vector<16x32xf32>
    %442 = vector.extract_strided_slice %432 {offsets = [0, 32], sizes = [16, 32], strides = [1, 1]} : vector<16x96xf32> to vector<16x32xf32>
    %443 = arith.addf %441, %442 : vector<16x32xf32>
    %444 = arith.negf %443 : vector<16x32xf32>
    %445 = math.exp %444 : vector<16x32xf32>
    %cst_148 = arith.constant 1.000000e+00 : f32
    %446 = vector.broadcast %cst_148 : f32 to vector<16x32xf32>
    %447 = arith.addf %446, %445 : vector<16x32xf32>
    %448 = arith.divf %446, %447 : vector<16x32xf32>
    %449 = vector.extract_strided_slice %429 {offsets = [0, 64], sizes = [16, 32], strides = [1, 1]} : vector<16x96xf32> to vector<16x32xf32>
    %450 = vector.extract_strided_slice %432 {offsets = [0, 64], sizes = [16, 32], strides = [1, 1]} : vector<16x96xf32> to vector<16x32xf32>
    %451 = arith.mulf %440, %450 : vector<16x32xf32>
    %452 = arith.addf %449, %451 : vector<16x32xf32>
    %453 = math.tanh %452 : vector<16x32xf32>
    %cst_149 = arith.constant 1.000000e+00 : f32
    %454 = vector.broadcast %cst_149 : f32 to vector<16x32xf32>
    %455 = arith.subf %454, %448 : vector<16x32xf32>
    %456 = arith.mulf %455, %453 : vector<16x32xf32>
    %457 = arith.mulf %448, %424 : vector<16x32xf32>
    %458 = arith.addf %456, %457 : vector<16x32xf32>
    %459 = vector.extract_strided_slice %458 {offsets = [0, 0], sizes = [16, 16], strides = [1, 1]} : vector<16x32xf32> to vector<16x16xf32>
    %460 = vector.extract_strided_slice %458 {offsets = [0, 16], sizes = [16, 16], strides = [1, 1]} : vector<16x32xf32> to vector<16x16xf32>
    %461 = arith.addf %459, %460 : vector<16x16xf32>
    %cst_150 = arith.constant 5.000000e-01 : f32
    %462 = vector.broadcast %cst_150 : f32 to vector<16x16xf32>
    %463 = arith.mulf %461, %462 : vector<16x16xf32>
    %464 = arith.index_cast %427 : i32 to index
    %c0_151 = arith.constant 0 : index
    %465 = vector.load %arg22[%464, %c0_151] : memref<128x16xf32, #tpu.memory_space<vmem>>, vector<16x16xf32>
    %466 = arith.addf %465, %463 : vector<16x16xf32>
    %467 = arith.maximumf %425, %466 : vector<16x16xf32>
    %c1_i32_152 = arith.constant 1 : i32
    %c16_i32_153 = arith.constant 16 : i32
    %468 = arith.muli %c1_i32_152, %c16_i32_153 : i32
    %469 = tpu.assume_multiple %468, 16 : i32
    %470 = arith.index_cast %469 : i32 to index
    %c0_154 = arith.constant 0 : index
    %471 = vector.load %arg21[%470, %c0_154] : memref<128x96xf32, #tpu.memory_space<vmem>>, vector<16x96xf32>
    %cst_155 = arith.constant dense<0.000000e+00> : vector<16x96xf32>
    %472 = tpu.matmul %458, %422, %cst_155 {dimension_numbers = #tpu.dot_dimension_numbers<[1], [0], [0], [1], [0, 0, 1, 1], [], []>} : vector<16x32xf32>, vector<32x96xf32>, vector<16x96xf32> -> vector<16x96xf32>
    %473 = vector.broadcast %423 : vector<1x96xf32> to vector<16x96xf32>
    %474 = arith.addf %472, %473 : vector<16x96xf32>
    %475 = vector.extract_strided_slice %471 {offsets = [0, 0], sizes = [16, 32], strides = [1, 1]} : vector<16x96xf32> to vector<16x32xf32>
    %476 = vector.extract_strided_slice %474 {offsets = [0, 0], sizes = [16, 32], strides = [1, 1]} : vector<16x96xf32> to vector<16x32xf32>
    %477 = arith.addf %475, %476 : vector<16x32xf32>
    %478 = arith.negf %477 : vector<16x32xf32>
    %479 = math.exp %478 : vector<16x32xf32>
    %cst_156 = arith.constant 1.000000e+00 : f32
    %480 = vector.broadcast %cst_156 : f32 to vector<16x32xf32>
    %481 = arith.addf %480, %479 : vector<16x32xf32>
    %482 = arith.divf %480, %481 : vector<16x32xf32>
    %483 = vector.extract_strided_slice %471 {offsets = [0, 32], sizes = [16, 32], strides = [1, 1]} : vector<16x96xf32> to vector<16x32xf32>
    %484 = vector.extract_strided_slice %474 {offsets = [0, 32], sizes = [16, 32], strides = [1, 1]} : vector<16x96xf32> to vector<16x32xf32>
    %485 = arith.addf %483, %484 : vector<16x32xf32>
    %486 = arith.negf %485 : vector<16x32xf32>
    %487 = math.exp %486 : vector<16x32xf32>
    %cst_157 = arith.constant 1.000000e+00 : f32
    %488 = vector.broadcast %cst_157 : f32 to vector<16x32xf32>
    %489 = arith.addf %488, %487 : vector<16x32xf32>
    %490 = arith.divf %488, %489 : vector<16x32xf32>
    %491 = vector.extract_strided_slice %471 {offsets = [0, 64], sizes = [16, 32], strides = [1, 1]} : vector<16x96xf32> to vector<16x32xf32>
    %492 = vector.extract_strided_slice %474 {offsets = [0, 64], sizes = [16, 32], strides = [1, 1]} : vector<16x96xf32> to vector<16x32xf32>
    %493 = arith.mulf %482, %492 : vector<16x32xf32>
    %494 = arith.addf %491, %493 : vector<16x32xf32>
    %495 = math.tanh %494 : vector<16x32xf32>
    %cst_158 = arith.constant 1.000000e+00 : f32
    %496 = vector.broadcast %cst_158 : f32 to vector<16x32xf32>
    %497 = arith.subf %496, %490 : vector<16x32xf32>
    %498 = arith.mulf %497, %495 : vector<16x32xf32>
    %499 = arith.mulf %490, %458 : vector<16x32xf32>
    %500 = arith.addf %498, %499 : vector<16x32xf32>
    %501 = vector.extract_strided_slice %500 {offsets = [0, 0], sizes = [16, 16], strides = [1, 1]} : vector<16x32xf32> to vector<16x16xf32>
    %502 = vector.extract_strided_slice %500 {offsets = [0, 16], sizes = [16, 16], strides = [1, 1]} : vector<16x32xf32> to vector<16x16xf32>
    %503 = arith.addf %501, %502 : vector<16x16xf32>
    %cst_159 = arith.constant 5.000000e-01 : f32
    %504 = vector.broadcast %cst_159 : f32 to vector<16x16xf32>
    %505 = arith.mulf %503, %504 : vector<16x16xf32>
    %506 = arith.index_cast %469 : i32 to index
    %c0_160 = arith.constant 0 : index
    %507 = vector.load %arg22[%506, %c0_160] : memref<128x16xf32, #tpu.memory_space<vmem>>, vector<16x16xf32>
    %508 = arith.addf %507, %505 : vector<16x16xf32>
    %509 = arith.maximumf %467, %508 : vector<16x16xf32>
    %c2_i32_161 = arith.constant 2 : i32
    %c16_i32_162 = arith.constant 16 : i32
    %510 = arith.muli %c2_i32_161, %c16_i32_162 : i32
    %511 = tpu.assume_multiple %510, 16 : i32
    %512 = arith.index_cast %511 : i32 to index
    %c0_163 = arith.constant 0 : index
    %513 = vector.load %arg21[%512, %c0_163] : memref<128x96xf32, #tpu.memory_space<vmem>>, vector<16x96xf32>
    %cst_164 = arith.constant dense<0.000000e+00> : vector<16x96xf32>
    %514 = tpu.matmul %500, %422, %cst_164 {dimension_numbers = #tpu.dot_dimension_numbers<[1], [0], [0], [1], [0, 0, 1, 1], [], []>} : vector<16x32xf32>, vector<32x96xf32>, vector<16x96xf32> -> vector<16x96xf32>
    %515 = vector.broadcast %423 : vector<1x96xf32> to vector<16x96xf32>
    %516 = arith.addf %514, %515 : vector<16x96xf32>
    %517 = vector.extract_strided_slice %513 {offsets = [0, 0], sizes = [16, 32], strides = [1, 1]} : vector<16x96xf32> to vector<16x32xf32>
    %518 = vector.extract_strided_slice %516 {offsets = [0, 0], sizes = [16, 32], strides = [1, 1]} : vector<16x96xf32> to vector<16x32xf32>
    %519 = arith.addf %517, %518 : vector<16x32xf32>
    %520 = arith.negf %519 : vector<16x32xf32>
    %521 = math.exp %520 : vector<16x32xf32>
    %cst_165 = arith.constant 1.000000e+00 : f32
    %522 = vector.broadcast %cst_165 : f32 to vector<16x32xf32>
    %523 = arith.addf %522, %521 : vector<16x32xf32>
    %524 = arith.divf %522, %523 : vector<16x32xf32>
    %525 = vector.extract_strided_slice %513 {offsets = [0, 32], sizes = [16, 32], strides = [1, 1]} : vector<16x96xf32> to vector<16x32xf32>
    %526 = vector.extract_strided_slice %516 {offsets = [0, 32], sizes = [16, 32], strides = [1, 1]} : vector<16x96xf32> to vector<16x32xf32>
    %527 = arith.addf %525, %526 : vector<16x32xf32>
    %528 = arith.negf %527 : vector<16x32xf32>
    %529 = math.exp %528 : vector<16x32xf32>
    %cst_166 = arith.constant 1.000000e+00 : f32
    %530 = vector.broadcast %cst_166 : f32 to vector<16x32xf32>
    %531 = arith.addf %530, %529 : vector<16x32xf32>
    %532 = arith.divf %530, %531 : vector<16x32xf32>
    %533 = vector.extract_strided_slice %513 {offsets = [0, 64], sizes = [16, 32], strides = [1, 1]} : vector<16x96xf32> to vector<16x32xf32>
    %534 = vector.extract_strided_slice %516 {offsets = [0, 64], sizes = [16, 32], strides = [1, 1]} : vector<16x96xf32> to vector<16x32xf32>
    %535 = arith.mulf %524, %534 : vector<16x32xf32>
    %536 = arith.addf %533, %535 : vector<16x32xf32>
    %537 = math.tanh %536 : vector<16x32xf32>
    %cst_167 = arith.constant 1.000000e+00 : f32
    %538 = vector.broadcast %cst_167 : f32 to vector<16x32xf32>
    %539 = arith.subf %538, %532 : vector<16x32xf32>
    %540 = arith.mulf %539, %537 : vector<16x32xf32>
    %541 = arith.mulf %532, %500 : vector<16x32xf32>
    %542 = arith.addf %540, %541 : vector<16x32xf32>
    %543 = vector.extract_strided_slice %542 {offsets = [0, 0], sizes = [16, 16], strides = [1, 1]} : vector<16x32xf32> to vector<16x16xf32>
    %544 = vector.extract_strided_slice %542 {offsets = [0, 16], sizes = [16, 16], strides = [1, 1]} : vector<16x32xf32> to vector<16x16xf32>
    %545 = arith.addf %543, %544 : vector<16x16xf32>
    %cst_168 = arith.constant 5.000000e-01 : f32
    %546 = vector.broadcast %cst_168 : f32 to vector<16x16xf32>
    %547 = arith.mulf %545, %546 : vector<16x16xf32>
    %548 = arith.index_cast %511 : i32 to index
    %c0_169 = arith.constant 0 : index
    %549 = vector.load %arg22[%548, %c0_169] : memref<128x16xf32, #tpu.memory_space<vmem>>, vector<16x16xf32>
    %550 = arith.addf %549, %547 : vector<16x16xf32>
    %551 = arith.maximumf %509, %550 : vector<16x16xf32>
    %c3_i32_170 = arith.constant 3 : i32
    %c16_i32_171 = arith.constant 16 : i32
    %552 = arith.muli %c3_i32_170, %c16_i32_171 : i32
    %553 = tpu.assume_multiple %552, 16 : i32
    %554 = arith.index_cast %553 : i32 to index
    %c0_172 = arith.constant 0 : index
    %555 = vector.load %arg21[%554, %c0_172] : memref<128x96xf32, #tpu.memory_space<vmem>>, vector<16x96xf32>
    %cst_173 = arith.constant dense<0.000000e+00> : vector<16x96xf32>
    %556 = tpu.matmul %542, %422, %cst_173 {dimension_numbers = #tpu.dot_dimension_numbers<[1], [0], [0], [1], [0, 0, 1, 1], [], []>} : vector<16x32xf32>, vector<32x96xf32>, vector<16x96xf32> -> vector<16x96xf32>
    %557 = vector.broadcast %423 : vector<1x96xf32> to vector<16x96xf32>
    %558 = arith.addf %556, %557 : vector<16x96xf32>
    %559 = vector.extract_strided_slice %555 {offsets = [0, 0], sizes = [16, 32], strides = [1, 1]} : vector<16x96xf32> to vector<16x32xf32>
    %560 = vector.extract_strided_slice %558 {offsets = [0, 0], sizes = [16, 32], strides = [1, 1]} : vector<16x96xf32> to vector<16x32xf32>
    %561 = arith.addf %559, %560 : vector<16x32xf32>
    %562 = arith.negf %561 : vector<16x32xf32>
    %563 = math.exp %562 : vector<16x32xf32>
    %cst_174 = arith.constant 1.000000e+00 : f32
    %564 = vector.broadcast %cst_174 : f32 to vector<16x32xf32>
    %565 = arith.addf %564, %563 : vector<16x32xf32>
    %566 = arith.divf %564, %565 : vector<16x32xf32>
    %567 = vector.extract_strided_slice %555 {offsets = [0, 32], sizes = [16, 32], strides = [1, 1]} : vector<16x96xf32> to vector<16x32xf32>
    %568 = vector.extract_strided_slice %558 {offsets = [0, 32], sizes = [16, 32], strides = [1, 1]} : vector<16x96xf32> to vector<16x32xf32>
    %569 = arith.addf %567, %568 : vector<16x32xf32>
    %570 = arith.negf %569 : vector<16x32xf32>
    %571 = math.exp %570 : vector<16x32xf32>
    %cst_175 = arith.constant 1.000000e+00 : f32
    %572 = vector.broadcast %cst_175 : f32 to vector<16x32xf32>
    %573 = arith.addf %572, %571 : vector<16x32xf32>
    %574 = arith.divf %572, %573 : vector<16x32xf32>
    %575 = vector.extract_strided_slice %555 {offsets = [0, 64], sizes = [16, 32], strides = [1, 1]} : vector<16x96xf32> to vector<16x32xf32>
    %576 = vector.extract_strided_slice %558 {offsets = [0, 64], sizes = [16, 32], strides = [1, 1]} : vector<16x96xf32> to vector<16x32xf32>
    %577 = arith.mulf %566, %576 : vector<16x32xf32>
    %578 = arith.addf %575, %577 : vector<16x32xf32>
    %579 = math.tanh %578 : vector<16x32xf32>
    %cst_176 = arith.constant 1.000000e+00 : f32
    %580 = vector.broadcast %cst_176 : f32 to vector<16x32xf32>
    %581 = arith.subf %580, %574 : vector<16x32xf32>
    %582 = arith.mulf %581, %579 : vector<16x32xf32>
    %583 = arith.mulf %574, %542 : vector<16x32xf32>
    %584 = arith.addf %582, %583 : vector<16x32xf32>
    %585 = vector.extract_strided_slice %584 {offsets = [0, 0], sizes = [16, 16], strides = [1, 1]} : vector<16x32xf32> to vector<16x16xf32>
    %586 = vector.extract_strided_slice %584 {offsets = [0, 16], sizes = [16, 16], strides = [1, 1]} : vector<16x32xf32> to vector<16x16xf32>
    %587 = arith.addf %585, %586 : vector<16x16xf32>
    %cst_177 = arith.constant 5.000000e-01 : f32
    %588 = vector.broadcast %cst_177 : f32 to vector<16x16xf32>
    %589 = arith.mulf %587, %588 : vector<16x16xf32>
    %590 = arith.index_cast %553 : i32 to index
    %c0_178 = arith.constant 0 : index
    %591 = vector.load %arg22[%590, %c0_178] : memref<128x16xf32, #tpu.memory_space<vmem>>, vector<16x16xf32>
    %592 = arith.addf %591, %589 : vector<16x16xf32>
    %593 = arith.maximumf %551, %592 : vector<16x16xf32>
    %c4_i32_179 = arith.constant 4 : i32
    %c16_i32_180 = arith.constant 16 : i32
    %594 = arith.muli %c4_i32_179, %c16_i32_180 : i32
    %595 = tpu.assume_multiple %594, 16 : i32
    %596 = arith.index_cast %595 : i32 to index
    %c0_181 = arith.constant 0 : index
    %597 = vector.load %arg21[%596, %c0_181] : memref<128x96xf32, #tpu.memory_space<vmem>>, vector<16x96xf32>
    %cst_182 = arith.constant dense<0.000000e+00> : vector<16x96xf32>
    %598 = tpu.matmul %584, %422, %cst_182 {dimension_numbers = #tpu.dot_dimension_numbers<[1], [0], [0], [1], [0, 0, 1, 1], [], []>} : vector<16x32xf32>, vector<32x96xf32>, vector<16x96xf32> -> vector<16x96xf32>
    %599 = vector.broadcast %423 : vector<1x96xf32> to vector<16x96xf32>
    %600 = arith.addf %598, %599 : vector<16x96xf32>
    %601 = vector.extract_strided_slice %597 {offsets = [0, 0], sizes = [16, 32], strides = [1, 1]} : vector<16x96xf32> to vector<16x32xf32>
    %602 = vector.extract_strided_slice %600 {offsets = [0, 0], sizes = [16, 32], strides = [1, 1]} : vector<16x96xf32> to vector<16x32xf32>
    %603 = arith.addf %601, %602 : vector<16x32xf32>
    %604 = arith.negf %603 : vector<16x32xf32>
    %605 = math.exp %604 : vector<16x32xf32>
    %cst_183 = arith.constant 1.000000e+00 : f32
    %606 = vector.broadcast %cst_183 : f32 to vector<16x32xf32>
    %607 = arith.addf %606, %605 : vector<16x32xf32>
    %608 = arith.divf %606, %607 : vector<16x32xf32>
    %609 = vector.extract_strided_slice %597 {offsets = [0, 32], sizes = [16, 32], strides = [1, 1]} : vector<16x96xf32> to vector<16x32xf32>
    %610 = vector.extract_strided_slice %600 {offsets = [0, 32], sizes = [16, 32], strides = [1, 1]} : vector<16x96xf32> to vector<16x32xf32>
    %611 = arith.addf %609, %610 : vector<16x32xf32>
    %612 = arith.negf %611 : vector<16x32xf32>
    %613 = math.exp %612 : vector<16x32xf32>
    %cst_184 = arith.constant 1.000000e+00 : f32
    %614 = vector.broadcast %cst_184 : f32 to vector<16x32xf32>
    %615 = arith.addf %614, %613 : vector<16x32xf32>
    %616 = arith.divf %614, %615 : vector<16x32xf32>
    %617 = vector.extract_strided_slice %597 {offsets = [0, 64], sizes = [16, 32], strides = [1, 1]} : vector<16x96xf32> to vector<16x32xf32>
    %618 = vector.extract_strided_slice %600 {offsets = [0, 64], sizes = [16, 32], strides = [1, 1]} : vector<16x96xf32> to vector<16x32xf32>
    %619 = arith.mulf %608, %618 : vector<16x32xf32>
    %620 = arith.addf %617, %619 : vector<16x32xf32>
    %621 = math.tanh %620 : vector<16x32xf32>
    %cst_185 = arith.constant 1.000000e+00 : f32
    %622 = vector.broadcast %cst_185 : f32 to vector<16x32xf32>
    %623 = arith.subf %622, %616 : vector<16x32xf32>
    %624 = arith.mulf %623, %621 : vector<16x32xf32>
    %625 = arith.mulf %616, %584 : vector<16x32xf32>
    %626 = arith.addf %624, %625 : vector<16x32xf32>
    %627 = vector.extract_strided_slice %626 {offsets = [0, 0], sizes = [16, 16], strides = [1, 1]} : vector<16x32xf32> to vector<16x16xf32>
    %628 = vector.extract_strided_slice %626 {offsets = [0, 16], sizes = [16, 16], strides = [1, 1]} : vector<16x32xf32> to vector<16x16xf32>
    %629 = arith.addf %627, %628 : vector<16x16xf32>
    %cst_186 = arith.constant 5.000000e-01 : f32
    %630 = vector.broadcast %cst_186 : f32 to vector<16x16xf32>
    %631 = arith.mulf %629, %630 : vector<16x16xf32>
    %632 = arith.index_cast %595 : i32 to index
    %c0_187 = arith.constant 0 : index
    %633 = vector.load %arg22[%632, %c0_187] : memref<128x16xf32, #tpu.memory_space<vmem>>, vector<16x16xf32>
    %634 = arith.addf %633, %631 : vector<16x16xf32>
    %635 = arith.maximumf %593, %634 : vector<16x16xf32>
    %c5_i32_188 = arith.constant 5 : i32
    %c16_i32_189 = arith.constant 16 : i32
    %636 = arith.muli %c5_i32_188, %c16_i32_189 : i32
    %637 = tpu.assume_multiple %636, 16 : i32
    %638 = arith.index_cast %637 : i32 to index
    %c0_190 = arith.constant 0 : index
    %639 = vector.load %arg21[%638, %c0_190] : memref<128x96xf32, #tpu.memory_space<vmem>>, vector<16x96xf32>
    %cst_191 = arith.constant dense<0.000000e+00> : vector<16x96xf32>
    %640 = tpu.matmul %626, %422, %cst_191 {dimension_numbers = #tpu.dot_dimension_numbers<[1], [0], [0], [1], [0, 0, 1, 1], [], []>} : vector<16x32xf32>, vector<32x96xf32>, vector<16x96xf32> -> vector<16x96xf32>
    %641 = vector.broadcast %423 : vector<1x96xf32> to vector<16x96xf32>
    %642 = arith.addf %640, %641 : vector<16x96xf32>
    %643 = vector.extract_strided_slice %639 {offsets = [0, 0], sizes = [16, 32], strides = [1, 1]} : vector<16x96xf32> to vector<16x32xf32>
    %644 = vector.extract_strided_slice %642 {offsets = [0, 0], sizes = [16, 32], strides = [1, 1]} : vector<16x96xf32> to vector<16x32xf32>
    %645 = arith.addf %643, %644 : vector<16x32xf32>
    %646 = arith.negf %645 : vector<16x32xf32>
    %647 = math.exp %646 : vector<16x32xf32>
    %cst_192 = arith.constant 1.000000e+00 : f32
    %648 = vector.broadcast %cst_192 : f32 to vector<16x32xf32>
    %649 = arith.addf %648, %647 : vector<16x32xf32>
    %650 = arith.divf %648, %649 : vector<16x32xf32>
    %651 = vector.extract_strided_slice %639 {offsets = [0, 32], sizes = [16, 32], strides = [1, 1]} : vector<16x96xf32> to vector<16x32xf32>
    %652 = vector.extract_strided_slice %642 {offsets = [0, 32], sizes = [16, 32], strides = [1, 1]} : vector<16x96xf32> to vector<16x32xf32>
    %653 = arith.addf %651, %652 : vector<16x32xf32>
    %654 = arith.negf %653 : vector<16x32xf32>
    %655 = math.exp %654 : vector<16x32xf32>
    %cst_193 = arith.constant 1.000000e+00 : f32
    %656 = vector.broadcast %cst_193 : f32 to vector<16x32xf32>
    %657 = arith.addf %656, %655 : vector<16x32xf32>
    %658 = arith.divf %656, %657 : vector<16x32xf32>
    %659 = vector.extract_strided_slice %639 {offsets = [0, 64], sizes = [16, 32], strides = [1, 1]} : vector<16x96xf32> to vector<16x32xf32>
    %660 = vector.extract_strided_slice %642 {offsets = [0, 64], sizes = [16, 32], strides = [1, 1]} : vector<16x96xf32> to vector<16x32xf32>
    %661 = arith.mulf %650, %660 : vector<16x32xf32>
    %662 = arith.addf %659, %661 : vector<16x32xf32>
    %663 = math.tanh %662 : vector<16x32xf32>
    %cst_194 = arith.constant 1.000000e+00 : f32
    %664 = vector.broadcast %cst_194 : f32 to vector<16x32xf32>
    %665 = arith.subf %664, %658 : vector<16x32xf32>
    %666 = arith.mulf %665, %663 : vector<16x32xf32>
    %667 = arith.mulf %658, %626 : vector<16x32xf32>
    %668 = arith.addf %666, %667 : vector<16x32xf32>
    %669 = vector.extract_strided_slice %668 {offsets = [0, 0], sizes = [16, 16], strides = [1, 1]} : vector<16x32xf32> to vector<16x16xf32>
    %670 = vector.extract_strided_slice %668 {offsets = [0, 16], sizes = [16, 16], strides = [1, 1]} : vector<16x32xf32> to vector<16x16xf32>
    %671 = arith.addf %669, %670 : vector<16x16xf32>
    %cst_195 = arith.constant 5.000000e-01 : f32
    %672 = vector.broadcast %cst_195 : f32 to vector<16x16xf32>
    %673 = arith.mulf %671, %672 : vector<16x16xf32>
    %674 = arith.index_cast %637 : i32 to index
    %c0_196 = arith.constant 0 : index
    %675 = vector.load %arg22[%674, %c0_196] : memref<128x16xf32, #tpu.memory_space<vmem>>, vector<16x16xf32>
    %676 = arith.addf %675, %673 : vector<16x16xf32>
    %677 = arith.maximumf %635, %676 : vector<16x16xf32>
    %c6_i32_197 = arith.constant 6 : i32
    %c16_i32_198 = arith.constant 16 : i32
    %678 = arith.muli %c6_i32_197, %c16_i32_198 : i32
    %679 = tpu.assume_multiple %678, 16 : i32
    %680 = arith.index_cast %679 : i32 to index
    %c0_199 = arith.constant 0 : index
    %681 = vector.load %arg21[%680, %c0_199] : memref<128x96xf32, #tpu.memory_space<vmem>>, vector<16x96xf32>
    %cst_200 = arith.constant dense<0.000000e+00> : vector<16x96xf32>
    %682 = tpu.matmul %668, %422, %cst_200 {dimension_numbers = #tpu.dot_dimension_numbers<[1], [0], [0], [1], [0, 0, 1, 1], [], []>} : vector<16x32xf32>, vector<32x96xf32>, vector<16x96xf32> -> vector<16x96xf32>
    %683 = vector.broadcast %423 : vector<1x96xf32> to vector<16x96xf32>
    %684 = arith.addf %682, %683 : vector<16x96xf32>
    %685 = vector.extract_strided_slice %681 {offsets = [0, 0], sizes = [16, 32], strides = [1, 1]} : vector<16x96xf32> to vector<16x32xf32>
    %686 = vector.extract_strided_slice %684 {offsets = [0, 0], sizes = [16, 32], strides = [1, 1]} : vector<16x96xf32> to vector<16x32xf32>
    %687 = arith.addf %685, %686 : vector<16x32xf32>
    %688 = arith.negf %687 : vector<16x32xf32>
    %689 = math.exp %688 : vector<16x32xf32>
    %cst_201 = arith.constant 1.000000e+00 : f32
    %690 = vector.broadcast %cst_201 : f32 to vector<16x32xf32>
    %691 = arith.addf %690, %689 : vector<16x32xf32>
    %692 = arith.divf %690, %691 : vector<16x32xf32>
    %693 = vector.extract_strided_slice %681 {offsets = [0, 32], sizes = [16, 32], strides = [1, 1]} : vector<16x96xf32> to vector<16x32xf32>
    %694 = vector.extract_strided_slice %684 {offsets = [0, 32], sizes = [16, 32], strides = [1, 1]} : vector<16x96xf32> to vector<16x32xf32>
    %695 = arith.addf %693, %694 : vector<16x32xf32>
    %696 = arith.negf %695 : vector<16x32xf32>
    %697 = math.exp %696 : vector<16x32xf32>
    %cst_202 = arith.constant 1.000000e+00 : f32
    %698 = vector.broadcast %cst_202 : f32 to vector<16x32xf32>
    %699 = arith.addf %698, %697 : vector<16x32xf32>
    %700 = arith.divf %698, %699 : vector<16x32xf32>
    %701 = vector.extract_strided_slice %681 {offsets = [0, 64], sizes = [16, 32], strides = [1, 1]} : vector<16x96xf32> to vector<16x32xf32>
    %702 = vector.extract_strided_slice %684 {offsets = [0, 64], sizes = [16, 32], strides = [1, 1]} : vector<16x96xf32> to vector<16x32xf32>
    %703 = arith.mulf %692, %702 : vector<16x32xf32>
    %704 = arith.addf %701, %703 : vector<16x32xf32>
    %705 = math.tanh %704 : vector<16x32xf32>
    %cst_203 = arith.constant 1.000000e+00 : f32
    %706 = vector.broadcast %cst_203 : f32 to vector<16x32xf32>
    %707 = arith.subf %706, %700 : vector<16x32xf32>
    %708 = arith.mulf %707, %705 : vector<16x32xf32>
    %709 = arith.mulf %700, %668 : vector<16x32xf32>
    %710 = arith.addf %708, %709 : vector<16x32xf32>
    %711 = vector.extract_strided_slice %710 {offsets = [0, 0], sizes = [16, 16], strides = [1, 1]} : vector<16x32xf32> to vector<16x16xf32>
    %712 = vector.extract_strided_slice %710 {offsets = [0, 16], sizes = [16, 16], strides = [1, 1]} : vector<16x32xf32> to vector<16x16xf32>
    %713 = arith.addf %711, %712 : vector<16x16xf32>
    %cst_204 = arith.constant 5.000000e-01 : f32
    %714 = vector.broadcast %cst_204 : f32 to vector<16x16xf32>
    %715 = arith.mulf %713, %714 : vector<16x16xf32>
    %716 = arith.index_cast %679 : i32 to index
    %c0_205 = arith.constant 0 : index
    %717 = vector.load %arg22[%716, %c0_205] : memref<128x16xf32, #tpu.memory_space<vmem>>, vector<16x16xf32>
    %718 = arith.addf %717, %715 : vector<16x16xf32>
    %719 = arith.maximumf %677, %718 : vector<16x16xf32>
    %c7_i32_206 = arith.constant 7 : i32
    %c16_i32_207 = arith.constant 16 : i32
    %720 = arith.muli %c7_i32_206, %c16_i32_207 : i32
    %721 = tpu.assume_multiple %720, 16 : i32
    %722 = arith.index_cast %721 : i32 to index
    %c0_208 = arith.constant 0 : index
    %723 = vector.load %arg21[%722, %c0_208] : memref<128x96xf32, #tpu.memory_space<vmem>>, vector<16x96xf32>
    %cst_209 = arith.constant dense<0.000000e+00> : vector<16x96xf32>
    %724 = tpu.matmul %710, %422, %cst_209 {dimension_numbers = #tpu.dot_dimension_numbers<[1], [0], [0], [1], [0, 0, 1, 1], [], []>} : vector<16x32xf32>, vector<32x96xf32>, vector<16x96xf32> -> vector<16x96xf32>
    %725 = vector.broadcast %423 : vector<1x96xf32> to vector<16x96xf32>
    %726 = arith.addf %724, %725 : vector<16x96xf32>
    %727 = vector.extract_strided_slice %723 {offsets = [0, 0], sizes = [16, 32], strides = [1, 1]} : vector<16x96xf32> to vector<16x32xf32>
    %728 = vector.extract_strided_slice %726 {offsets = [0, 0], sizes = [16, 32], strides = [1, 1]} : vector<16x96xf32> to vector<16x32xf32>
    %729 = arith.addf %727, %728 : vector<16x32xf32>
    %730 = arith.negf %729 : vector<16x32xf32>
    %731 = math.exp %730 : vector<16x32xf32>
    %cst_210 = arith.constant 1.000000e+00 : f32
    %732 = vector.broadcast %cst_210 : f32 to vector<16x32xf32>
    %733 = arith.addf %732, %731 : vector<16x32xf32>
    %734 = arith.divf %732, %733 : vector<16x32xf32>
    %735 = vector.extract_strided_slice %723 {offsets = [0, 32], sizes = [16, 32], strides = [1, 1]} : vector<16x96xf32> to vector<16x32xf32>
    %736 = vector.extract_strided_slice %726 {offsets = [0, 32], sizes = [16, 32], strides = [1, 1]} : vector<16x96xf32> to vector<16x32xf32>
    %737 = arith.addf %735, %736 : vector<16x32xf32>
    %738 = arith.negf %737 : vector<16x32xf32>
    %739 = math.exp %738 : vector<16x32xf32>
    %cst_211 = arith.constant 1.000000e+00 : f32
    %740 = vector.broadcast %cst_211 : f32 to vector<16x32xf32>
    %741 = arith.addf %740, %739 : vector<16x32xf32>
    %742 = arith.divf %740, %741 : vector<16x32xf32>
    %743 = vector.extract_strided_slice %723 {offsets = [0, 64], sizes = [16, 32], strides = [1, 1]} : vector<16x96xf32> to vector<16x32xf32>
    %744 = vector.extract_strided_slice %726 {offsets = [0, 64], sizes = [16, 32], strides = [1, 1]} : vector<16x96xf32> to vector<16x32xf32>
    %745 = arith.mulf %734, %744 : vector<16x32xf32>
    %746 = arith.addf %743, %745 : vector<16x32xf32>
    %747 = math.tanh %746 : vector<16x32xf32>
    %cst_212 = arith.constant 1.000000e+00 : f32
    %748 = vector.broadcast %cst_212 : f32 to vector<16x32xf32>
    %749 = arith.subf %748, %742 : vector<16x32xf32>
    %750 = arith.mulf %749, %747 : vector<16x32xf32>
    %751 = arith.mulf %742, %710 : vector<16x32xf32>
    %752 = arith.addf %750, %751 : vector<16x32xf32>
    %753 = vector.extract_strided_slice %752 {offsets = [0, 0], sizes = [16, 16], strides = [1, 1]} : vector<16x32xf32> to vector<16x16xf32>
    %754 = vector.extract_strided_slice %752 {offsets = [0, 16], sizes = [16, 16], strides = [1, 1]} : vector<16x32xf32> to vector<16x16xf32>
    %755 = arith.addf %753, %754 : vector<16x16xf32>
    %cst_213 = arith.constant 5.000000e-01 : f32
    %756 = vector.broadcast %cst_213 : f32 to vector<16x16xf32>
    %757 = arith.mulf %755, %756 : vector<16x16xf32>
    %758 = arith.index_cast %721 : i32 to index
    %c0_214 = arith.constant 0 : index
    %759 = vector.load %arg22[%758, %c0_214] : memref<128x16xf32, #tpu.memory_space<vmem>>, vector<16x16xf32>
    %760 = arith.addf %759, %757 : vector<16x16xf32>
    %761 = arith.maximumf %719, %760 : vector<16x16xf32>
    %c8_i32_215 = arith.constant 8 : i32
    %c0_216 = arith.constant 0 : index
    %c0_217 = arith.constant 0 : index
    %762 = vector.load %arg18[%c0_216, %c0_217] : memref<16x128xf32, #tpu.memory_space<vmem>>, vector<16x128xf32>
    %cst_218 = arith.constant dense<0.000000e+00> : vector<16x128xf32>
    %763 = tpu.matmul %761, %762, %cst_218 {dimension_numbers = #tpu.dot_dimension_numbers<[1], [0], [0], [1], [0, 0, 1, 1], [], []>} : vector<16x16xf32>, vector<16x128xf32>, vector<16x128xf32> -> vector<16x128xf32>
    %c0_219 = arith.constant 0 : index
    %c0_220 = arith.constant 0 : index
    %764 = vector.load %arg19[%c0_219, %c0_220] : memref<1x128xf32, #tpu.memory_space<vmem>>, vector<1x128xf32>
    %765 = vector.broadcast %764 : vector<1x128xf32> to vector<16x128xf32>
    %766 = arith.addf %763, %765 : vector<16x128xf32>
    %c0_221 = arith.constant 0 : index
    %c0_222 = arith.constant 0 : index
    %767 = vector.load %arg20[%c0_221, %c0_222] : memref<16x128xf32, #tpu.memory_space<vmem>>, vector<16x128xf32>
    tpu.vector_store %arg20[%c0_221, %c0_222], %766 {strides = array<i32>} : memref<16x128xf32, #tpu.memory_space<vmem>>, vector<16x128xf32>,
    return
  }
}

</mosaic_0001>

<llo_original>
// kernel: _forward_impl.1
$region0: #{_forward_impl.1}
  #allocation0 [shape = 'u32[]', space=smem, size = 0x4, offset = 0x4, fixed_abs, tag = 'smem constant byte address 0x4 - core index']
  #allocation1 [shape = 'u32[72,128]{1,0:T(1,128)}', space=vmem, size = 0x9000, scoped, tag = 'internal scratch']
  #allocation2 [shape = 'f32[128,96]{1,0:T(8,128)}', space=vmem, size = 0x10000, scoped, tag = 'scratch operand']
  #allocation3 [shape = 'f32[128,16]{1,0:T(8,128)}', space=vmem, size = 0x10000, scoped, tag = 'scratch operand']
  %s0 = inlined_call_operand.vmem [shape: f32[128,8], index: 0, kind: input, shape index: {}]
  %s1 = inlined_call_operand.vmem [shape: f32[128,128], index: 1, kind: input, shape index: {}]
  %s2 = inlined_call_operand.vmem [shape: f32[3,8,16], index: 2, kind: input, shape index: {}]
  %s3 = inlined_call_operand.vmem [shape: f32[1,16], index: 3, kind: input, shape index: {}]
  %s4 = inlined_call_operand.vmem [shape: f32[16,96], index: 4, kind: input, shape index: {}]
  %s5 = inlined_call_operand.vmem [shape: f32[1,96], index: 5, kind: input, shape index: {}]
  %s6 = inlined_call_operand.vmem [shape: f32[32,96], index: 6, kind: input, shape index: {}]
  %s7 = inlined_call_operand.vmem [shape: f32[1,96], index: 7, kind: input, shape index: {}]
  %s8 = inlined_call_operand.vmem [shape: f32[16,16], index: 8, kind: input, shape index: {}]
  %s9 = inlined_call_operand.vmem [shape: f32[1,16], index: 9, kind: input, shape index: {}]
  %s10 = inlined_call_operand.vmem [shape: f32[1,16], index: 10, kind: input, shape index: {}]
  %s11 = inlined_call_operand.vmem [shape: f32[8,16], index: 11, kind: input, shape index: {}]
  %s12 = inlined_call_operand.vmem [shape: f32[3,16,16], index: 12, kind: input, shape index: {}]
  %s13 = inlined_call_operand.vmem [shape: f32[1,16], index: 13, kind: input, shape index: {}]
  %s14 = inlined_call_operand.vmem [shape: f32[16,96], index: 14, kind: input, shape index: {}]
  %s15 = inlined_call_operand.vmem [shape: f32[1,96], index: 15, kind: input, shape index: {}]
  %s16 = inlined_call_operand.vmem [shape: f32[32,96], index: 16, kind: input, shape index: {}]
  %s17 = inlined_call_operand.vmem [shape: f32[1,96], index: 17, kind: input, shape index: {}]
  %s18 = inlined_call_operand.vmem [shape: f32[16,128], index: 18, kind: input, shape index: {}]
  %s19 = inlined_call_operand.vmem [shape: f32[1,128], index: 19, kind: input, shape index: {}]
  %s20 = inlined_call_operand.vmem [shape: f32[16,128], index: 20, kind: output, shape index: {}]
  %s21 = sld [smem:[#allocation0]]
  $region90: #{_forward_impl.1} parent=0
    _
  %s23 = ssub.s32 1, %s21
  %s24 = scalar_select 0, %s23, %s21
  // Predicated region
  $region2: #{_forward_impl.1} parent=0 // pred_check
    _
  $region3: #{_forward_impl.1} parent=0 // pred_check_branch
    %26 = sbr.rel (0) target = $region5
  $region4: #{_forward_impl.1} parent=0 // pred_region
    _
  $region5: #{_forward_impl.1} parent=0 // pred_fallthru
    _
  // Predicated region
  $region6: #{_forward_impl.1} parent=0 // pred_check
    _
  $region7: #{_forward_impl.1} parent=0 // pred_check_branch
    %28 = sbr.rel (0) target = $region9
  $region8: #{_forward_impl.1} parent=0 // pred_region
    _
  $region9: #{_forward_impl.1} parent=0 // pred_fallthru
    _
  // Predicated region
  $region10: #{_forward_impl.1} parent=0 // pred_check
    _
  $region11: #{_forward_impl.1} parent=0 // pred_check_branch
    %30 = sbr.rel (0) target = $region13
  $region12: #{_forward_impl.1} parent=0 // pred_region
    _
  $region13: #{_forward_impl.1} parent=0 // pred_fallthru
    _
  // Predicated region
  $region14: #{_forward_impl.1} parent=0 // pred_check
    _
  $region15: #{_forward_impl.1} parent=0 // pred_check_branch
    %32 = sbr.rel (0) target = $region17
  $region16: #{_forward_impl.1} parent=0 // pred_region
    _
  $region17: #{_forward_impl.1} parent=0 // pred_fallthru
    _
  // Predicated region
  $region18: #{_forward_impl.1} parent=0 // pred_check
    _
  $region19: #{_forward_impl.1} parent=0 // pred_check_branch
    %34 = sbr.rel (0) target = $region21
  $region20: #{_forward_impl.1} parent=0 // pred_region
    _
  $region21: #{_forward_impl.1} parent=0 // pred_fallthru
    _
  // Predicated region
  $region22: #{_forward_impl.1} parent=0 // pred_check
    _
  $region23: #{_forward_impl.1} parent=0 // pred_check_branch
    %36 = sbr.rel (0) target = $region25
  $region24: #{_forward_impl.1} parent=0 // pred_region
    _
  $region25: #{_forward_impl.1} parent=0 // pred_fallthru
    _
  // Predicated region
  $region26: #{_forward_impl.1} parent=0 // pred_check
    _
  $region27: #{_forward_impl.1} parent=0 // pred_check_branch
    %38 = sbr.rel (0) target = $region29
  $region28: #{_forward_impl.1} parent=0 // pred_region
    _
  $region29: #{_forward_impl.1} parent=0 // pred_fallthru
    _
  // Predicated region
  $region30: #{_forward_impl.1} parent=0 // pred_check
    _
  $region31: #{_forward_impl.1} parent=0 // pred_check_branch
    %40 = sbr.rel (0) target = $region33
  $region32: #{_forward_impl.1} parent=0 // pred_region
    _
  $region33: #{_forward_impl.1} parent=0 // pred_fallthru
    _
  // Predicated region
  $region34: #{_forward_impl.1} parent=0 // pred_check
    _
  $region35: #{_forward_impl.1} parent=0 // pred_check_branch
    %42 = sbr.rel (0) target = $region37
  $region36: #{_forward_impl.1} parent=0 // pred_region
    _
  $region37: #{_forward_impl.1} parent=0 // pred_fallthru
    _
  // Predicated region
  $region38: #{_forward_impl.1} parent=0 // pred_check
    _
  $region39: #{_forward_impl.1} parent=0 // pred_check_branch
    %44 = sbr.rel (0) target = $region41
  $region40: #{_forward_impl.1} parent=0 // pred_region
    _
  $region41: #{_forward_impl.1} parent=0 // pred_fallthru
    _
  // Predicated region
  $region42: #{_forward_impl.1} parent=0 // pred_check
    _
  $region43: #{_forward_impl.1} parent=0 // pred_check_branch
    %46 = sbr.rel (0) target = $region45
  $region44: #{_forward_impl.1} parent=0 // pred_region
    _
  $region45: #{_forward_impl.1} parent=0 // pred_fallthru
    _
  // Predicated region
  $region46: #{_forward_impl.1} parent=0 // pred_check
    _
  $region47: #{_forward_impl.1} parent=0 // pred_check_branch
    %48 = sbr.rel (0) target = $region49
  $region48: #{_forward_impl.1} parent=0 // pred_region
    _
  $region49: #{_forward_impl.1} parent=0 // pred_fallthru
    _
  // Predicated region
  $region50: #{_forward_impl.1} parent=0 // pred_check
    _
  $region51: #{_forward_impl.1} parent=0 // pred_check_branch
    %50 = sbr.rel (0) target = $region53
  $region52: #{_forward_impl.1} parent=0 // pred_region
    _
  $region53: #{_forward_impl.1} parent=0 // pred_fallthru
    _
  // Predicated region
  $region54: #{_forward_impl.1} parent=0 // pred_check
    _
  $region55: #{_forward_impl.1} parent=0 // pred_check_branch
    %52 = sbr.rel (0) target = $region57
  $region56: #{_forward_impl.1} parent=0 // pred_region
    _
  $region57: #{_forward_impl.1} parent=0 // pred_fallthru
    _
  // Predicated region
  $region58: #{_forward_impl.1} parent=0 // pred_check
    _
  $region59: #{_forward_impl.1} parent=0 // pred_check_branch
    %54 = sbr.rel (0) target = $region61
  $region60: #{_forward_impl.1} parent=0 // pred_region
    _
  $region61: #{_forward_impl.1} parent=0 // pred_fallthru
    _
  // Predicated region
  $region62: #{_forward_impl.1} parent=0 // pred_check
    _
  $region63: #{_forward_impl.1} parent=0 // pred_check_branch
    %56 = sbr.rel (0) target = $region65
  $region64: #{_forward_impl.1} parent=0 // pred_region
    _
  $region65: #{_forward_impl.1} parent=0 // pred_fallthru
    _
  // Predicated region
  $region66: #{_forward_impl.1} parent=0 // pred_check
    _
  $region67: #{_forward_impl.1} parent=0 // pred_check_branch
    %58 = sbr.rel (0) target = $region69
  $region68: #{_forward_impl.1} parent=0 // pred_region
    _
  $region69: #{_forward_impl.1} parent=0 // pred_fallthru
    _
  // Predicated region
  $region70: #{_forward_impl.1} parent=0 // pred_check
    _
  $region71: #{_forward_impl.1} parent=0 // pred_check_branch
    %60 = sbr.rel (0) target = $region73
  $region72: #{_forward_impl.1} parent=0 // pred_region
    _
  $region73: #{_forward_impl.1} parent=0 // pred_fallthru
    _
  // Predicated region
  $region74: #{_forward_impl.1} parent=0 // pred_check
    _
  $region75: #{_forward_impl.1} parent=0 // pred_check_branch
    %62 = sbr.rel (0) target = $region77
  $region76: #{_forward_impl.1} parent=0 // pred_region
    _
  $region77: #{_forward_impl.1} parent=0 // pred_fallthru
    _
  // Predicated region
  $region78: #{_forward_impl.1} parent=0 // pred_check
    _
  $region79: #{_forward_impl.1} parent=0 // pred_check_branch
    %64 = sbr.rel (0) target = $region81
  $region80: #{_forward_impl.1} parent=0 // pred_region
    _
  $region81: #{_forward_impl.1} parent=0 // pred_fallthru
    _
  %v65 = vld [vmem:[%s0] sm:$0xff]
  %v66 = vld [vmem:[%s0 + $0x8] sm:$0xff]
  %v67 = vld [vmem:[%s0 + $0x10] sm:$0xff]
  %v68 = vld [vmem:[%s0 + $0x18] sm:$0xff]
  %v69 = vld [vmem:[%s0 + $0x20] sm:$0xff]
  %v70 = vld [vmem:[%s0 + $0x28] sm:$0xff]
  %v71 = vld [vmem:[%s0 + $0x30] sm:$0xff]
  %v72 = vld [vmem:[%s0 + $0x38] sm:$0xff]
  %v73 = vld [vmem:[%s0 + $0x40] sm:$0xff]
  %v74 = vld [vmem:[%s0 + $0x48] sm:$0xff]
  %v75 = vld [vmem:[%s0 + $0x50] sm:$0xff]
  %v76 = vld [vmem:[%s0 + $0x58] sm:$0xff]
  %v77 = vld [vmem:[%s0 + $0x60] sm:$0xff]
  %v78 = vld [vmem:[%s0 + $0x68] sm:$0xff]
  %v79 = vld [vmem:[%s0 + $0x70] sm:$0xff]
  %v80 = vld [vmem:[%s0 + $0x78] sm:$0xff]
  %v81 = vld [vmem:[%s2] sm:$0xff]
  %s82 = scalar_lea.vmem %s2, 8
  %v83 = vld [vmem:[%s82] sm:$0xff]
  %vm84 = vcmask 64512
  %v86 = vsel %vm84, %v65, 0
  %v89 = vsel %vm84, %v66, 0
  %v92 = vsel %vm84, %v67, 0
  %v95 = vsel %vm84, %v68, 0
  %v98 = vsel %vm84, %v69, 0
  %v101 = vsel %vm84, %v70, 0
  %v104 = vsel %vm84, %v71, 0
  %v107 = vsel %vm84, %v72, 0
  %v110 = vsel %vm84, %v73, 0
  %v113 = vsel %vm84, %v74, 0
  %v116 = vsel %vm84, %v75, 0
  %v119 = vsel %vm84, %v76, 0
  %v122 = vsel %vm84, %v77, 0
  %v125 = vsel %vm84, %v78, 0
  %v128 = vsel %vm84, %v79, 0
  %v131 = vsel %vm84, %v80, 0
  %133 = vmatpush.msra.mxu0 0.0
  %134 = vmatpush.msra.mxu0 0.0
  %135 = vmatpush.msra.mxu0 0.0
  %136 = vmatpush.msra.mxu0 0.0
  %137 = vmatpush.msra.mxu0 0.0
  %138 = vmatpush.msra.mxu0 0.0
  %139 = vmatpush.msra.mxu0 0.0
  %140 = vmatpush.msra.mxu0 0.0
  %141 = vmatpush.msra.mxu0 0.0
  %142 = vmatpush.msra.mxu0 0.0
  %143 = vmatpush.msra.mxu0 0.0
  %144 = vmatpush.msra.mxu0 0.0
  %145 = vmatpush.msra.mxu0 0.0
  %146 = vmatpush.msra.mxu0 0.0
  %147 = vmatpush.msra.mxu0 0.0
  %148 = vmatpush.msra.mxu0 %v83
  %149 = vmatmul.f32.gmra.mxu0 %v86
  %v150 = vpop.f32.mrf.mxu0
  %v151 = vadd.f32 0.0, %v150
  %152 = vmatmul.f32.gmra.mxu0 %v89
  %v153 = vpop.f32.mrf.mxu0
  %v154 = vadd.f32 0.0, %v153
  %155 = vmatmul.f32.gmra.mxu0 %v92
  %v156 = vpop.f32.mrf.mxu0
  %v157 = vadd.f32 0.0, %v156
  %158 = vmatmul.f32.gmra.mxu0 %v95
  %v159 = vpop.f32.mrf.mxu0
  %v160 = vadd.f32 0.0, %v159
  %161 = vmatmul.f32.gmra.mxu0 %v98
  %v162 = vpop.f32.mrf.mxu0
  %v163 = vadd.f32 0.0, %v162
  %164 = vmatmul.f32.gmra.mxu0 %v101
  %v165 = vpop.f32.mrf.mxu0
  %v166 = vadd.f32 0.0, %v165
  %167 = vmatmul.f32.gmra.mxu0 %v104
  %v168 = vpop.f32.mrf.mxu0
  %v169 = vadd.f32 0.0, %v168
  %170 = vmatmul.f32.gmra.mxu0 %v107
  %v171 = vpop.f32.mrf.mxu0
  %v172 = vadd.f32 0.0, %v171
  %173 = vmatmul.f32.gmra.mxu0 %v110
  %v174 = vpop.f32.mrf.mxu0
  %v175 = vadd.f32 0.0, %v174
  %176 = vmatmul.f32.gmra.mxu0 %v113
  %v177 = vpop.f32.mrf.mxu0
  %v178 = vadd.f32 0.0, %v177
  %179 = vmatmul.f32.gmra.mxu0 %v116
  %v180 = vpop.f32.mrf.mxu0
  %v181 = vadd.f32 0.0, %v180
  %182 = vmatmul.f32.gmra.mxu0 %v119
  %v183 = vpop.f32.mrf.mxu0
  %v184 = vadd.f32 0.0, %v183
  %185 = vmatmul.f32.gmra.mxu0 %v122
  %v186 = vpop.f32.mrf.mxu0
  %v187 = vadd.f32 0.0, %v186
  %188 = vmatmul.f32.gmra.mxu0 %v125
  %v189 = vpop.f32.mrf.mxu0
  %v190 = vadd.f32 0.0, %v189
  %191 = vmatmul.f32.gmra.mxu0 %v128
  %v192 = vpop.f32.mrf.mxu0
  %v193 = vadd.f32 0.0, %v192
  %194 = vmatmul.f32.gmra.mxu0 %v131
  %v195 = vpop.f32.mrf.mxu0
  %v196 = vadd.f32 0.0, %v195
  %197 = vdwg.mxu0
  %v199 = vsel %vm84, 0.0, 0
  %201 = vmatpush.msra.mxu0 0.0
  %202 = vmatpush.msra.mxu0 0.0
  %203 = vmatpush.msra.mxu0 0.0
  %204 = vmatpush.msra.mxu0 0.0
  %205 = vmatpush.msra.mxu0 0.0
  %206 = vmatpush.msra.mxu0 0.0
  %207 = vmatpush.msra.mxu0 0.0
  %208 = vmatpush.msra.mxu0 0.0
  %209 = vmatpush.msra.mxu0 0.0
  %210 = vmatpush.msra.mxu0 0.0
  %211 = vmatpush.msra.mxu0 0.0
  %212 = vmatpush.msra.mxu0 0.0
  %213 = vmatpush.msra.mxu0 0.0
  %214 = vmatpush.msra.mxu0 0.0
  %215 = vmatpush.msra.mxu0 0.0
  %216 = vmatpush.msra.mxu0 %v81
  %217 = vmatmul.f32.gmra.mxu0 %v199
  %v218 = vpop.f32.mrf.mxu0
  %v219 = vadd.f32 %v151, %v218
  %220 = vmatmul.f32.gmra.mxu0 %v199
  %v221 = vpop.f32.mrf.mxu0
  %v222 = vadd.f32 %v154, %v221
  %223 = vmatmul.f32.gmra.mxu0 %v86
  %v224 = vpop.f32.mrf.mxu0
  %v225 = vadd.f32 %v157, %v224
  %226 = vmatmul.f32.gmra.mxu0 %v89
  %v227 = vpop.f32.mrf.mxu0
  %v228 = vadd.f32 %v160, %v227
  %229 = vmatmul.f32.gmra.mxu0 %v92
  %v230 = vpop.f32.mrf.mxu0
  %v231 = vadd.f32 %v163, %v230
  %232 = vmatmul.f32.gmra.mxu0 %v95
  %v233 = vpop.f32.mrf.mxu0
  %v234 = vadd.f32 %v166, %v233
  %235 = vmatmul.f32.gmra.mxu0 %v98
  %v236 = vpop.f32.mrf.mxu0
  %v237 = vadd.f32 %v169, %v236
  %238 = vmatmul.f32.gmra.mxu0 %v101
  %v239 = vpop.f32.mrf.mxu0
  %v240 = vadd.f32 %v172, %v239
  %241 = vmatmul.f32.gmra.mxu0 %v104
  %v242 = vpop.f32.mrf.mxu0
  %v243 = vadd.f32 %v175, %v242
  %244 = vmatmul.f32.gmra.mxu0 %v107
  %v245 = vpop.f32.mrf.mxu0
  %v246 = vadd.f32 %v178, %v245
  %247 = vmatmul.f32.gmra.mxu0 %v110
  %v248 = vpop.f32.mrf.mxu0
  %v249 = vadd.f32 %v181, %v248
  %250 = vmatmul.f32.gmra.mxu0 %v113
  %v251 = vpop.f32.mrf.mxu0
  %v252 = vadd.f32 %v184, %v251
  %253 = vmatmul.f32.gmra.mxu0 %v116
  %v254 = vpop.f32.mrf.mxu0
  %v255 = vadd.f32 %v187, %v254
  %256 = vmatmul.f32.gmra.mxu0 %v119
  %v257 = vpop.f32.mrf.mxu0
  %v258 = vadd.f32 %v190, %v257
  %259 = vmatmul.f32.gmra.mxu0 %v122
  %v260 = vpop.f32.mrf.mxu0
  %v261 = vadd.f32 %v193, %v260
  %262 = vmatmul.f32.gmra.mxu0 %v125
  %v263 = vpop.f32.mrf.mxu0
  %v264 = vadd.f32 %v196, %v263
  %265 = vdwg.mxu0
  %s266 = scalar_lea.vmem %s2, 16
  %v267 = vld [vmem:[%s266] sm:$0xff]
  %268 = vmatpush.msra.mxu0 0.0
  %269 = vmatpush.msra.mxu0 0.0
  %270 = vmatpush.msra.mxu0 0.0
  %271 = vmatpush.msra.mxu0 0.0
  %272 = vmatpush.msra.mxu0 0.0
  %273 = vmatpush.msra.mxu0 0.0
  %274 = vmatpush.msra.mxu0 0.0
  %275 = vmatpush.msra.mxu0 0.0
  %276 = vmatpush.msra.mxu0 0.0
  %277 = vmatpush.msra.mxu0 0.0
  %278 = vmatpush.msra.mxu0 0.0
  %279 = vmatpush.msra.mxu0 0.0
  %280 = vmatpush.msra.mxu0 0.0
  %281 = vmatpush.msra.mxu0 0.0
  %282 = vmatpush.msra.mxu0 0.0
  %283 = vmatpush.msra.mxu0 %v267
  %284 = vmatmul.f32.gmra.mxu0 %v92
  %v285 = vpop.f32.mrf.mxu0
  %v286 = vadd.f32 0.0, %v285
  %287 = vmatmul.f32.gmra.mxu0 %v95
  %v288 = vpop.f32.mrf.mxu0
  %v289 = vadd.f32 0.0, %v288
  %290 = vmatmul.f32.gmra.mxu0 %v98
  %v291 = vpop.f32.mrf.mxu0
  %v292 = vadd.f32 0.0, %v291
  %293 = vmatmul.f32.gmra.mxu0 %v101
  %v294 = vpop.f32.mrf.mxu0
  %v295 = vadd.f32 0.0, %v294
  %296 = vmatmul.f32.gmra.mxu0 %v104
  %v297 = vpop.f32.mrf.mxu0
  %v298 = vadd.f32 0.0, %v297
  %299 = vmatmul.f32.gmra.mxu0 %v107
  %v300 = vpop.f32.mrf.mxu0
  %v301 = vadd.f32 0.0, %v300
  %302 = vmatmul.f32.gmra.mxu0 %v110
  %v303 = vpop.f32.mrf.mxu0
  %v304 = vadd.f32 0.0, %v303
  %305 = vmatmul.f32.gmra.mxu0 %v113
  %v306 = vpop.f32.mrf.mxu0
  %v307 = vadd.f32 0.0, %v306
  %308 = vmatmul.f32.gmra.mxu0 %v116
  %v309 = vpop.f32.mrf.mxu0
  %v310 = vadd.f32 0.0, %v309
  %311 = vmatmul.f32.gmra.mxu0 %v119
  %v312 = vpop.f32.mrf.mxu0
  %v313 = vadd.f32 0.0, %v312
  %314 = vmatmul.f32.gmra.mxu0 %v122
  %v315 = vpop.f32.mrf.mxu0
  %v316 = vadd.f32 0.0, %v315
  %317 = vmatmul.f32.gmra.mxu0 %v125
  %v318 = vpop.f32.mrf.mxu0
  %v319 = vadd.f32 0.0, %v318
  %320 = vmatmul.f32.gmra.mxu0 %v128
  %v321 = vpop.f32.mrf.mxu0
  %v322 = vadd.f32 0.0, %v321
  %323 = vmatmul.f32.gmra.mxu0 %v131
  %v324 = vpop.f32.mrf.mxu0
  %v325 = vadd.f32 0.0, %v324
  %326 = vmatmul.f32.gmra.mxu0 %v199
  %v327 = vpop.f32.mrf.mxu0
  %v328 = vadd.f32 0.0, %v327
  %329 = vmatmul.f32.gmra.mxu0 %v199
  %v330 = vpop.f32.mrf.mxu0
  %v331 = vadd.f32 0.0, %v330
  %332 = vdwg.mxu0
  %v333 = vadd.f32 %v219, %v286
  %v334 = vadd.f32 %v222, %v289
  %v335 = vadd.f32 %v225, %v292
  %v336 = vadd.f32 %v228, %v295
  %v337 = vadd.f32 %v231, %v298
  %v338 = vadd.f32 %v234, %v301
  %v339 = vadd.f32 %v237, %v304
  %v340 = vadd.f32 %v240, %v307
  %v341 = vadd.f32 %v243, %v310
  %v342 = vadd.f32 %v246, %v313
  %v343 = vadd.f32 %v249, %v316
  %v344 = vadd.f32 %v252, %v319
  %v345 = vadd.f32 %v255, %v322
  %v346 = vadd.f32 %v258, %v325
  %v347 = vadd.f32 %v261, %v328
  %v348 = vadd.f32 %v264, %v331
  %v349 = vld [vmem:[%s3] sm:$0x1]
  %v351 = vperm.slane %v349, 0
  %v353 = vadd.f32 %v333, %v351
  %v354 = vadd.f32 %v334, %v351
  %v355 = vadd.f32 %v335, %v351
  %v356 = vadd.f32 %v336, %v351
  %v357 = vadd.f32 %v337, %v351
  %v358 = vadd.f32 %v338, %v351
  %v359 = vadd.f32 %v339, %v351
  %v360 = vadd.f32 %v340, %v351
  %v361 = vadd.f32 %v341, %v351
  %v362 = vadd.f32 %v342, %v351
  %v363 = vadd.f32 %v343, %v351
  %v364 = vadd.f32 %v344, %v351
  %v365 = vadd.f32 %v345, %v351
  %v366 = vadd.f32 %v346, %v351
  %v367 = vadd.f32 %v347, %v351
  %v368 = vadd.f32 %v348, %v351
  %v369 = vmax.f32 %v353, 0.0
  %v370 = vmax.f32 %v354, 0.0
  %v371 = vmax.f32 %v355, 0.0
  %v372 = vmax.f32 %v356, 0.0
  %v373 = vmax.f32 %v357, 0.0
  %v374 = vmax.f32 %v358, 0.0
  %v375 = vmax.f32 %v359, 0.0
  %v376 = vmax.f32 %v360, 0.0
  %v377 = vmax.f32 %v361, 0.0
  %v378 = vmax.f32 %v362, 0.0
  %v379 = vmax.f32 %v363, 0.0
  %v380 = vmax.f32 %v364, 0.0
  %v381 = vmax.f32 %v365, 0.0
  %v382 = vmax.f32 %v366, 0.0
  %v383 = vmax.f32 %v367, 0.0
  %v384 = vmax.f32 %v368, 0.0
  %v385 = vld [vmem:[%s4] sm:$0xff]
  %v386 = vld [vmem:[%s4 + $0x8] sm:$0xff]
  %v387 = vld [vmem:[%s5] sm:$0x1]
  %v389 = vperm.slane %v387, 0
  %vm391 = vcmask 130048
  %v393 = vsel %vm391, %v369, 0
  %v396 = vsel %vm391, %v370, 0
  %v399 = vsel %vm391, %v371, 0
  %v402 = vsel %vm391, %v372, 0
  %v405 = vsel %vm391, %v373, 0
  %v408 = vsel %vm391, %v374, 0
  %v411 = vsel %vm391, %v375, 0
  %v414 = vsel %vm391, %v376, 0
  %v417 = vsel %vm391, %v377, 0
  %v420 = vsel %vm391, %v378, 0
  %v423 = vsel %vm391, %v379, 0
  %v426 = vsel %vm391, %v380, 0
  %v429 = vsel %vm391, %v381, 0
  %v432 = vsel %vm391, %v382, 0
  %v435 = vsel %vm391, %v383, 0
  %v438 = vsel %vm391, %v384, 0
  %440 = vmatpush.msra.mxu0 0.0
  %441 = vmatpush.msra.mxu0 0.0
  %442 = vmatpush.msra.mxu0 0.0
  %443 = vmatpush.msra.mxu0 0.0
  %444 = vmatpush.msra.mxu0 0.0
  %445 = vmatpush.msra.mxu0 0.0
  %446 = vmatpush.msra.mxu0 0.0
  %447 = vmatpush.msra.mxu0 0.0
  %448 = vmatpush.msra.mxu0 0.0
  %449 = vmatpush.msra.mxu0 0.0
  %450 = vmatpush.msra.mxu0 0.0
  %451 = vmatpush.msra.mxu0 0.0
  %452 = vmatpush.msra.mxu0 0.0
  %453 = vmatpush.msra.mxu0 0.0
  %454 = vmatpush.msra.mxu0 %v386
  %455 = vmatpush.msra.mxu0 %v385
  %456 = vmatmul.f32.gmra.mxu0 %v393
  %v457 = vpop.f32.mrf.mxu0
  %v458 = vadd.f32 %v389, %v457
  %459 = vmatmul.f32.gmra.mxu0 %v396
  %v460 = vpop.f32.mrf.mxu0
  %v461 = vadd.f32 %v389, %v460
  %462 = vmatmul.f32.gmra.mxu0 %v399
  %v463 = vpop.f32.mrf.mxu0
  %v464 = vadd.f32 %v389, %v463
  %465 = vmatmul.f32.gmra.mxu0 %v402
  %v466 = vpop.f32.mrf.mxu0
  %v467 = vadd.f32 %v389, %v466
  %468 = vmatmul.f32.gmra.mxu0 %v405
  %v469 = vpop.f32.mrf.mxu0
  %v470 = vadd.f32 %v389, %v469
  %471 = vmatmul.f32.gmra.mxu0 %v408
  %v472 = vpop.f32.mrf.mxu0
  %v473 = vadd.f32 %v389, %v472
  %474 = vmatmul.f32.gmra.mxu0 %v411
  %v475 = vpop.f32.mrf.mxu0
  %v476 = vadd.f32 %v389, %v475
  %477 = vmatmul.f32.gmra.mxu0 %v414
  %v478 = vpop.f32.mrf.mxu0
  %v479 = vadd.f32 %v389, %v478
  %480 = vmatmul.f32.gmra.mxu0 %v417
  %v481 = vpop.f32.mrf.mxu0
  %v482 = vadd.f32 %v389, %v481
  %483 = vmatmul.f32.gmra.mxu0 %v420
  %v484 = vpop.f32.mrf.mxu0
  %v485 = vadd.f32 %v389, %v484
  %486 = vmatmul.f32.gmra.mxu0 %v423
  %v487 = vpop.f32.mrf.mxu0
  %v488 = vadd.f32 %v389, %v487
  %489 = vmatmul.f32.gmra.mxu0 %v426
  %v490 = vpop.f32.mrf.mxu0
  %v491 = vadd.f32 %v389, %v490
  %492 = vmatmul.f32.gmra.mxu0 %v429
  %v493 = vpop.f32.mrf.mxu0
  %v494 = vadd.f32 %v389, %v493
  %495 = vmatmul.f32.gmra.mxu0 %v432
  %v496 = vpop.f32.mrf.mxu0
  %v497 = vadd.f32 %v389, %v496
  %498 = vmatmul.f32.gmra.mxu0 %v435
  %v499 = vpop.f32.mrf.mxu0
  %v500 = vadd.f32 %v389, %v499
  %501 = vmatmul.f32.gmra.mxu0 %v438
  %v502 = vpop.f32.mrf.mxu0
  %v503 = vadd.f32 %v389, %v502
  %504 = vdwg.mxu0
  %vm505 = vcmask 785408
  %506 = vst.msk [vmem:[#allocation2] sm:$0xff] %vm505, %v458
  %507 = vst.msk [vmem:[#allocation2 + $0x8] sm:$0xff] %vm505, %v461
  %508 = vst.msk [vmem:[#allocation2 + $0x10] sm:$0xff] %vm505, %v464
  %509 = vst.msk [vmem:[#allocation2 + $0x18] sm:$0xff] %vm505, %v467
  %510 = vst.msk [vmem:[#allocation2 + $0x20] sm:$0xff] %vm505, %v470
  %511 = vst.msk [vmem:[#allocation2 + $0x28] sm:$0xff] %vm505, %v473
  %512 = vst.msk [vmem:[#allocation2 + $0x30] sm:$0xff] %vm505, %v476
  %513 = vst.msk [vmem:[#allocation2 + $0x38] sm:$0xff] %vm505, %v479
  %514 = vst.msk [vmem:[#allocation2 + $0x40] sm:$0xff] %vm505, %v482
  %515 = vst.msk [vmem:[#allocation2 + $0x48] sm:$0xff] %vm505, %v485
  %516 = vst.msk [vmem:[#allocation2 + $0x50] sm:$0xff] %vm505, %v488
  %517 = vst.msk [vmem:[#allocation2 + $0x58] sm:$0xff] %vm505, %v491
  %518 = vst.msk [vmem:[#allocation2 + $0x60] sm:$0xff] %vm505, %v494
  %519 = vst.msk [vmem:[#allocation2 + $0x68] sm:$0xff] %vm505, %v497
  %520 = vst.msk [vmem:[#allocation2 + $0x70] sm:$0xff] %vm505, %v500
  %521 = vst.msk [vmem:[#allocation2 + $0x78] sm:$0xff] %vm505, %v503
  %v522 = vld [vmem:[%s6] sm:$0xff]
  %v523 = vld [vmem:[%s6 + $0x8] sm:$0xff]
  %v524 = vld [vmem:[%s6 + $0x10] sm:$0xff]
  %v525 = vld [vmem:[%s6 + $0x18] sm:$0xff]
  %v526 = vld [vmem:[%s7] sm:$0x1]
  %v527 = vld [vmem:[#allocation2] sm:$0xff]
  %v528 = vld [vmem:[#allocation2 + $0x8] sm:$0xff]
  %v530 = vperm.slane %v526, 0
  %vm532 = vcmask 261120
  %v533 = vsel %vm532, 0.0, 0
  %535 = vmatpush.msra.mxu0 0.0
  %536 = vmatpush.msra.mxu0 0.0
  %537 = vmatpush.msra.mxu0 0.0
  %538 = vmatpush.msra.mxu0 0.0
  %539 = vmatpush.msra.mxu0 0.0
  %540 = vmatpush.msra.mxu0 0.0
  %541 = vmatpush.msra.mxu0 0.0
  %542 = vmatpush.msra.mxu0 0.0
  %543 = vmatpush.msra.mxu0 0.0
  %544 = vmatpush.msra.mxu0 0.0
  %545 = vmatpush.msra.mxu0 0.0
  %546 = vmatpush.msra.mxu0 0.0
  %547 = vmatpush.msra.mxu0 %v525
  %548 = vmatpush.msra.mxu0 %v524
  %549 = vmatpush.msra.mxu0 %v523
  %550 = vmatpush.msra.mxu0 %v522
  %551 = vmatmul.f32.gmra.mxu0 %v533
  %v552 = vpop.f32.mrf.mxu0
  %v553 = vadd.f32 %v530, %v552
  %554 = vmatmul.f32.gmra.mxu0 %v533
  %v555 = vpop.f32.mrf.mxu0
  %v556 = vadd.f32 %v530, %v555
  %557 = vdwg.mxu0
  %v558 = vadd.f32 %v527, %v553
  %v559 = vadd.f32 %v528, %v556
  %v560 = vxor.u32 %v558, 2147483648
  %v561 = vxor.u32 %v559, 2147483648
  %v562 = vmul.f32 %v560, 1.442695
  %v563 = vpow.pop %v562
  %v564 = vmul.f32 %v561, 1.442695
  %v565 = vpow.pop %v564
  %v566 = vadd.f32 %v563, 1.0
  %v567 = vadd.f32 %v565, 1.0
  %v568 = vrcp.pop %v566
  %v569 = vmul.f32 %v566, %v568
  %v570 = vsub.f32 1.0, %v569
  %v571 = vmul.f32 %v568, %v570
  %v572 = vadd.f32 %v568, %v571
  %vm573 = vweird.f32 %v566
  %vm574 = vweird.f32 %v568
  %vm575 = vmor %vm573, %vm574
  %v576 = vsel %vm575, %v568, %v572
  %v577 = vand.u32 2147483647, %v566
  %vm578 = vcmp.eq.f32.partialorder %v577, 8.507059e+37
  %v579 = vand.u32 %v566, 2147483648
  %v580 = vor.u32 1.1754944e-38, %v579
  %v581 = vsel %vm578, %v580, %v576
  %v582 = vmul.f32 1.0, %v581
  %v583 = vrcp.pop %v567
  %v584 = vmul.f32 %v567, %v583
  %v585 = vsub.f32 1.0, %v584
  %v586 = vmul.f32 %v583, %v585
  %v587 = vadd.f32 %v583, %v586
  %vm588 = vweird.f32 %v567
  %vm589 = vweird.f32 %v583
  %vm590 = vmor %vm588, %vm589
  %v591 = vsel %vm590, %v583, %v587
  %v592 = vand.u32 2147483647, %v567
  %vm593 = vcmp.eq.f32.partialorder %v592, 8.507059e+37
  %v594 = vand.u32 %v567, 2147483648
  %v595 = vor.u32 1.1754944e-38, %v594
  %v596 = vsel %vm593, %v595, %v591
  %v597 = vmul.f32 1.0, %v596
  %600 = vrot.lane.b32.xlu0 %v553, 64
  %v601 = vpop.permute.xlu0 %600
  %602 = vrot.lane.b32.xlu0 %v556, 64
  %v603 = vpop.permute.xlu0 %602
  %v606 = vmul.f32 %v582, %v601
  %v607 = vmul.f32 %v597, %v603
  %610 = vrot.lane.b32.xlu0 %v606, 64
  %v611 = vpop.permute.xlu0 %610
  %612 = vrot.lane.b32.xlu0 %v607, 64
  %v613 = vpop.permute.xlu0 %612
  %v616 = vadd.f32 %v527, %v611
  %v617 = vadd.f32 %v528, %v613
  %v618 = vtanh.pop %v616
  %v619 = vtanh.pop %v617
  %v620 = vsub.f32 1.0, %v582
  %v621 = vsub.f32 1.0, %v597
  %624 = vrot.lane.b32.xlu0 %v618, 96
  %v625 = vpop.permute.xlu0 %624
  %626 = vrot.lane.b32.xlu0 %v619, 96
  %v627 = vpop.permute.xlu0 %626
  %v630 = vmul.f32 %v620, %v625
  %v631 = vmul.f32 %v621, %v627
  %v632 = vmul.f32 %v582, 0.0
  %v633 = vmul.f32 %v597, 0.0
  %v634 = vadd.f32 %v630, %v632
  %v635 = vadd.f32 %v631, %v633
  %638 = vrot.lane.b32.xlu0 %v634, 112
  %v639 = vpop.permute.xlu0 %638
  %640 = vrot.lane.b32.xlu0 %v635, 112
  %v641 = vpop.permute.xlu0 %640
  %v644 = vadd.f32 %v634, %v639
  %v645 = vadd.f32 %v635, %v641
  %v646 = vmul.f32 %v644, 0.5
  %v647 = vmul.f32 %v645, 0.5
  %650 = vrot.lane.b32.xlu0 %v646, 96
  %v651 = vpop.permute.xlu0 %650
  %652 = vrot.lane.b32.xlu0 %v647, 96
  %v653 = vpop.permute.xlu0 %652
  %656 = vst.msk [vmem:[#allocation3] sm:$0xff] %vm391, %v651
  %657 = vst.msk [vmem:[#allocation3 + $0x8] sm:$0xff] %vm391, %v653
  %s658 = scalar_lea.vmem [#allocation2], 16
  %v659 = vld [vmem:[%s658] sm:$0xff]
  %v660 = vld [vmem:[%s658 + $0x8] sm:$0xff]
  %661 = vrot.lane.b32.xlu0 %v634, 96
  %v662 = vpop.permute.xlu0 %661
  %663 = vrot.lane.b32.xlu0 %v635, 96
  %v664 = vpop.permute.xlu0 %663
  %v665 = vsel %vm532, %v662, 0
  %v667 = vsel %vm532, %v664, 0
  %669 = vmatpush.msra.mxu0 0.0
  %670 = vmatpush.msra.mxu0 0.0
  %671 = vmatpush.msra.mxu0 0.0
  %672 = vmatpush.msra.mxu0 0.0
  %673 = vmatpush.msra.mxu0 0.0
  %674 = vmatpush.msra.mxu0 0.0
  %675 = vmatpush.msra.mxu0 0.0
  %676 = vmatpush.msra.mxu0 0.0
  %677 = vmatpush.msra.mxu0 0.0
  %678 = vmatpush.msra.mxu0 0.0
  %679 = vmatpush.msra.mxu0 0.0
  %680 = vmatpush.msra.mxu0 0.0
  %681 = vmatpush.msra.mxu0 %v525
  %682 = vmatpush.msra.mxu0 %v524
  %683 = vmatpush.msra.mxu0 %v523
  %684 = vmatpush.msra.mxu0 %v522
  %685 = vmatmul.f32.gmra.mxu0 %v665
  %v686 = vpop.f32.mrf.mxu0
  %v687 = vadd.f32 %v530, %v686
  %688 = vmatmul.f32.gmra.mxu0 %v667
  %v689 = vpop.f32.mrf.mxu0
  %v690 = vadd.f32 %v530, %v689
  %691 = vdwg.mxu0
  %v692 = vadd.f32 %v659, %v687
  %v693 = vadd.f32 %v660, %v690
  %v694 = vxor.u32 %v692, 2147483648
  %v695 = vxor.u32 %v693, 2147483648
  %v696 = vmul.f32 %v694, 1.442695
  %v697 = vpow.pop %v696
  %v698 = vmul.f32 %v695, 1.442695
  %v699 = vpow.pop %v698
  %v700 = vadd.f32 %v697, 1.0
  %v701 = vadd.f32 %v699, 1.0
  %v702 = vrcp.pop %v700
  %v703 = vmul.f32 %v700, %v702
  %v704 = vsub.f32 1.0, %v703
  %v705 = vmul.f32 %v702, %v704
  %v706 = vadd.f32 %v702, %v705
  %vm707 = vweird.f32 %v700
  %vm708 = vweird.f32 %v702
  %vm709 = vmor %vm707, %vm708
  %v710 = vsel %vm709, %v702, %v706
  %v711 = vand.u32 2147483647, %v700
  %vm712 = vcmp.eq.f32.partialorder %v711, 8.507059e+37
  %v713 = vand.u32 %v700, 2147483648
  %v714 = vor.u32 1.1754944e-38, %v713
  %v715 = vsel %vm712, %v714, %v710
  %v716 = vmul.f32 1.0, %v715
  %v717 = vrcp.pop %v701
  %v718 = vmul.f32 %v701, %v717
  %v719 = vsub.f32 1.0, %v718
  %v720 = vmul.f32 %v717, %v719
  %v721 = vadd.f32 %v717, %v720
  %vm722 = vweird.f32 %v701
  %vm723 = vweird.f32 %v717
  %vm724 = vmor %vm722, %vm723
  %v725 = vsel %vm724, %v717, %v721
  %v726 = vand.u32 2147483647, %v701
  %vm727 = vcmp.eq.f32.partialorder %v726, 8.507059e+37
  %v728 = vand.u32 %v701, 2147483648
  %v729 = vor.u32 1.1754944e-38, %v728
  %v730 = vsel %vm727, %v729, %v725
  %v731 = vmul.f32 1.0, %v730
  %734 = vrot.lane.b32.xlu0 %v687, 64
  %v735 = vpop.permute.xlu0 %734
  %736 = vrot.lane.b32.xlu0 %v690, 64
  %v737 = vpop.permute.xlu0 %736
  %v740 = vmul.f32 %v716, %v735
  %v741 = vmul.f32 %v731, %v737
  %744 = vrot.lane.b32.xlu0 %v740, 64
  %v745 = vpop.permute.xlu0 %744
  %746 = vrot.lane.b32.xlu0 %v741, 64
  %v747 = vpop.permute.xlu0 %746
  %v750 = vadd.f32 %v659, %v745
  %v751 = vadd.f32 %v660, %v747
  %v752 = vtanh.pop %v750
  %v753 = vtanh.pop %v751
  %v754 = vsub.f32 1.0, %v716
  %v755 = vsub.f32 1.0, %v731
  %758 = vrot.lane.b32.xlu0 %v752, 96
  %v759 = vpop.permute.xlu0 %758
  %760 = vrot.lane.b32.xlu0 %v753, 96
  %v761 = vpop.permute.xlu0 %760
  %v764 = vmul.f32 %v754, %v759
  %v765 = vmul.f32 %v755, %v761
  %v766 = vmul.f32 %v716, %v634
  %v767 = vmul.f32 %v731, %v635
  %v768 = vadd.f32 %v764, %v766
  %v769 = vadd.f32 %v765, %v767
  %772 = vrot.lane.b32.xlu0 %v768, 112
  %v773 = vpop.permute.xlu0 %772
  %774 = vrot.lane.b32.xlu0 %v769, 112
  %v775 = vpop.permute.xlu0 %774
  %v778 = vadd.f32 %v768, %v773
  %v779 = vadd.f32 %v769, %v775
  %v780 = vmul.f32 %v778, 0.5
  %v781 = vmul.f32 %v779, 0.5
  %784 = vrot.lane.b32.xlu0 %v780, 96
  %v785 = vpop.permute.xlu0 %784
  %786 = vrot.lane.b32.xlu0 %v781, 96
  %v787 = vpop.permute.xlu0 %786
  %s790 = scalar_lea.vmem [#allocation3], 16
  %791 = vst.msk [vmem:[%s790] sm:$0xff] %vm391, %v785
  %792 = vst.msk [vmem:[%s790 + $0x8] sm:$0xff] %vm391, %v787
  %s793 = scalar_lea.vmem [#allocation2], 32
  %v794 = vld [vmem:[%s793] sm:$0xff]
  %v795 = vld [vmem:[%s793 + $0x8] sm:$0xff]
  %796 = vrot.lane.b32.xlu0 %v768, 96
  %v797 = vpop.permute.xlu0 %796
  %798 = vrot.lane.b32.xlu0 %v769, 96
  %v799 = vpop.permute.xlu0 %798
  %v800 = vsel %vm532, %v797, 0
  %v802 = vsel %vm532, %v799, 0
  %804 = vmatpush.msra.mxu0 0.0
  %805 = vmatpush.msra.mxu0 0.0
  %806 = vmatpush.msra.mxu0 0.0
  %807 = vmatpush.msra.mxu0 0.0
  %808 = vmatpush.msra.mxu0 0.0
  %809 = vmatpush.msra.mxu0 0.0
  %810 = vmatpush.msra.mxu0 0.0
  %811 = vmatpush.msra.mxu0 0.0
  %812 = vmatpush.msra.mxu0 0.0
  %813 = vmatpush.msra.mxu0 0.0
  %814 = vmatpush.msra.mxu0 0.0
  %815 = vmatpush.msra.mxu0 0.0
  %816 = vmatpush.msra.mxu0 %v525
  %817 = vmatpush.msra.mxu0 %v524
  %818 = vmatpush.msra.mxu0 %v523
  %819 = vmatpush.msra.mxu0 %v522
  %820 = vmatmul.f32.gmra.mxu0 %v800
  %v821 = vpop.f32.mrf.mxu0
  %v822 = vadd.f32 %v530, %v821
  %823 = vmatmul.f32.gmra.mxu0 %v802
  %v824 = vpop.f32.mrf.mxu0
  %v825 = vadd.f32 %v530, %v824
  %826 = vdwg.mxu0
  %v827 = vadd.f32 %v794, %v822
  %v828 = vadd.f32 %v795, %v825
  %v829 = vxor.u32 %v827, 2147483648
  %v830 = vxor.u32 %v828, 2147483648
  %v831 = vmul.f32 %v829, 1.442695
  %v832 = vpow.pop %v831
  %v833 = vmul.f32 %v830, 1.442695
  %v834 = vpow.pop %v833
  %v835 = vadd.f32 %v832, 1.0
  %v836 = vadd.f32 %v834, 1.0
  %v837 = vrcp.pop %v835
  %v838 = vmul.f32 %v835, %v837
  %v839 = vsub.f32 1.0, %v838
  %v840 = vmul.f32 %v837, %v839
  %v841 = vadd.f32 %v837, %v840
  %vm842 = vweird.f32 %v835
  %vm843 = vweird.f32 %v837
  %vm844 = vmor %vm842, %vm843
  %v845 = vsel %vm844, %v837, %v841
  %v846 = vand.u32 2147483647, %v835
  %vm847 = vcmp.eq.f32.partialorder %v846, 8.507059e+37
  %v848 = vand.u32 %v835, 2147483648
  %v849 = vor.u32 1.1754944e-38, %v848
  %v850 = vsel %vm847, %v849, %v845
  %v851 = vmul.f32 1.0, %v850
  %v852 = vrcp.pop %v836
  %v853 = vmul.f32 %v836, %v852
  %v854 = vsub.f32 1.0, %v853
  %v855 = vmul.f32 %v852, %v854
  %v856 = vadd.f32 %v852, %v855
  %vm857 = vweird.f32 %v836
  %vm858 = vweird.f32 %v852
  %vm859 = vmor %vm857, %vm858
  %v860 = vsel %vm859, %v852, %v856
  %v861 = vand.u32 2147483647, %v836
  %vm862 = vcmp.eq.f32.partialorder %v861, 8.507059e+37
  %v863 = vand.u32 %v836, 2147483648
  %v864 = vor.u32 1.1754944e-38, %v863
  %v865 = vsel %vm862, %v864, %v860
  %v866 = vmul.f32 1.0, %v865
  %869 = vrot.lane.b32.xlu0 %v822, 64
  %v870 = vpop.permute.xlu0 %869
  %871 = vrot.lane.b32.xlu0 %v825, 64
  %v872 = vpop.permute.xlu0 %871
  %v875 = vmul.f32 %v851, %v870
  %v876 = vmul.f32 %v866, %v872
  %879 = vrot.lane.b32.xlu0 %v875, 64
  %v880 = vpop.permute.xlu0 %879
  %881 = vrot.lane.b32.xlu0 %v876, 64
  %v882 = vpop.permute.xlu0 %881
  %v885 = vadd.f32 %v794, %v880
  %v886 = vadd.f32 %v795, %v882
  %v887 = vtanh.pop %v885
  %v888 = vtanh.pop %v886
  %v889 = vsub.f32 1.0, %v851
  %v890 = vsub.f32 1.0, %v866
  %893 = vrot.lane.b32.xlu0 %v887, 96
  %v894 = vpop.permute.xlu0 %893
  %895 = vrot.lane.b32.xlu0 %v888, 96
  %v896 = vpop.permute.xlu0 %895
  %v899 = vmul.f32 %v889, %v894
  %v900 = vmul.f32 %v890, %v896
  %v901 = vmul.f32 %v851, %v768
  %v902 = vmul.f32 %v866, %v769
  %v903 = vadd.f32 %v899, %v901
  %v904 = vadd.f32 %v900, %v902
  %907 = vrot.lane.b32.xlu0 %v903, 112
  %v908 = vpop.permute.xlu0 %907
  %909 = vrot.lane.b32.xlu0 %v904, 112
  %v910 = vpop.permute.xlu0 %909
  %v913 = vadd.f32 %v903, %v908
  %v914 = vadd.f32 %v904, %v910
  %v915 = vmul.f32 %v913, 0.5
  %v916 = vmul.f32 %v914, 0.5
  %919 = vrot.lane.b32.xlu0 %v915, 96
  %v920 = vpop.permute.xlu0 %919
  %921 = vrot.lane.b32.xlu0 %v916, 96
  %v922 = vpop.permute.xlu0 %921
  %s925 = scalar_lea.vmem [#allocation3], 32
  %926 = vst.msk [vmem:[%s925] sm:$0xff] %vm391, %v920
  %927 = vst.msk [vmem:[%s925 + $0x8] sm:$0xff] %vm391, %v922
  %s928 = scalar_lea.vmem [#allocation2], 48
  %v929 = vld [vmem:[%s928] sm:$0xff]
  %v930 = vld [vmem:[%s928 + $0x8] sm:$0xff]
  %931 = vrot.lane.b32.xlu0 %v903, 96
  %v932 = vpop.permute.xlu0 %931
  %933 = vrot.lane.b32.xlu0 %v904, 96
  %v934 = vpop.permute.xlu0 %933
  %v935 = vsel %vm532, %v932, 0
  %v937 = vsel %vm532, %v934, 0
  %939 = vmatpush.msra.mxu0 0.0
  %940 = vmatpush.msra.mxu0 0.0
  %941 = vmatpush.msra.mxu0 0.0
  %942 = vmatpush.msra.mxu0 0.0
  %943 = vmatpush.msra.mxu0 0.0
  %944 = vmatpush.msra.mxu0 0.0
  %945 = vmatpush.msra.mxu0 0.0
  %946 = vmatpush.msra.mxu0 0.0
  %947 = vmatpush.msra.mxu0 0.0
  %948 = vmatpush.msra.mxu0 0.0
  %949 = vmatpush.msra.mxu0 0.0
  %950 = vmatpush.msra.mxu0 0.0
  %951 = vmatpush.msra.mxu0 %v525
  %952 = vmatpush.msra.mxu0 %v524
  %953 = vmatpush.msra.mxu0 %v523
  %954 = vmatpush.msra.mxu0 %v522
  %955 = vmatmul.f32.gmra.mxu0 %v935
  %v956 = vpop.f32.mrf.mxu0
  %v957 = vadd.f32 %v530, %v956
  %958 = vmatmul.f32.gmra.mxu0 %v937
  %v959 = vpop.f32.mrf.mxu0
  %v960 = vadd.f32 %v530, %v959
  %961 = vdwg.mxu0
  %v962 = vadd.f32 %v929, %v957
  %v963 = vadd.f32 %v930, %v960
  %v964 = vxor.u32 %v962, 2147483648
  %v965 = vxor.u32 %v963, 2147483648
  %v966 = vmul.f32 %v964, 1.442695
  %v967 = vpow.pop %v966
  %v968 = vmul.f32 %v965, 1.442695
  %v969 = vpow.pop %v968
  %v970 = vadd.f32 %v967, 1.0
  %v971 = vadd.f32 %v969, 1.0
  %v972 = vrcp.pop %v970
  %v973 = vmul.f32 %v970, %v972
  %v974 = vsub.f32 1.0, %v973
  %v975 = vmul.f32 %v972, %v974
  %v976 = vadd.f32 %v972, %v975
  %vm977 = vweird.f32 %v970
  %vm978 = vweird.f32 %v972
  %vm979 = vmor %vm977, %vm978
  %v980 = vsel %vm979, %v972, %v976
  %v981 = vand.u32 2147483647, %v970
  %vm982 = vcmp.eq.f32.partialorder %v981, 8.507059e+37
  %v983 = vand.u32 %v970, 2147483648
  %v984 = vor.u32 1.1754944e-38, %v983
  %v985 = vsel %vm982, %v984, %v980
  %v986 = vmul.f32 1.0, %v985
  %v987 = vrcp.pop %v971
  %v988 = vmul.f32 %v971, %v987
  %v989 = vsub.f32 1.0, %v988
  %v990 = vmul.f32 %v987, %v989
  %v991 = vadd.f32 %v987, %v990
  %vm992 = vweird.f32 %v971
  %vm993 = vweird.f32 %v987
  %vm994 = vmor %vm992, %vm993
  %v995 = vsel %vm994, %v987, %v991
  %v996 = vand.u32 2147483647, %v971
  %vm997 = vcmp.eq.f32.partialorder %v996, 8.507059e+37
  %v998 = vand.u32 %v971, 2147483648
  %v999 = vor.u32 1.1754944e-38, %v998
  %v1000 = vsel %vm997, %v999, %v995
  %v1001 = vmul.f32 1.0, %v1000
  %1004 = vrot.lane.b32.xlu0 %v957, 64
  %v1005 = vpop.permute.xlu0 %1004
  %1006 = vrot.lane.b32.xlu0 %v960, 64
  %v1007 = vpop.permute.xlu0 %1006
  %v1010 = vmul.f32 %v986, %v1005
  %v1011 = vmul.f32 %v1001, %v1007
  %1014 = vrot.lane.b32.xlu0 %v1010, 64
  %v1015 = vpop.permute.xlu0 %1014
  %1016 = vrot.lane.b32.xlu0 %v1011, 64
  %v1017 = vpop.permute.xlu0 %1016
  %v1020 = vadd.f32 %v929, %v1015
  %v1021 = vadd.f32 %v930, %v1017
  %v1022 = vtanh.pop %v1020
  %v1023 = vtanh.pop %v1021
  %v1024 = vsub.f32 1.0, %v986
  %v1025 = vsub.f32 1.0, %v1001
  %1028 = vrot.lane.b32.xlu0 %v1022, 96
  %v1029 = vpop.permute.xlu0 %1028
  %1030 = vrot.lane.b32.xlu0 %v1023, 96
  %v1031 = vpop.permute.xlu0 %1030
  %v1034 = vmul.f32 %v1024, %v1029
  %v1035 = vmul.f32 %v1025, %v1031
  %v1036 = vmul.f32 %v986, %v903
  %v1037 = vmul.f32 %v1001, %v904
  %v1038 = vadd.f32 %v1034, %v1036
  %v1039 = vadd.f32 %v1035, %v1037
  %1042 = vrot.lane.b32.xlu0 %v1038, 112
  %v1043 = vpop.permute.xlu0 %1042
  %1044 = vrot.lane.b32.xlu0 %v1039, 112
  %v1045 = vpop.permute.xlu0 %1044
  %v1048 = vadd.f32 %v1038, %v1043
  %v1049 = vadd.f32 %v1039, %v1045
  %v1050 = vmul.f32 %v1048, 0.5
  %v1051 = vmul.f32 %v1049, 0.5
  %1054 = vrot.lane.b32.xlu0 %v1050, 96
  %v1055 = vpop.permute.xlu0 %1054
  %1056 = vrot.lane.b32.xlu0 %v1051, 96
  %v1057 = vpop.permute.xlu0 %1056
  %s1060 = scalar_lea.vmem [#allocation3], 48
  %1061 = vst.msk [vmem:[%s1060] sm:$0xff] %vm391, %v1055
  %1062 = vst.msk [vmem:[%s1060 + $0x8] sm:$0xff] %vm391, %v1057
  %s1063 = scalar_lea.vmem [#allocation2], 64
  %v1064 = vld [vmem:[%s1063] sm:$0xff]
  %v1065 = vld [vmem:[%s1063 + $0x8] sm:$0xff]
  %1066 = vrot.lane.b32.xlu0 %v1038, 96
  %v1067 = vpop.permute.xlu0 %1066
  %1068 = vrot.lane.b32.xlu0 %v1039, 96
  %v1069 = vpop.permute.xlu0 %1068
  %v1070 = vsel %vm532, %v1067, 0
  %v1072 = vsel %vm532, %v1069, 0
  %1074 = vmatpush.msra.mxu0 0.0
  %1075 = vmatpush.msra.mxu0 0.0
  %1076 = vmatpush.msra.mxu0 0.0
  %1077 = vmatpush.msra.mxu0 0.0
  %1078 = vmatpush.msra.mxu0 0.0
  %1079 = vmatpush.msra.mxu0 0.0
  %1080 = vmatpush.msra.mxu0 0.0
  %1081 = vmatpush.msra.mxu0 0.0
  %1082 = vmatpush.msra.mxu0 0.0
  %1083 = vmatpush.msra.mxu0 0.0
  %1084 = vmatpush.msra.mxu0 0.0
  %1085 = vmatpush.msra.mxu0 0.0
  %1086 = vmatpush.msra.mxu0 %v525
  %1087 = vmatpush.msra.mxu0 %v524
  %1088 = vmatpush.msra.mxu0 %v523
  %1089 = vmatpush.msra.mxu0 %v522
  %1090 = vmatmul.f32.gmra.mxu0 %v1070
  %v1091 = vpop.f32.mrf.mxu0
  %v1092 = vadd.f32 %v530, %v1091
  %1093 = vmatmul.f32.gmra.mxu0 %v1072
  %v1094 = vpop.f32.mrf.mxu0
  %v1095 = vadd.f32 %v530, %v1094
  %1096 = vdwg.mxu0
  %v1097 = vadd.f32 %v1064, %v1092
  %v1098 = vadd.f32 %v1065, %v1095
  %v1099 = vxor.u32 %v1097, 2147483648
  %v1100 = vxor.u32 %v1098, 2147483648
  %v1101 = vmul.f32 %v1099, 1.442695
  %v1102 = vpow.pop %v1101
  %v1103 = vmul.f32 %v1100, 1.442695
  %v1104 = vpow.pop %v1103
  %v1105 = vadd.f32 %v1102, 1.0
  %v1106 = vadd.f32 %v1104, 1.0
  %v1107 = vrcp.pop %v1105
  %v1108 = vmul.f32 %v1105, %v1107
  %v1109 = vsub.f32 1.0, %v1108
  %v1110 = vmul.f32 %v1107, %v1109
  %v1111 = vadd.f32 %v1107, %v1110
  %vm1112 = vweird.f32 %v1105
  %vm1113 = vweird.f32 %v1107
  %vm1114 = vmor %vm1112, %vm1113
  %v1115 = vsel %vm1114, %v1107, %v1111
  %v1116 = vand.u32 2147483647, %v1105
  %vm1117 = vcmp.eq.f32.partialorder %v1116, 8.507059e+37
  %v1118 = vand.u32 %v1105, 2147483648
  %v1119 = vor.u32 1.1754944e-38, %v1118
  %v1120 = vsel %vm1117, %v1119, %v1115
  %v1121 = vmul.f32 1.0, %v1120
  %v1122 = vrcp.pop %v1106
  %v1123 = vmul.f32 %v1106, %v1122
  %v1124 = vsub.f32 1.0, %v1123
  %v1125 = vmul.f32 %v1122, %v1124
  %v1126 = vadd.f32 %v1122, %v1125
  %vm1127 = vweird.f32 %v1106
  %vm1128 = vweird.f32 %v1122
  %vm1129 = vmor %vm1127, %vm1128
  %v1130 = vsel %vm1129, %v1122, %v1126
  %v1131 = vand.u32 2147483647, %v1106
  %vm1132 = vcmp.eq.f32.partialorder %v1131, 8.507059e+37
  %v1133 = vand.u32 %v1106, 2147483648
  %v1134 = vor.u32 1.1754944e-38, %v1133
  %v1135 = vsel %vm1132, %v1134, %v1130
  %v1136 = vmul.f32 1.0, %v1135
  %1139 = vrot.lane.b32.xlu0 %v1092, 64
  %v1140 = vpop.permute.xlu0 %1139
  %1141 = vrot.lane.b32.xlu0 %v1095, 64
  %v1142 = vpop.permute.xlu0 %1141
  %v1145 = vmul.f32 %v1121, %v1140
  %v1146 = vmul.f32 %v1136, %v1142
  %1149 = vrot.lane.b32.xlu0 %v1145, 64
  %v1150 = vpop.permute.xlu0 %1149
  %1151 = vrot.lane.b32.xlu0 %v1146, 64
  %v1152 = vpop.permute.xlu0 %1151
  %v1155 = vadd.f32 %v1064, %v1150
  %v1156 = vadd.f32 %v1065, %v1152
  %v1157 = vtanh.pop %v1155
  %v1158 = vtanh.pop %v1156
  %v1159 = vsub.f32 1.0, %v1121
  %v1160 = vsub.f32 1.0, %v1136
  %1163 = vrot.lane.b32.xlu0 %v1157, 96
  %v1164 = vpop.permute.xlu0 %1163
  %1165 = vrot.lane.b32.xlu0 %v1158, 96
  %v1166 = vpop.permute.xlu0 %1165
  %v1169 = vmul.f32 %v1159, %v1164
  %v1170 = vmul.f32 %v1160, %v1166
  %v1171 = vmul.f32 %v1121, %v1038
  %v1172 = vmul.f32 %v1136, %v1039
  %v1173 = vadd.f32 %v1169, %v1171
  %v1174 = vadd.f32 %v1170, %v1172
  %1177 = vrot.lane.b32.xlu0 %v1173, 112
  %v1178 = vpop.permute.xlu0 %1177
  %1179 = vrot.lane.b32.xlu0 %v1174, 112
  %v1180 = vpop.permute.xlu0 %1179
  %v1183 = vadd.f32 %v1173, %v1178
  %v1184 = vadd.f32 %v1174, %v1180
  %v1185 = vmul.f32 %v1183, 0.5
  %v1186 = vmul.f32 %v1184, 0.5
  %1189 = vrot.lane.b32.xlu0 %v1185, 96
  %v1190 = vpop.permute.xlu0 %1189
  %1191 = vrot.lane.b32.xlu0 %v1186, 96
  %v1192 = vpop.permute.xlu0 %1191
  %s1195 = scalar_lea.vmem [#allocation3], 64
  %1196 = vst.msk [vmem:[%s1195] sm:$0xff] %vm391, %v1190
  %1197 = vst.msk [vmem:[%s1195 + $0x8] sm:$0xff] %vm391, %v1192
  %s1198 = scalar_lea.vmem [#allocation2], 80
  %v1199 = vld [vmem:[%s1198] sm:$0xff]
  %v1200 = vld [vmem:[%s1198 + $0x8] sm:$0xff]
  %1201 = vrot.lane.b32.xlu0 %v1173, 96
  %v1202 = vpop.permute.xlu0 %1201
  %1203 = vrot.lane.b32.xlu0 %v1174, 96
  %v1204 = vpop.permute.xlu0 %1203
  %v1205 = vsel %vm532, %v1202, 0
  %v1207 = vsel %vm532, %v1204, 0
  %1209 = vmatpush.msra.mxu0 0.0
  %1210 = vmatpush.msra.mxu0 0.0
  %1211 = vmatpush.msra.mxu0 0.0
  %1212 = vmatpush.msra.mxu0 0.0
  %1213 = vmatpush.msra.mxu0 0.0
  %1214 = vmatpush.msra.mxu0 0.0
  %1215 = vmatpush.msra.mxu0 0.0
  %1216 = vmatpush.msra.mxu0 0.0
  %1217 = vmatpush.msra.mxu0 0.0
  %1218 = vmatpush.msra.mxu0 0.0
  %1219 = vmatpush.msra.mxu0 0.0
  %1220 = vmatpush.msra.mxu0 0.0
  %1221 = vmatpush.msra.mxu0 %v525
  %1222 = vmatpush.msra.mxu0 %v524
  %1223 = vmatpush.msra.mxu0 %v523
  %1224 = vmatpush.msra.mxu0 %v522
  %1225 = vmatmul.f32.gmra.mxu0 %v1205
  %v1226 = vpop.f32.mrf.mxu0
  %v1227 = vadd.f32 %v530, %v1226
  %1228 = vmatmul.f32.gmra.mxu0 %v1207
  %v1229 = vpop.f32.mrf.mxu0
  %v1230 = vadd.f32 %v530, %v1229
  %1231 = vdwg.mxu0
  %v1232 = vadd.f32 %v1199, %v1227
  %v1233 = vadd.f32 %v1200, %v1230
  %v1234 = vxor.u32 %v1232, 2147483648
  %v1235 = vxor.u32 %v1233, 2147483648
  %v1236 = vmul.f32 %v1234, 1.442695
  %v1237 = vpow.pop %v1236
  %v1238 = vmul.f32 %v1235, 1.442695
  %v1239 = vpow.pop %v1238
  %v1240 = vadd.f32 %v1237, 1.0
  %v1241 = vadd.f32 %v1239, 1.0
  %v1242 = vrcp.pop %v1240
  %v1243 = vmul.f32 %v1240, %v1242
  %v1244 = vsub.f32 1.0, %v1243
  %v1245 = vmul.f32 %v1242, %v1244
  %v1246 = vadd.f32 %v1242, %v1245
  %vm1247 = vweird.f32 %v1240
  %vm1248 = vweird.f32 %v1242
  %vm1249 = vmor %vm1247, %vm1248
  %v1250 = vsel %vm1249, %v1242, %v1246
  %v1251 = vand.u32 2147483647, %v1240
  %vm1252 = vcmp.eq.f32.partialorder %v1251, 8.507059e+37
  %v1253 = vand.u32 %v1240, 2147483648
  %v1254 = vor.u32 1.1754944e-38, %v1253
  %v1255 = vsel %vm1252, %v1254, %v1250
  %v1256 = vmul.f32 1.0, %v1255
  %v1257 = vrcp.pop %v1241
  %v1258 = vmul.f32 %v1241, %v1257
  %v1259 = vsub.f32 1.0, %v1258
  %v1260 = vmul.f32 %v1257, %v1259
  %v1261 = vadd.f32 %v1257, %v1260
  %vm1262 = vweird.f32 %v1241
  %vm1263 = vweird.f32 %v1257
  %vm1264 = vmor %vm1262, %vm1263
  %v1265 = vsel %vm1264, %v1257, %v1261
  %v1266 = vand.u32 2147483647, %v1241
  %vm1267 = vcmp.eq.f32.partialorder %v1266, 8.507059e+37
  %v1268 = vand.u32 %v1241, 2147483648
  %v1269 = vor.u32 1.1754944e-38, %v1268
  %v1270 = vsel %vm1267, %v1269, %v1265
  %v1271 = vmul.f32 1.0, %v1270
  %1274 = vrot.lane.b32.xlu0 %v1227, 64
  %v1275 = vpop.permute.xlu0 %1274
  %1276 = vrot.lane.b32.xlu0 %v1230, 64
  %v1277 = vpop.permute.xlu0 %1276
  %v1280 = vmul.f32 %v1256, %v1275
  %v1281 = vmul.f32 %v1271, %v1277
  %1284 = vrot.lane.b32.xlu0 %v1280, 64
  %v1285 = vpop.permute.xlu0 %1284
  %1286 = vrot.lane.b32.xlu0 %v1281, 64
  %v1287 = vpop.permute.xlu0 %1286
  %v1290 = vadd.f32 %v1199, %v1285
  %v1291 = vadd.f32 %v1200, %v1287
  %v1292 = vtanh.pop %v1290
  %v1293 = vtanh.pop %v1291
  %v1294 = vsub.f32 1.0, %v1256
  %v1295 = vsub.f32 1.0, %v1271
  %1298 = vrot.lane.b32.xlu0 %v1292, 96
  %v1299 = vpop.permute.xlu0 %1298
  %1300 = vrot.lane.b32.xlu0 %v1293, 96
  %v1301 = vpop.permute.xlu0 %1300
  %v1304 = vmul.f32 %v1294, %v1299
  %v1305 = vmul.f32 %v1295, %v1301
  %v1306 = vmul.f32 %v1256, %v1173
  %v1307 = vmul.f32 %v1271, %v1174
  %v1308 = vadd.f32 %v1304, %v1306
  %v1309 = vadd.f32 %v1305, %v1307
  %1312 = vrot.lane.b32.xlu0 %v1308, 112
  %v1313 = vpop.permute.xlu0 %1312
  %1314 = vrot.lane.b32.xlu0 %v1309, 112
  %v1315 = vpop.permute.xlu0 %1314
  %v1318 = vadd.f32 %v1308, %v1313
  %v1319 = vadd.f32 %v1309, %v1315
  %v1320 = vmul.f32 %v1318, 0.5
  %v1321 = vmul.f32 %v1319, 0.5
  %1324 = vrot.lane.b32.xlu0 %v1320, 96
  %v1325 = vpop.permute.xlu0 %1324
  %1326 = vrot.lane.b32.xlu0 %v1321, 96
  %v1327 = vpop.permute.xlu0 %1326
  %s1330 = scalar_lea.vmem [#allocation3], 80
  %1331 = vst.msk [vmem:[%s1330] sm:$0xff] %vm391, %v1325
  %1332 = vst.msk [vmem:[%s1330 + $0x8] sm:$0xff] %vm391, %v1327
  %s1333 = scalar_lea.vmem [#allocation2], 96
  %v1334 = vld [vmem:[%s1333] sm:$0xff]
  %v1335 = vld [vmem:[%s1333 + $0x8] sm:$0xff]
  %1336 = vrot.lane.b32.xlu0 %v1308, 96
  %v1337 = vpop.permute.xlu0 %1336
  %1338 = vrot.lane.b32.xlu0 %v1309, 96
  %v1339 = vpop.permute.xlu0 %1338
  %v1340 = vsel %vm532, %v1337, 0
  %v1342 = vsel %vm532, %v1339, 0
  %1344 = vmatpush.msra.mxu0 0.0
  %1345 = vmatpush.msra.mxu0 0.0
  %1346 = vmatpush.msra.mxu0 0.0
  %1347 = vmatpush.msra.mxu0 0.0
  %1348 = vmatpush.msra.mxu0 0.0
  %1349 = vmatpush.msra.mxu0 0.0
  %1350 = vmatpush.msra.mxu0 0.0
  %1351 = vmatpush.msra.mxu0 0.0
  %1352 = vmatpush.msra.mxu0 0.0
  %1353 = vmatpush.msra.mxu0 0.0
  %1354 = vmatpush.msra.mxu0 0.0
  %1355 = vmatpush.msra.mxu0 0.0
  %1356 = vmatpush.msra.mxu0 %v525
  %1357 = vmatpush.msra.mxu0 %v524
  %1358 = vmatpush.msra.mxu0 %v523
  %1359 = vmatpush.msra.mxu0 %v522
  %1360 = vmatmul.f32.gmra.mxu0 %v1340
  %v1361 = vpop.f32.mrf.mxu0
  %v1362 = vadd.f32 %v530, %v1361
  %1363 = vmatmul.f32.gmra.mxu0 %v1342
  %v1364 = vpop.f32.mrf.mxu0
  %v1365 = vadd.f32 %v530, %v1364
  %1366 = vdwg.mxu0
  %v1367 = vadd.f32 %v1334, %v1362
  %v1368 = vadd.f32 %v1335, %v1365
  %v1369 = vxor.u32 %v1367, 2147483648
  %v1370 = vxor.u32 %v1368, 2147483648
  %v1371 = vmul.f32 %v1369, 1.442695
  %v1372 = vpow.pop %v1371
  %v1373 = vmul.f32 %v1370, 1.442695
  %v1374 = vpow.pop %v1373
  %v1375 = vadd.f32 %v1372, 1.0
  %v1376 = vadd.f32 %v1374, 1.0
  %v1377 = vrcp.pop %v1375
  %v1378 = vmul.f32 %v1375, %v1377
  %v1379 = vsub.f32 1.0, %v1378
  %v1380 = vmul.f32 %v1377, %v1379
  %v1381 = vadd.f32 %v1377, %v1380
  %vm1382 = vweird.f32 %v1375
  %vm1383 = vweird.f32 %v1377
  %vm1384 = vmor %vm1382, %vm1383
  %v1385 = vsel %vm1384, %v1377, %v1381
  %v1386 = vand.u32 2147483647, %v1375
  %vm1387 = vcmp.eq.f32.partialorder %v1386, 8.507059e+37
  %v1388 = vand.u32 %v1375, 2147483648
  %v1389 = vor.u32 1.1754944e-38, %v1388
  %v1390 = vsel %vm1387, %v1389, %v1385
  %v1391 = vmul.f32 1.0, %v1390
  %v1392 = vrcp.pop %v1376
  %v1393 = vmul.f32 %v1376, %v1392
  %v1394 = vsub.f32 1.0, %v1393
  %v1395 = vmul.f32 %v1392, %v1394
  %v1396 = vadd.f32 %v1392, %v1395
  %vm1397 = vweird.f32 %v1376
  %vm1398 = vweird.f32 %v1392
  %vm1399 = vmor %vm1397, %vm1398
  %v1400 = vsel %vm1399, %v1392, %v1396
  %v1401 = vand.u32 2147483647, %v1376
  %vm1402 = vcmp.eq.f32.partialorder %v1401, 8.507059e+37
  %v1403 = vand.u32 %v1376, 2147483648
  %v1404 = vor.u32 1.1754944e-38, %v1403
  %v1405 = vsel %vm1402, %v1404, %v1400
  %v1406 = vmul.f32 1.0, %v1405
  %1409 = vrot.lane.b32.xlu0 %v1362, 64
  %v1410 = vpop.permute.xlu0 %1409
  %1411 = vrot.lane.b32.xlu0 %v1365, 64
  %v1412 = vpop.permute.xlu0 %1411
  %v1415 = vmul.f32 %v1391, %v1410
  %v1416 = vmul.f32 %v1406, %v1412
  %1419 = vrot.lane.b32.xlu0 %v1415, 64
  %v1420 = vpop.permute.xlu0 %1419
  %1421 = vrot.lane.b32.xlu0 %v1416, 64
  %v1422 = vpop.permute.xlu0 %1421
  %v1425 = vadd.f32 %v1334, %v1420
  %v1426 = vadd.f32 %v1335, %v1422
  %v1427 = vtanh.pop %v1425
  %v1428 = vtanh.pop %v1426
  %v1429 = vsub.f32 1.0, %v1391
  %v1430 = vsub.f32 1.0, %v1406
  %1433 = vrot.lane.b32.xlu0 %v1427, 96
  %v1434 = vpop.permute.xlu0 %1433
  %1435 = vrot.lane.b32.xlu0 %v1428, 96
  %v1436 = vpop.permute.xlu0 %1435
  %v1439 = vmul.f32 %v1429, %v1434
  %v1440 = vmul.f32 %v1430, %v1436
  %v1441 = vmul.f32 %v1391, %v1308
  %v1442 = vmul.f32 %v1406, %v1309
  %v1443 = vadd.f32 %v1439, %v1441
  %v1444 = vadd.f32 %v1440, %v1442
  %1447 = vrot.lane.b32.xlu0 %v1443, 112
  %v1448 = vpop.permute.xlu0 %1447
  %1449 = vrot.lane.b32.xlu0 %v1444, 112
  %v1450 = vpop.permute.xlu0 %1449
  %v1453 = vadd.f32 %v1443, %v1448
  %v1454 = vadd.f32 %v1444, %v1450
  %v1455 = vmul.f32 %v1453, 0.5
  %v1456 = vmul.f32 %v1454, 0.5
  %1459 = vrot.lane.b32.xlu0 %v1455, 96
  %v1460 = vpop.permute.xlu0 %1459
  %1461 = vrot.lane.b32.xlu0 %v1456, 96
  %v1462 = vpop.permute.xlu0 %1461
  %s1465 = scalar_lea.vmem [#allocation3], 96
  %1466 = vst.msk [vmem:[%s1465] sm:$0xff] %vm391, %v1460
  %1467 = vst.msk [vmem:[%s1465 + $0x8] sm:$0xff] %vm391, %v1462
  %s1468 = scalar_lea.vmem [#allocation2], 112
  %v1469 = vld [vmem:[%s1468] sm:$0xff]
  %v1470 = vld [vmem:[%s1468 + $0x8] sm:$0xff]
  %1471 = vrot.lane.b32.xlu0 %v1443, 96
  %v1472 = vpop.permute.xlu0 %1471
  %1473 = vrot.lane.b32.xlu0 %v1444, 96
  %v1474 = vpop.permute.xlu0 %1473
  %v1475 = vsel %vm532, %v1472, 0
  %v1477 = vsel %vm532, %v1474, 0
  %1479 = vmatpush.msra.mxu0 0.0
  %1480 = vmatpush.msra.mxu0 0.0
  %1481 = vmatpush.msra.mxu0 0.0
  %1482 = vmatpush.msra.mxu0 0.0
  %1483 = vmatpush.msra.mxu0 0.0
  %1484 = vmatpush.msra.mxu0 0.0
  %1485 = vmatpush.msra.mxu0 0.0
  %1486 = vmatpush.msra.mxu0 0.0
  %1487 = vmatpush.msra.mxu0 0.0
  %1488 = vmatpush.msra.mxu0 0.0
  %1489 = vmatpush.msra.mxu0 0.0
  %1490 = vmatpush.msra.mxu0 0.0
  %1491 = vmatpush.msra.mxu0 %v525
  %1492 = vmatpush.msra.mxu0 %v524
  %1493 = vmatpush.msra.mxu0 %v523
  %1494 = vmatpush.msra.mxu0 %v522
  %1495 = vmatmul.f32.gmra.mxu0 %v1475
  %v1496 = vpop.f32.mrf.mxu0
  %v1497 = vadd.f32 %v530, %v1496
  %1498 = vmatmul.f32.gmra.mxu0 %v1477
  %v1499 = vpop.f32.mrf.mxu0
  %v1500 = vadd.f32 %v530, %v1499
  %1501 = vdwg.mxu0
  %v1502 = vadd.f32 %v1469, %v1497
  %v1503 = vadd.f32 %v1470, %v1500
  %v1504 = vxor.u32 %v1502, 2147483648
  %v1505 = vxor.u32 %v1503, 2147483648
  %v1506 = vmul.f32 %v1504, 1.442695
  %v1507 = vpow.pop %v1506
  %v1508 = vmul.f32 %v1505, 1.442695
  %v1509 = vpow.pop %v1508
  %v1510 = vadd.f32 %v1507, 1.0
  %v1511 = vadd.f32 %v1509, 1.0
  %v1512 = vrcp.pop %v1510
  %v1513 = vmul.f32 %v1510, %v1512
  %v1514 = vsub.f32 1.0, %v1513
  %v1515 = vmul.f32 %v1512, %v1514
  %v1516 = vadd.f32 %v1512, %v1515
  %vm1517 = vweird.f32 %v1510
  %vm1518 = vweird.f32 %v1512
  %vm1519 = vmor %vm1517, %vm1518
  %v1520 = vsel %vm1519, %v1512, %v1516
  %v1521 = vand.u32 2147483647, %v1510
  %vm1522 = vcmp.eq.f32.partialorder %v1521, 8.507059e+37
  %v1523 = vand.u32 %v1510, 2147483648
  %v1524 = vor.u32 1.1754944e-38, %v1523
  %v1525 = vsel %vm1522, %v1524, %v1520
  %v1526 = vmul.f32 1.0, %v1525
  %v1527 = vrcp.pop %v1511
  %v1528 = vmul.f32 %v1511, %v1527
  %v1529 = vsub.f32 1.0, %v1528
  %v1530 = vmul.f32 %v1527, %v1529
  %v1531 = vadd.f32 %v1527, %v1530
  %vm1532 = vweird.f32 %v1511
  %vm1533 = vweird.f32 %v1527
  %vm1534 = vmor %vm1532, %vm1533
  %v1535 = vsel %vm1534, %v1527, %v1531
  %v1536 = vand.u32 2147483647, %v1511
  %vm1537 = vcmp.eq.f32.partialorder %v1536, 8.507059e+37
  %v1538 = vand.u32 %v1511, 2147483648
  %v1539 = vor.u32 1.1754944e-38, %v1538
  %v1540 = vsel %vm1537, %v1539, %v1535
  %v1541 = vmul.f32 1.0, %v1540
  %1544 = vrot.lane.b32.xlu0 %v1497, 64
  %v1545 = vpop.permute.xlu0 %1544
  %1546 = vrot.lane.b32.xlu0 %v1500, 64
  %v1547 = vpop.permute.xlu0 %1546
  %v1550 = vmul.f32 %v1526, %v1545
  %v1551 = vmul.f32 %v1541, %v1547
  %1554 = vrot.lane.b32.xlu0 %v1550, 64
  %v1555 = vpop.permute.xlu0 %1554
  %1556 = vrot.lane.b32.xlu0 %v1551, 64
  %v1557 = vpop.permute.xlu0 %1556
  %v1560 = vadd.f32 %v1469, %v1555
  %v1561 = vadd.f32 %v1470, %v1557
  %v1562 = vtanh.pop %v1560
  %v1563 = vtanh.pop %v1561
  %v1564 = vsub.f32 1.0, %v1526
  %v1565 = vsub.f32 1.0, %v1541
  %1568 = vrot.lane.b32.xlu0 %v1562, 96
  %v1569 = vpop.permute.xlu0 %1568
  %1570 = vrot.lane.b32.xlu0 %v1563, 96
  %v1571 = vpop.permute.xlu0 %1570
  %v1574 = vmul.f32 %v1564, %v1569
  %v1575 = vmul.f32 %v1565, %v1571
  %v1576 = vmul.f32 %v1526, %v1443
  %v1577 = vmul.f32 %v1541, %v1444
  %v1578 = vadd.f32 %v1574, %v1576
  %v1579 = vadd.f32 %v1575, %v1577
  %1582 = vrot.lane.b32.xlu0 %v1578, 112
  %v1583 = vpop.permute.xlu0 %1582
  %1584 = vrot.lane.b32.xlu0 %v1579, 112
  %v1585 = vpop.permute.xlu0 %1584
  %v1588 = vadd.f32 %v1578, %v1583
  %v1589 = vadd.f32 %v1579, %v1585
  %v1590 = vmul.f32 %v1588, 0.5
  %v1591 = vmul.f32 %v1589, 0.5
  %1594 = vrot.lane.b32.xlu0 %v1590, 96
  %v1595 = vpop.permute.xlu0 %1594
  %1596 = vrot.lane.b32.xlu0 %v1591, 96
  %v1597 = vpop.permute.xlu0 %1596
  %s1600 = scalar_lea.vmem [#allocation3], 112
  %1601 = vst.msk [vmem:[%s1600] sm:$0xff] %vm391, %v1595
  %1602 = vst.msk [vmem:[%s1600 + $0x8] sm:$0xff] %vm391, %v1597
  %v1603 = vld [vmem:[#allocation3] sm:$0xff]
  %v1604 = vld [vmem:[#allocation3 + $0x8] sm:$0xff]
  %v1605 = vld [vmem:[#allocation3 + $0x10] sm:$0xff]
  %v1606 = vld [vmem:[#allocation3 + $0x18] sm:$0xff]
  %v1607 = vld [vmem:[#allocation3 + $0x20] sm:$0xff]
  %v1608 = vld [vmem:[#allocation3 + $0x28] sm:$0xff]
  %v1609 = vld [vmem:[#allocation3 + $0x30] sm:$0xff]
  %v1610 = vld [vmem:[#allocation3 + $0x38] sm:$0xff]
  %v1611 = vld [vmem:[#allocation3 + $0x40] sm:$0xff]
  %v1612 = vld [vmem:[#allocation3 + $0x48] sm:$0xff]
  %v1613 = vld [vmem:[#allocation3 + $0x50] sm:$0xff]
  %v1614 = vld [vmem:[#allocation3 + $0x58] sm:$0xff]
  %v1615 = vld [vmem:[#allocation3 + $0x60] sm:$0xff]
  %v1616 = vld [vmem:[#allocation3 + $0x68] sm:$0xff]
  %v1617 = vld [vmem:[#allocation3 + $0x70] sm:$0xff]
  %v1618 = vld [vmem:[#allocation3 + $0x78] sm:$0xff]
  %v1619 = vld [vmem:[%s8] sm:$0xff]
  %v1620 = vld [vmem:[%s8 + $0x8] sm:$0xff]
  %v1621 = vld [vmem:[%s9] sm:$0x1]
  %v1623 = vperm.slane %v1621, 0
  %v1626 = vsel %vm391, %v1603, 0
  %v1629 = vsel %vm391, %v1604, 0
  %v1632 = vsel %vm391, %v1605, 0
  %v1635 = vsel %vm391, %v1606, 0
  %v1638 = vsel %vm391, %v1607, 0
  %v1641 = vsel %vm391, %v1608, 0
  %v1644 = vsel %vm391, %v1609, 0
  %v1647 = vsel %vm391, %v1610, 0
  %v1650 = vsel %vm391, %v1611, 0
  %v1653 = vsel %vm391, %v1612, 0
  %v1656 = vsel %vm391, %v1613, 0
  %v1659 = vsel %vm391, %v1614, 0
  %v1662 = vsel %vm391, %v1615, 0
  %v1665 = vsel %vm391, %v1616, 0
  %v1668 = vsel %vm391, %v1617, 0
  %v1671 = vsel %vm391, %v1618, 0
  %1673 = vmatpush.msra.mxu0 0.0
  %1674 = vmatpush.msra.mxu0 0.0
  %1675 = vmatpush.msra.mxu0 0.0
  %1676 = vmatpush.msra.mxu0 0.0
  %1677 = vmatpush.msra.mxu0 0.0
  %1678 = vmatpush.msra.mxu0 0.0
  %1679 = vmatpush.msra.mxu0 0.0
  %1680 = vmatpush.msra.mxu0 0.0
  %1681 = vmatpush.msra.mxu0 0.0
  %1682 = vmatpush.msra.mxu0 0.0
  %1683 = vmatpush.msra.mxu0 0.0
  %1684 = vmatpush.msra.mxu0 0.0
  %1685 = vmatpush.msra.mxu0 0.0
  %1686 = vmatpush.msra.mxu0 0.0
  %1687 = vmatpush.msra.mxu0 %v1620
  %1688 = vmatpush.msra.mxu0 %v1619
  %1689 = vmatmul.f32.gmra.mxu0 %v1626
  %v1690 = vpop.f32.mrf.mxu0
  %v1691 = vadd.f32 %v1623, %v1690
  %1692 = vmatmul.f32.gmra.mxu0 %v1629
  %v1693 = vpop.f32.mrf.mxu0
  %v1694 = vadd.f32 %v1623, %v1693
  %1695 = vmatmul.f32.gmra.mxu0 %v1632
  %v1696 = vpop.f32.mrf.mxu0
  %v1697 = vadd.f32 %v1623, %v1696
  %1698 = vmatmul.f32.gmra.mxu0 %v1635
  %v1699 = vpop.f32.mrf.mxu0
  %v1700 = vadd.f32 %v1623, %v1699
  %1701 = vmatmul.f32.gmra.mxu0 %v1638
  %v1702 = vpop.f32.mrf.mxu0
  %v1703 = vadd.f32 %v1623, %v1702
  %1704 = vmatmul.f32.gmra.mxu0 %v1641
  %v1705 = vpop.f32.mrf.mxu0
  %v1706 = vadd.f32 %v1623, %v1705
  %1707 = vmatmul.f32.gmra.mxu0 %v1644
  %v1708 = vpop.f32.mrf.mxu0
  %v1709 = vadd.f32 %v1623, %v1708
  %1710 = vmatmul.f32.gmra.mxu0 %v1647
  %v1711 = vpop.f32.mrf.mxu0
  %v1712 = vadd.f32 %v1623, %v1711
  %1713 = vmatmul.f32.gmra.mxu0 %v1650
  %v1714 = vpop.f32.mrf.mxu0
  %v1715 = vadd.f32 %v1623, %v1714
  %1716 = vmatmul.f32.gmra.mxu0 %v1653
  %v1717 = vpop.f32.mrf.mxu0
  %v1718 = vadd.f32 %v1623, %v1717
  %1719 = vmatmul.f32.gmra.mxu0 %v1656
  %v1720 = vpop.f32.mrf.mxu0
  %v1721 = vadd.f32 %v1623, %v1720
  %1722 = vmatmul.f32.gmra.mxu0 %v1659
  %v1723 = vpop.f32.mrf.mxu0
  %v1724 = vadd.f32 %v1623, %v1723
  %1725 = vmatmul.f32.gmra.mxu0 %v1662
  %v1726 = vpop.f32.mrf.mxu0
  %v1727 = vadd.f32 %v1623, %v1726
  %1728 = vmatmul.f32.gmra.mxu0 %v1665
  %v1729 = vpop.f32.mrf.mxu0
  %v1730 = vadd.f32 %v1623, %v1729
  %1731 = vmatmul.f32.gmra.mxu0 %v1668
  %v1732 = vpop.f32.mrf.mxu0
  %v1733 = vadd.f32 %v1623, %v1732
  %1734 = vmatmul.f32.gmra.mxu0 %v1671
  %v1735 = vpop.f32.mrf.mxu0
  %v1736 = vadd.f32 %v1623, %v1735
  %1737 = vdwg.mxu0
  %v1738 = vld [vmem:[%s10] sm:$0x1]
  %v1740 = vperm.slane %v1738, 0
  %v1742 = vmul.f32 %v1691, %v1740
  %v1743 = vmul.f32 %v1694, %v1740
  %v1744 = vmul.f32 %v1697, %v1740
  %v1745 = vmul.f32 %v1700, %v1740
  %v1746 = vmul.f32 %v1703, %v1740
  %v1747 = vmul.f32 %v1706, %v1740
  %v1748 = vmul.f32 %v1709, %v1740
  %v1749 = vmul.f32 %v1712, %v1740
  %v1750 = vmul.f32 %v1715, %v1740
  %v1751 = vmul.f32 %v1718, %v1740
  %v1752 = vmul.f32 %v1721, %v1740
  %v1753 = vmul.f32 %v1724, %v1740
  %v1754 = vmul.f32 %v1727, %v1740
  %v1755 = vmul.f32 %v1730, %v1740
  %v1756 = vmul.f32 %v1733, %v1740
  %v1757 = vmul.f32 %v1736, %v1740
  %v1758 = vsel %vm391, %v1742, 0.0
  %1759 = vadd.xlane.f32.xlu0 %v1758
  %v1760 = vpop.xlane.xlu0 %1759
  %v1761 = vsel %vm391, %v1743, 0.0
  %1762 = vadd.xlane.f32.xlu0 %v1761
  %v1763 = vpop.xlane.xlu0 %1762
  %v1764 = vsel %vm391, %v1744, 0.0
  %1765 = vadd.xlane.f32.xlu0 %v1764
  %v1766 = vpop.xlane.xlu0 %1765
  %v1767 = vsel %vm391, %v1745, 0.0
  %1768 = vadd.xlane.f32.xlu0 %v1767
  %v1769 = vpop.xlane.xlu0 %1768
  %v1770 = vsel %vm391, %v1746, 0.0
  %1771 = vadd.xlane.f32.xlu0 %v1770
  %v1772 = vpop.xlane.xlu0 %1771
  %v1773 = vsel %vm391, %v1747, 0.0
  %1774 = vadd.xlane.f32.xlu0 %v1773
  %v1775 = vpop.xlane.xlu0 %1774
  %v1776 = vsel %vm391, %v1748, 0.0
  %1777 = vadd.xlane.f32.xlu0 %v1776
  %v1778 = vpop.xlane.xlu0 %1777
  %v1779 = vsel %vm391, %v1749, 0.0
  %1780 = vadd.xlane.f32.xlu0 %v1779
  %v1781 = vpop.xlane.xlu0 %1780
  %v1782 = vsel %vm391, %v1750, 0.0
  %1783 = vadd.xlane.f32.xlu0 %v1782
  %v1784 = vpop.xlane.xlu0 %1783
  %v1785 = vsel %vm391, %v1751, 0.0
  %1786 = vadd.xlane.f32.xlu0 %v1785
  %v1787 = vpop.xlane.xlu0 %1786
  %v1788 = vsel %vm391, %v1752, 0.0
  %1789 = vadd.xlane.f32.xlu0 %v1788
  %v1790 = vpop.xlane.xlu0 %1789
  %v1791 = vsel %vm391, %v1753, 0.0
  %1792 = vadd.xlane.f32.xlu0 %v1791
  %v1793 = vpop.xlane.xlu0 %1792
  %v1794 = vsel %vm391, %v1754, 0.0
  %1795 = vadd.xlane.f32.xlu0 %v1794
  %v1796 = vpop.xlane.xlu0 %1795
  %v1797 = vsel %vm391, %v1755, 0.0
  %1798 = vadd.xlane.f32.xlu0 %v1797
  %v1799 = vpop.xlane.xlu0 %1798
  %v1800 = vsel %vm391, %v1756, 0.0
  %1801 = vadd.xlane.f32.xlu0 %v1800
  %v1802 = vpop.xlane.xlu0 %1801
  %v1803 = vsel %vm391, %v1757, 0.0
  %1804 = vadd.xlane.f32.xlu0 %v1803
  %v1805 = vpop.xlane.xlu0 %1804
  %v1806 = vld [vmem:[%s11] sm:$0xff]
  %v1808 = vsel %vm391, %v1806, 0
  %v1811 = vsel %vm391, %v1691, 0
  %v1814 = vsel %vm391, %v1694, 0
  %v1817 = vsel %vm391, %v1697, 0
  %v1820 = vsel %vm391, %v1700, 0
  %v1823 = vsel %vm391, %v1703, 0
  %v1826 = vsel %vm391, %v1706, 0
  %v1829 = vsel %vm391, %v1709, 0
  %v1832 = vsel %vm391, %v1712, 0
  %v1835 = vsel %vm391, %v1715, 0
  %v1838 = vsel %vm391, %v1718, 0
  %v1841 = vsel %vm391, %v1721, 0
  %v1844 = vsel %vm391, %v1724, 0
  %v1847 = vsel %vm391, %v1727, 0
  %v1850 = vsel %vm391, %v1730, 0
  %v1853 = vsel %vm391, %v1733, 0
  %v1856 = vsel %vm391, %v1736, 0
  %1858 = vmatpush.xpose.msra.mxu0 %v1856
  %1859 = vmatpush.xpose.msra.mxu0 %v1853
  %1860 = vmatpush.xpose.msra.mxu0 %v1850
  %1861 = vmatpush.xpose.msra.mxu0 %v1847
  %1862 = vmatpush.xpose.msra.mxu0 %v1844
  %1863 = vmatpush.xpose.msra.mxu0 %v1841
  %1864 = vmatpush.xpose.msra.mxu0 %v1838
  %1865 = vmatpush.xpose.msra.mxu0 %v1835
  %1866 = vmatpush.xpose.msra.mxu0 %v1832
  %1867 = vmatpush.xpose.msra.mxu0 %v1829
  %1868 = vmatpush.xpose.msra.mxu0 %v1826
  %1869 = vmatpush.xpose.msra.mxu0 %v1823
  %1870 = vmatpush.xpose.msra.mxu0 %v1820
  %1871 = vmatpush.xpose.msra.mxu0 %v1817
  %1872 = vmatpush.xpose.msra.mxu0 %v1814
  %1873 = vmatpush.xpose.msra.mxu0 %v1811
  %1874 = vmatmul.f32.gmra.mxu0 %v1808
  %v1875 = vpop.f32.mrf.mxu0
  %v1876 = vadd.f32 0.0, %v1875
  %1877 = vdwg.mxu0
  %v1878 = vperm.slane %v1876, 0
  %v1879 = vadd.f32 %v1760, %v1878
  %v1880 = vadd.f32 %v1763, %v1878
  %v1881 = vadd.f32 %v1766, %v1878
  %v1882 = vadd.f32 %v1769, %v1878
  %v1883 = vadd.f32 %v1772, %v1878
  %v1884 = vadd.f32 %v1775, %v1878
  %v1885 = vadd.f32 %v1778, %v1878
  %v1886 = vadd.f32 %v1781, %v1878
  %v1887 = vadd.f32 %v1784, %v1878
  %v1888 = vadd.f32 %v1787, %v1878
  %v1889 = vadd.f32 %v1790, %v1878
  %v1890 = vadd.f32 %v1793, %v1878
  %v1891 = vadd.f32 %v1796, %v1878
  %v1892 = vadd.f32 %v1799, %v1878
  %v1893 = vadd.f32 %v1802, %v1878
  %v1894 = vadd.f32 %v1805, %v1878
  %vm1895 = vcmp.gt.f32.partialorder %v1879, 0.0
  %vm1896 = vcmp.gt.f32.partialorder %v1880, 0.0
  %vm1897 = vcmp.gt.f32.partialorder %v1881, 0.0
  %vm1898 = vcmp.gt.f32.partialorder %v1882, 0.0
  %vm1899 = vcmp.gt.f32.partialorder %v1883, 0.0
  %vm1900 = vcmp.gt.f32.partialorder %v1884, 0.0
  %vm1901 = vcmp.gt.f32.partialorder %v1885, 0.0
  %vm1902 = vcmp.gt.f32.partialorder %v1886, 0.0
  %vm1903 = vcmp.gt.f32.partialorder %v1887, 0.0
  %vm1904 = vcmp.gt.f32.partialorder %v1888, 0.0
  %vm1905 = vcmp.gt.f32.partialorder %v1889, 0.0
  %vm1906 = vcmp.gt.f32.partialorder %v1890, 0.0
  %vm1907 = vcmp.gt.f32.partialorder %v1891, 0.0
  %vm1908 = vcmp.gt.f32.partialorder %v1892, 0.0
  %vm1909 = vcmp.gt.f32.partialorder %v1893, 0.0
  %vm1910 = vcmp.gt.f32.partialorder %v1894, 0.0
  %v1911 = vmul.f32 %v1879, 0.2
  %v1912 = vmul.f32 %v1880, 0.2
  %v1913 = vmul.f32 %v1881, 0.2
  %v1914 = vmul.f32 %v1882, 0.2
  %v1915 = vmul.f32 %v1883, 0.2
  %v1916 = vmul.f32 %v1884, 0.2
  %v1917 = vmul.f32 %v1885, 0.2
  %v1918 = vmul.f32 %v1886, 0.2
  %v1919 = vmul.f32 %v1887, 0.2
  %v1920 = vmul.f32 %v1888, 0.2
  %v1921 = vmul.f32 %v1889, 0.2
  %v1922 = vmul.f32 %v1890, 0.2
  %v1923 = vmul.f32 %v1891, 0.2
  %v1924 = vmul.f32 %v1892, 0.2
  %v1925 = vmul.f32 %v1893, 0.2
  %v1926 = vmul.f32 %v1894, 0.2
  %v1927 = vsel %vm1895, %v1879, %v1911
  %v1928 = vsel %vm1896, %v1880, %v1912
  %v1929 = vsel %vm1897, %v1881, %v1913
  %v1930 = vsel %vm1898, %v1882, %v1914
  %v1931 = vsel %vm1899, %v1883, %v1915
  %v1932 = vsel %vm1900, %v1884, %v1916
  %v1933 = vsel %vm1901, %v1885, %v1917
  %v1934 = vsel %vm1902, %v1886, %v1918
  %v1935 = vsel %vm1903, %v1887, %v1919
  %v1936 = vsel %vm1904, %v1888, %v1920
  %v1937 = vsel %vm1905, %v1889, %v1921
  %v1938 = vsel %vm1906, %v1890, %v1922
  %v1939 = vsel %vm1907, %v1891, %v1923
  %v1940 = vsel %vm1908, %v1892, %v1924
  %v1941 = vsel %vm1909, %v1893, %v1925
  %v1942 = vsel %vm1910, %v1894, %v1926
  %v1943 = vld [vmem:[%s1] sm:$0xff]
  %v1944 = vld [vmem:[%s1 + $0x8] sm:$0xff]
  %v1945 = vld [vmem:[%s1 + $0x10] sm:$0xff]
  %v1946 = vld [vmem:[%s1 + $0x18] sm:$0xff]
  %v1947 = vld [vmem:[%s1 + $0x20] sm:$0xff]
  %v1948 = vld [vmem:[%s1 + $0x28] sm:$0xff]
  %v1949 = vld [vmem:[%s1 + $0x30] sm:$0xff]
  %v1950 = vld [vmem:[%s1 + $0x38] sm:$0xff]
  %v1951 = vld [vmem:[%s1 + $0x40] sm:$0xff]
  %v1952 = vld [vmem:[%s1 + $0x48] sm:$0xff]
  %v1953 = vld [vmem:[%s1 + $0x50] sm:$0xff]
  %v1954 = vld [vmem:[%s1 + $0x58] sm:$0xff]
  %v1955 = vld [vmem:[%s1 + $0x60] sm:$0xff]
  %v1956 = vld [vmem:[%s1 + $0x68] sm:$0xff]
  %v1957 = vld [vmem:[%s1 + $0x70] sm:$0xff]
  %v1958 = vld [vmem:[%s1 + $0x78] sm:$0xff]
  %vm1959 = vcmp.gt.f32.partialorder %v1943, 0.0
  %vm1960 = vcmp.gt.f32.partialorder %v1944, 0.0
  %vm1961 = vcmp.gt.f32.partialorder %v1945, 0.0
  %vm1962 = vcmp.gt.f32.partialorder %v1946, 0.0
  %vm1963 = vcmp.gt.f32.partialorder %v1947, 0.0
  %vm1964 = vcmp.gt.f32.partialorder %v1948, 0.0
  %vm1965 = vcmp.gt.f32.partialorder %v1949, 0.0
  %vm1966 = vcmp.gt.f32.partialorder %v1950, 0.0
  %vm1967 = vcmp.gt.f32.partialorder %v1951, 0.0
  %vm1968 = vcmp.gt.f32.partialorder %v1952, 0.0
  %vm1969 = vcmp.gt.f32.partialorder %v1953, 0.0
  %vm1970 = vcmp.gt.f32.partialorder %v1954, 0.0
  %vm1971 = vcmp.gt.f32.partialorder %v1955, 0.0
  %vm1972 = vcmp.gt.f32.partialorder %v1956, 0.0
  %vm1973 = vcmp.gt.f32.partialorder %v1957, 0.0
  %vm1974 = vcmp.gt.f32.partialorder %v1958, 0.0
  %v1975 = vsel %vm1959, %v1927, -1e+09
  %v1976 = vsel %vm1960, %v1928, -1e+09
  %v1977 = vsel %vm1961, %v1929, -1e+09
  %v1978 = vsel %vm1962, %v1930, -1e+09
  %v1979 = vsel %vm1963, %v1931, -1e+09
  %v1980 = vsel %vm1964, %v1932, -1e+09
  %v1981 = vsel %vm1965, %v1933, -1e+09
  %v1982 = vsel %vm1966, %v1934, -1e+09
  %v1983 = vsel %vm1967, %v1935, -1e+09
  %v1984 = vsel %vm1968, %v1936, -1e+09
  %v1985 = vsel %vm1969, %v1937, -1e+09
  %v1986 = vsel %vm1970, %v1938, -1e+09
  %v1987 = vsel %vm1971, %v1939, -1e+09
  %v1988 = vsel %vm1972, %v1940, -1e+09
  %v1989 = vsel %vm1973, %v1941, -1e+09
  %v1990 = vsel %vm1974, %v1942, -1e+09
  %1991 = vmax.xlane.f32.xlu0 %v1975
  %v1992 = vpop.xlane.xlu0 %1991
  %1993 = vmax.xlane.f32.xlu0 %v1976
  %v1994 = vpop.xlane.xlu0 %1993
  %1995 = vmax.xlane.f32.xlu0 %v1977
  %v1996 = vpop.xlane.xlu0 %1995
  %1997 = vmax.xlane.f32.xlu0 %v1978
  %v1998 = vpop.xlane.xlu0 %1997
  %1999 = vmax.xlane.f32.xlu0 %v1979
  %v2000 = vpop.xlane.xlu0 %1999
  %2001 = vmax.xlane.f32.xlu0 %v1980
  %v2002 = vpop.xlane.xlu0 %2001
  %2003 = vmax.xlane.f32.xlu0 %v1981
  %v2004 = vpop.xlane.xlu0 %2003
  %2005 = vmax.xlane.f32.xlu0 %v1982
  %v2006 = vpop.xlane.xlu0 %2005
  %2007 = vmax.xlane.f32.xlu0 %v1983
  %v2008 = vpop.xlane.xlu0 %2007
  %2009 = vmax.xlane.f32.xlu0 %v1984
  %v2010 = vpop.xlane.xlu0 %2009
  %2011 = vmax.xlane.f32.xlu0 %v1985
  %v2012 = vpop.xlane.xlu0 %2011
  %2013 = vmax.xlane.f32.xlu0 %v1986
  %v2014 = vpop.xlane.xlu0 %2013
  %2015 = vmax.xlane.f32.xlu0 %v1987
  %v2016 = vpop.xlane.xlu0 %2015
  %2017 = vmax.xlane.f32.xlu0 %v1988
  %v2018 = vpop.xlane.xlu0 %2017
  %2019 = vmax.xlane.f32.xlu0 %v1989
  %v2020 = vpop.xlane.xlu0 %2019
  %2021 = vmax.xlane.f32.xlu0 %v1990
  %v2022 = vpop.xlane.xlu0 %2021
  %v2023 = vsub.f32 %v1975, %v1992
  %v2024 = vsub.f32 %v1976, %v1994
  %v2025 = vsub.f32 %v1977, %v1996
  %v2026 = vsub.f32 %v1978, %v1998
  %v2027 = vsub.f32 %v1979, %v2000
  %v2028 = vsub.f32 %v1980, %v2002
  %v2029 = vsub.f32 %v1981, %v2004
  %v2030 = vsub.f32 %v1982, %v2006
  %v2031 = vsub.f32 %v1983, %v2008
  %v2032 = vsub.f32 %v1984, %v2010
  %v2033 = vsub.f32 %v1985, %v2012
  %v2034 = vsub.f32 %v1986, %v2014
  %v2035 = vsub.f32 %v1987, %v2016
  %v2036 = vsub.f32 %v1988, %v2018
  %v2037 = vsub.f32 %v1989, %v2020
  %v2038 = vsub.f32 %v1990, %v2022
  %v2039 = vmul.f32 %v2023, 1.442695
  %v2040 = vpow.pop %v2039
  %v2041 = vmul.f32 %v2024, 1.442695
  %v2042 = vpow.pop %v2041
  %v2043 = vmul.f32 %v2025, 1.442695
  %v2044 = vpow.pop %v2043
  %v2045 = vmul.f32 %v2026, 1.442695
  %v2046 = vpow.pop %v2045
  %v2047 = vmul.f32 %v2027, 1.442695
  %v2048 = vpow.pop %v2047
  %v2049 = vmul.f32 %v2028, 1.442695
  %v2050 = vpow.pop %v2049
  %v2051 = vmul.f32 %v2029, 1.442695
  %v2052 = vpow.pop %v2051
  %v2053 = vmul.f32 %v2030, 1.442695
  %v2054 = vpow.pop %v2053
  %v2055 = vmul.f32 %v2031, 1.442695
  %v2056 = vpow.pop %v2055
  %v2057 = vmul.f32 %v2032, 1.442695
  %v2058 = vpow.pop %v2057
  %v2059 = vmul.f32 %v2033, 1.442695
  %v2060 = vpow.pop %v2059
  %v2061 = vmul.f32 %v2034, 1.442695
  %v2062 = vpow.pop %v2061
  %v2063 = vmul.f32 %v2035, 1.442695
  %v2064 = vpow.pop %v2063
  %v2065 = vmul.f32 %v2036, 1.442695
  %v2066 = vpow.pop %v2065
  %v2067 = vmul.f32 %v2037, 1.442695
  %v2068 = vpow.pop %v2067
  %v2069 = vmul.f32 %v2038, 1.442695
  %v2070 = vpow.pop %v2069
  %v2071 = vsel %vm1959, %v2040, 0.0
  %v2072 = vsel %vm1960, %v2042, 0.0
  %v2073 = vsel %vm1961, %v2044, 0.0
  %v2074 = vsel %vm1962, %v2046, 0.0
  %v2075 = vsel %vm1963, %v2048, 0.0
  %v2076 = vsel %vm1964, %v2050, 0.0
  %v2077 = vsel %vm1965, %v2052, 0.0
  %v2078 = vsel %vm1966, %v2054, 0.0
  %v2079 = vsel %vm1967, %v2056, 0.0
  %v2080 = vsel %vm1968, %v2058, 0.0
  %v2081 = vsel %vm1969, %v2060, 0.0
  %v2082 = vsel %vm1970, %v2062, 0.0
  %v2083 = vsel %vm1971, %v2064, 0.0
  %v2084 = vsel %vm1972, %v2066, 0.0
  %v2085 = vsel %vm1973, %v2068, 0.0
  %v2086 = vsel %vm1974, %v2070, 0.0
  %2087 = vadd.xlane.f32.xlu0 %v2071
  %v2088 = vpop.xlane.xlu0 %2087
  %2089 = vadd.xlane.f32.xlu0 %v2072
  %v2090 = vpop.xlane.xlu0 %2089
  %2091 = vadd.xlane.f32.xlu0 %v2073
  %v2092 = vpop.xlane.xlu0 %2091
  %2093 = vadd.xlane.f32.xlu0 %v2074
  %v2094 = vpop.xlane.xlu0 %2093
  %2095 = vadd.xlane.f32.xlu0 %v2075
  %v2096 = vpop.xlane.xlu0 %2095
  %2097 = vadd.xlane.f32.xlu0 %v2076
  %v2098 = vpop.xlane.xlu0 %2097
  %2099 = vadd.xlane.f32.xlu0 %v2077
  %v2100 = vpop.xlane.xlu0 %2099
  %2101 = vadd.xlane.f32.xlu0 %v2078
  %v2102 = vpop.xlane.xlu0 %2101
  %2103 = vadd.xlane.f32.xlu0 %v2079
  %v2104 = vpop.xlane.xlu0 %2103
  %2105 = vadd.xlane.f32.xlu0 %v2080
  %v2106 = vpop.xlane.xlu0 %2105
  %2107 = vadd.xlane.f32.xlu0 %v2081
  %v2108 = vpop.xlane.xlu0 %2107
  %2109 = vadd.xlane.f32.xlu0 %v2082
  %v2110 = vpop.xlane.xlu0 %2109
  %2111 = vadd.xlane.f32.xlu0 %v2083
  %v2112 = vpop.xlane.xlu0 %2111
  %2113 = vadd.xlane.f32.xlu0 %v2084
  %v2114 = vpop.xlane.xlu0 %2113
  %2115 = vadd.xlane.f32.xlu0 %v2085
  %v2116 = vpop.xlane.xlu0 %2115
  %2117 = vadd.xlane.f32.xlu0 %v2086
  %v2118 = vpop.xlane.xlu0 %2117
  %v2119 = vmax.f32 %v2088, 1e-09
  %v2120 = vmax.f32 %v2090, 1e-09
  %v2121 = vmax.f32 %v2092, 1e-09
  %v2122 = vmax.f32 %v2094, 1e-09
  %v2123 = vmax.f32 %v2096, 1e-09
  %v2124 = vmax.f32 %v2098, 1e-09
  %v2125 = vmax.f32 %v2100, 1e-09
  %v2126 = vmax.f32 %v2102, 1e-09
  %v2127 = vmax.f32 %v2104, 1e-09
  %v2128 = vmax.f32 %v2106, 1e-09
  %v2129 = vmax.f32 %v2108, 1e-09
  %v2130 = vmax.f32 %v2110, 1e-09
  %v2131 = vmax.f32 %v2112, 1e-09
  %v2132 = vmax.f32 %v2114, 1e-09
  %v2133 = vmax.f32 %v2116, 1e-09
  %v2134 = vmax.f32 %v2118, 1e-09
  %v2135 = vrcp.pop %v2119
  %v2136 = vrcp.pop %v2120
  %v2137 = vrcp.pop %v2121
  %v2138 = vrcp.pop %v2122
  %v2139 = vrcp.pop %v2123
  %v2140 = vrcp.pop %v2124
  %v2141 = vrcp.pop %v2125
  %v2142 = vrcp.pop %v2126
  %v2143 = vrcp.pop %v2127
  %v2144 = vrcp.pop %v2128
  %v2145 = vrcp.pop %v2129
  %v2146 = vrcp.pop %v2130
  %v2147 = vrcp.pop %v2131
  %v2148 = vrcp.pop %v2132
  %v2149 = vrcp.pop %v2133
  %v2150 = vrcp.pop %v2134
  %v2151 = vmul.f32 %v2071, %v2135
  %v2152 = vmul.f32 %v2072, %v2136
  %v2153 = vmul.f32 %v2073, %v2137
  %v2154 = vmul.f32 %v2074, %v2138
  %v2155 = vmul.f32 %v2075, %v2139
  %v2156 = vmul.f32 %v2076, %v2140
  %v2157 = vmul.f32 %v2077, %v2141
  %v2158 = vmul.f32 %v2078, %v2142
  %v2159 = vmul.f32 %v2079, %v2143
  %v2160 = vmul.f32 %v2080, %v2144
  %v2161 = vmul.f32 %v2081, %v2145
  %v2162 = vmul.f32 %v2082, %v2146
  %v2163 = vmul.f32 %v2083, %v2147
  %v2164 = vmul.f32 %v2084, %v2148
  %v2165 = vmul.f32 %v2085, %v2149
  %v2166 = vmul.f32 %v2086, %v2150
  %2167 = vmatpush.msra.mxu0 %v1736
  %2168 = vmatpush.msra.mxu0 %v1733
  %2169 = vmatpush.msra.mxu0 %v1730
  %2170 = vmatpush.msra.mxu0 %v1727
  %2171 = vmatpush.msra.mxu0 %v1724
  %2172 = vmatpush.msra.mxu0 %v1721
  %2173 = vmatpush.msra.mxu0 %v1718
  %2174 = vmatpush.msra.mxu0 %v1715
  %2175 = vmatpush.msra.mxu0 %v1712
  %2176 = vmatpush.msra.mxu0 %v1709
  %2177 = vmatpush.msra.mxu0 %v1706
  %2178 = vmatpush.msra.mxu0 %v1703
  %2179 = vmatpush.msra.mxu0 %v1700
  %2180 = vmatpush.msra.mxu0 %v1697
  %2181 = vmatpush.msra.mxu0 %v1694
  %2182 = vmatpush.msra.mxu0 %v1691
  %2183 = vmatmul.f32.gmra.mxu0 %v2151
  %v2184 = vpop.f32.mrf.mxu0
  %v2185 = vadd.f32 0.0, %v2184
  %2186 = vmatmul.f32.gmra.mxu0 %v2152
  %v2187 = vpop.f32.mrf.mxu0
  %v2188 = vadd.f32 0.0, %v2187
  %2189 = vmatmul.f32.gmra.mxu0 %v2153
  %v2190 = vpop.f32.mrf.mxu0
  %v2191 = vadd.f32 0.0, %v2190
  %2192 = vmatmul.f32.gmra.mxu0 %v2154
  %v2193 = vpop.f32.mrf.mxu0
  %v2194 = vadd.f32 0.0, %v2193
  %2195 = vmatmul.f32.gmra.mxu0 %v2155
  %v2196 = vpop.f32.mrf.mxu0
  %v2197 = vadd.f32 0.0, %v2196
  %2198 = vmatmul.f32.gmra.mxu0 %v2156
  %v2199 = vpop.f32.mrf.mxu0
  %v2200 = vadd.f32 0.0, %v2199
  %2201 = vmatmul.f32.gmra.mxu0 %v2157
  %v2202 = vpop.f32.mrf.mxu0
  %v2203 = vadd.f32 0.0, %v2202
  %2204 = vmatmul.f32.gmra.mxu0 %v2158
  %v2205 = vpop.f32.mrf.mxu0
  %v2206 = vadd.f32 0.0, %v2205
  %2207 = vmatmul.f32.gmra.mxu0 %v2159
  %v2208 = vpop.f32.mrf.mxu0
  %v2209 = vadd.f32 0.0, %v2208
  %2210 = vmatmul.f32.gmra.mxu0 %v2160
  %v2211 = vpop.f32.mrf.mxu0
  %v2212 = vadd.f32 0.0, %v2211
  %2213 = vmatmul.f32.gmra.mxu0 %v2161
  %v2214 = vpop.f32.mrf.mxu0
  %v2215 = vadd.f32 0.0, %v2214
  %2216 = vmatmul.f32.gmra.mxu0 %v2162
  %v2217 = vpop.f32.mrf.mxu0
  %v2218 = vadd.f32 0.0, %v2217
  %2219 = vmatmul.f32.gmra.mxu0 %v2163
  %v2220 = vpop.f32.mrf.mxu0
  %v2221 = vadd.f32 0.0, %v2220
  %2222 = vmatmul.f32.gmra.mxu0 %v2164
  %v2223 = vpop.f32.mrf.mxu0
  %v2224 = vadd.f32 0.0, %v2223
  %2225 = vmatmul.f32.gmra.mxu0 %v2165
  %v2226 = vpop.f32.mrf.mxu0
  %v2227 = vadd.f32 0.0, %v2226
  %2228 = vmatmul.f32.gmra.mxu0 %v2166
  %v2229 = vpop.f32.mrf.mxu0
  %v2230 = vadd.f32 0.0, %v2229
  %2231 = vdwg.mxu0
  %v2232 = vmax.f32 %v2185, 0.0
  %v2233 = vmax.f32 %v2188, 0.0
  %v2234 = vmax.f32 %v2191, 0.0
  %v2235 = vmax.f32 %v2194, 0.0
  %v2236 = vmax.f32 %v2197, 0.0
  %v2237 = vmax.f32 %v2200, 0.0
  %v2238 = vmax.f32 %v2203, 0.0
  %v2239 = vmax.f32 %v2206, 0.0
  %v2240 = vmax.f32 %v2209, 0.0
  %v2241 = vmax.f32 %v2212, 0.0
  %v2242 = vmax.f32 %v2215, 0.0
  %v2243 = vmax.f32 %v2218, 0.0
  %v2244 = vmax.f32 %v2221, 0.0
  %v2245 = vmax.f32 %v2224, 0.0
  %v2246 = vmax.f32 %v2227, 0.0
  %v2247 = vmax.f32 %v2230, 0.0
  %v2248 = vld [vmem:[%s12] sm:$0xff]
  %v2249 = vld [vmem:[%s12 + $0x8] sm:$0xff]
  %s2250 = scalar_lea.vmem %s12, 16
  %v2251 = vld [vmem:[%s2250] sm:$0xff]
  %v2252 = vld [vmem:[%s2250 + $0x8] sm:$0xff]
  %v2254 = vsel %vm391, %v2232, 0
  %v2257 = vsel %vm391, %v2233, 0
  %v2260 = vsel %vm391, %v2234, 0
  %v2263 = vsel %vm391, %v2235, 0
  %v2266 = vsel %vm391, %v2236, 0
  %v2269 = vsel %vm391, %v2237, 0
  %v2272 = vsel %vm391, %v2238, 0
  %v2275 = vsel %vm391, %v2239, 0
  %v2278 = vsel %vm391, %v2240, 0
  %v2281 = vsel %vm391, %v2241, 0
  %v2284 = vsel %vm391, %v2242, 0
  %v2287 = vsel %vm391, %v2243, 0
  %v2290 = vsel %vm391, %v2244, 0
  %v2293 = vsel %vm391, %v2245, 0
  %v2296 = vsel %vm391, %v2246, 0
  %v2299 = vsel %vm391, %v2247, 0
  %2301 = vmatpush.msra.mxu0 0.0
  %2302 = vmatpush.msra.mxu0 0.0
  %2303 = vmatpush.msra.mxu0 0.0
  %2304 = vmatpush.msra.mxu0 0.0
  %2305 = vmatpush.msra.mxu0 0.0
  %2306 = vmatpush.msra.mxu0 0.0
  %2307 = vmatpush.msra.mxu0 0.0
  %2308 = vmatpush.msra.mxu0 0.0
  %2309 = vmatpush.msra.mxu0 0.0
  %2310 = vmatpush.msra.mxu0 0.0
  %2311 = vmatpush.msra.mxu0 0.0
  %2312 = vmatpush.msra.mxu0 0.0
  %2313 = vmatpush.msra.mxu0 0.0
  %2314 = vmatpush.msra.mxu0 0.0
  %2315 = vmatpush.msra.mxu0 %v2252
  %2316 = vmatpush.msra.mxu0 %v2251
  %2317 = vmatmul.f32.gmra.mxu0 %v2254
  %v2318 = vpop.f32.mrf.mxu0
  %v2319 = vadd.f32 0.0, %v2318
  %2320 = vmatmul.f32.gmra.mxu0 %v2257
  %v2321 = vpop.f32.mrf.mxu0
  %v2322 = vadd.f32 0.0, %v2321
  %2323 = vmatmul.f32.gmra.mxu0 %v2260
  %v2324 = vpop.f32.mrf.mxu0
  %v2325 = vadd.f32 0.0, %v2324
  %2326 = vmatmul.f32.gmra.mxu0 %v2263
  %v2327 = vpop.f32.mrf.mxu0
  %v2328 = vadd.f32 0.0, %v2327
  %2329 = vmatmul.f32.gmra.mxu0 %v2266
  %v2330 = vpop.f32.mrf.mxu0
  %v2331 = vadd.f32 0.0, %v2330
  %2332 = vmatmul.f32.gmra.mxu0 %v2269
  %v2333 = vpop.f32.mrf.mxu0
  %v2334 = vadd.f32 0.0, %v2333
  %2335 = vmatmul.f32.gmra.mxu0 %v2272
  %v2336 = vpop.f32.mrf.mxu0
  %v2337 = vadd.f32 0.0, %v2336
  %2338 = vmatmul.f32.gmra.mxu0 %v2275
  %v2339 = vpop.f32.mrf.mxu0
  %v2340 = vadd.f32 0.0, %v2339
  %2341 = vmatmul.f32.gmra.mxu0 %v2278
  %v2342 = vpop.f32.mrf.mxu0
  %v2343 = vadd.f32 0.0, %v2342
  %2344 = vmatmul.f32.gmra.mxu0 %v2281
  %v2345 = vpop.f32.mrf.mxu0
  %v2346 = vadd.f32 0.0, %v2345
  %2347 = vmatmul.f32.gmra.mxu0 %v2284
  %v2348 = vpop.f32.mrf.mxu0
  %v2349 = vadd.f32 0.0, %v2348
  %2350 = vmatmul.f32.gmra.mxu0 %v2287
  %v2351 = vpop.f32.mrf.mxu0
  %v2352 = vadd.f32 0.0, %v2351
  %2353 = vmatmul.f32.gmra.mxu0 %v2290
  %v2354 = vpop.f32.mrf.mxu0
  %v2355 = vadd.f32 0.0, %v2354
  %2356 = vmatmul.f32.gmra.mxu0 %v2293
  %v2357 = vpop.f32.mrf.mxu0
  %v2358 = vadd.f32 0.0, %v2357
  %2359 = vmatmul.f32.gmra.mxu0 %v2296
  %v2360 = vpop.f32.mrf.mxu0
  %v2361 = vadd.f32 0.0, %v2360
  %2362 = vmatmul.f32.gmra.mxu0 %v2299
  %v2363 = vpop.f32.mrf.mxu0
  %v2364 = vadd.f32 0.0, %v2363
  %2365 = vdwg.mxu0
  %v2366 = vsel %vm391, 0.0, 0
  %2368 = vmatpush.msra.mxu0 0.0
  %2369 = vmatpush.msra.mxu0 0.0
  %2370 = vmatpush.msra.mxu0 0.0
  %2371 = vmatpush.msra.mxu0 0.0
  %2372 = vmatpush.msra.mxu0 0.0
  %2373 = vmatpush.msra.mxu0 0.0
  %2374 = vmatpush.msra.mxu0 0.0
  %2375 = vmatpush.msra.mxu0 0.0
  %2376 = vmatpush.msra.mxu0 0.0
  %2377 = vmatpush.msra.mxu0 0.0
  %2378 = vmatpush.msra.mxu0 0.0
  %2379 = vmatpush.msra.mxu0 0.0
  %2380 = vmatpush.msra.mxu0 0.0
  %2381 = vmatpush.msra.mxu0 0.0
  %2382 = vmatpush.msra.mxu0 %v2249
  %2383 = vmatpush.msra.mxu0 %v2248
  %2384 = vmatmul.f32.gmra.mxu0 %v2366
  %v2385 = vpop.f32.mrf.mxu0
  %v2386 = vadd.f32 %v2319, %v2385
  %2387 = vmatmul.f32.gmra.mxu0 %v2366
  %v2388 = vpop.f32.mrf.mxu0
  %v2389 = vadd.f32 %v2322, %v2388
  %2390 = vmatmul.f32.gmra.mxu0 %v2254
  %v2391 = vpop.f32.mrf.mxu0
  %v2392 = vadd.f32 %v2325, %v2391
  %2393 = vmatmul.f32.gmra.mxu0 %v2257
  %v2394 = vpop.f32.mrf.mxu0
  %v2395 = vadd.f32 %v2328, %v2394
  %2396 = vmatmul.f32.gmra.mxu0 %v2260
  %v2397 = vpop.f32.mrf.mxu0
  %v2398 = vadd.f32 %v2331, %v2397
  %2399 = vmatmul.f32.gmra.mxu0 %v2263
  %v2400 = vpop.f32.mrf.mxu0
  %v2401 = vadd.f32 %v2334, %v2400
  %2402 = vmatmul.f32.gmra.mxu0 %v2266
  %v2403 = vpop.f32.mrf.mxu0
  %v2404 = vadd.f32 %v2337, %v2403
  %2405 = vmatmul.f32.gmra.mxu0 %v2269
  %v2406 = vpop.f32.mrf.mxu0
  %v2407 = vadd.f32 %v2340, %v2406
  %2408 = vmatmul.f32.gmra.mxu0 %v2272
  %v2409 = vpop.f32.mrf.mxu0
  %v2410 = vadd.f32 %v2343, %v2409
  %2411 = vmatmul.f32.gmra.mxu0 %v2275
  %v2412 = vpop.f32.mrf.mxu0
  %v2413 = vadd.f32 %v2346, %v2412
  %2414 = vmatmul.f32.gmra.mxu0 %v2278
  %v2415 = vpop.f32.mrf.mxu0
  %v2416 = vadd.f32 %v2349, %v2415
  %2417 = vmatmul.f32.gmra.mxu0 %v2281
  %v2418 = vpop.f32.mrf.mxu0
  %v2419 = vadd.f32 %v2352, %v2418
  %2420 = vmatmul.f32.gmra.mxu0 %v2284
  %v2421 = vpop.f32.mrf.mxu0
  %v2422 = vadd.f32 %v2355, %v2421
  %2423 = vmatmul.f32.gmra.mxu0 %v2287
  %v2424 = vpop.f32.mrf.mxu0
  %v2425 = vadd.f32 %v2358, %v2424
  %2426 = vmatmul.f32.gmra.mxu0 %v2290
  %v2427 = vpop.f32.mrf.mxu0
  %v2428 = vadd.f32 %v2361, %v2427
  %2429 = vmatmul.f32.gmra.mxu0 %v2293
  %v2430 = vpop.f32.mrf.mxu0
  %v2431 = vadd.f32 %v2364, %v2430
  %2432 = vdwg.mxu0
  %s2433 = scalar_lea.vmem %s12, 32
  %v2434 = vld [vmem:[%s2433] sm:$0xff]
  %v2435 = vld [vmem:[%s2433 + $0x8] sm:$0xff]
  %2436 = vmatpush.msra.mxu0 0.0
  %2437 = vmatpush.msra.mxu0 0.0
  %2438 = vmatpush.msra.mxu0 0.0
  %2439 = vmatpush.msra.mxu0 0.0
  %2440 = vmatpush.msra.mxu0 0.0
  %2441 = vmatpush.msra.mxu0 0.0
  %2442 = vmatpush.msra.mxu0 0.0
  %2443 = vmatpush.msra.mxu0 0.0
  %2444 = vmatpush.msra.mxu0 0.0
  %2445 = vmatpush.msra.mxu0 0.0
  %2446 = vmatpush.msra.mxu0 0.0
  %2447 = vmatpush.msra.mxu0 0.0
  %2448 = vmatpush.msra.mxu0 0.0
  %2449 = vmatpush.msra.mxu0 0.0
  %2450 = vmatpush.msra.mxu0 %v2435
  %2451 = vmatpush.msra.mxu0 %v2434
  %2452 = vmatmul.f32.gmra.mxu0 %v2260
  %v2453 = vpop.f32.mrf.mxu0
  %v2454 = vadd.f32 0.0, %v2453
  %2455 = vmatmul.f32.gmra.mxu0 %v2263
  %v2456 = vpop.f32.mrf.mxu0
  %v2457 = vadd.f32 0.0, %v2456
  %2458 = vmatmul.f32.gmra.mxu0 %v2266
  %v2459 = vpop.f32.mrf.mxu0
  %v2460 = vadd.f32 0.0, %v2459
  %2461 = vmatmul.f32.gmra.mxu0 %v2269
  %v2462 = vpop.f32.mrf.mxu0
  %v2463 = vadd.f32 0.0, %v2462
  %2464 = vmatmul.f32.gmra.mxu0 %v2272
  %v2465 = vpop.f32.mrf.mxu0
  %v2466 = vadd.f32 0.0, %v2465
  %2467 = vmatmul.f32.gmra.mxu0 %v2275
  %v2468 = vpop.f32.mrf.mxu0
  %v2469 = vadd.f32 0.0, %v2468
  %2470 = vmatmul.f32.gmra.mxu0 %v2278
  %v2471 = vpop.f32.mrf.mxu0
  %v2472 = vadd.f32 0.0, %v2471
  %2473 = vmatmul.f32.gmra.mxu0 %v2281
  %v2474 = vpop.f32.mrf.mxu0
  %v2475 = vadd.f32 0.0, %v2474
  %2476 = vmatmul.f32.gmra.mxu0 %v2284
  %v2477 = vpop.f32.mrf.mxu0
  %v2478 = vadd.f32 0.0, %v2477
  %2479 = vmatmul.f32.gmra.mxu0 %v2287
  %v2480 = vpop.f32.mrf.mxu0
  %v2481 = vadd.f32 0.0, %v2480
  %2482 = vmatmul.f32.gmra.mxu0 %v2290
  %v2483 = vpop.f32.mrf.mxu0
  %v2484 = vadd.f32 0.0, %v2483
  %2485 = vmatmul.f32.gmra.mxu0 %v2293
  %v2486 = vpop.f32.mrf.mxu0
  %v2487 = vadd.f32 0.0, %v2486
  %2488 = vmatmul.f32.gmra.mxu0 %v2296
  %v2489 = vpop.f32.mrf.mxu0
  %v2490 = vadd.f32 0.0, %v2489
  %2491 = vmatmul.f32.gmra.mxu0 %v2299
  %v2492 = vpop.f32.mrf.mxu0
  %v2493 = vadd.f32 0.0, %v2492
  %2494 = vmatmul.f32.gmra.mxu0 %v2366
  %v2495 = vpop.f32.mrf.mxu0
  %v2496 = vadd.f32 0.0, %v2495
  %2497 = vmatmul.f32.gmra.mxu0 %v2366
  %v2498 = vpop.f32.mrf.mxu0
  %v2499 = vadd.f32 0.0, %v2498
  %2500 = vdwg.mxu0
  %v2501 = vadd.f32 %v2386, %v2454
  %v2502 = vadd.f32 %v2389, %v2457
  %v2503 = vadd.f32 %v2392, %v2460
  %v2504 = vadd.f32 %v2395, %v2463
  %v2505 = vadd.f32 %v2398, %v2466
  %v2506 = vadd.f32 %v2401, %v2469
  %v2507 = vadd.f32 %v2404, %v2472
  %v2508 = vadd.f32 %v2407, %v2475
  %v2509 = vadd.f32 %v2410, %v2478
  %v2510 = vadd.f32 %v2413, %v2481
  %v2511 = vadd.f32 %v2416, %v2484
  %v2512 = vadd.f32 %v2419, %v2487
  %v2513 = vadd.f32 %v2422, %v2490
  %v2514 = vadd.f32 %v2425, %v2493
  %v2515 = vadd.f32 %v2428, %v2496
  %v2516 = vadd.f32 %v2431, %v2499
  %v2517 = vld [vmem:[%s13] sm:$0x1]
  %v2519 = vperm.slane %v2517, 0
  %v2521 = vadd.f32 %v2501, %v2519
  %v2522 = vadd.f32 %v2502, %v2519
  %v2523 = vadd.f32 %v2503, %v2519
  %v2524 = vadd.f32 %v2504, %v2519
  %v2525 = vadd.f32 %v2505, %v2519
  %v2526 = vadd.f32 %v2506, %v2519
  %v2527 = vadd.f32 %v2507, %v2519
  %v2528 = vadd.f32 %v2508, %v2519
  %v2529 = vadd.f32 %v2509, %v2519
  %v2530 = vadd.f32 %v2510, %v2519
  %v2531 = vadd.f32 %v2511, %v2519
  %v2532 = vadd.f32 %v2512, %v2519
  %v2533 = vadd.f32 %v2513, %v2519
  %v2534 = vadd.f32 %v2514, %v2519
  %v2535 = vadd.f32 %v2515, %v2519
  %v2536 = vadd.f32 %v2516, %v2519
  %v2537 = vmax.f32 %v2521, 0.0
  %v2538 = vmax.f32 %v2522, 0.0
  %v2539 = vmax.f32 %v2523, 0.0
  %v2540 = vmax.f32 %v2524, 0.0
  %v2541 = vmax.f32 %v2525, 0.0
  %v2542 = vmax.f32 %v2526, 0.0
  %v2543 = vmax.f32 %v2527, 0.0
  %v2544 = vmax.f32 %v2528, 0.0
  %v2545 = vmax.f32 %v2529, 0.0
  %v2546 = vmax.f32 %v2530, 0.0
  %v2547 = vmax.f32 %v2531, 0.0
  %v2548 = vmax.f32 %v2532, 0.0
  %v2549 = vmax.f32 %v2533, 0.0
  %v2550 = vmax.f32 %v2534, 0.0
  %v2551 = vmax.f32 %v2535, 0.0
  %v2552 = vmax.f32 %v2536, 0.0
  %v2553 = vld [vmem:[%s14] sm:$0xff]
  %v2554 = vld [vmem:[%s14 + $0x8] sm:$0xff]
  %v2555 = vld [vmem:[%s15] sm:$0x1]
  %v2557 = vperm.slane %v2555, 0
  %v2560 = vsel %vm391, %v2537, 0
  %v2563 = vsel %vm391, %v2538, 0
  %v2566 = vsel %vm391, %v2539, 0
  %v2569 = vsel %vm391, %v2540, 0
  %v2572 = vsel %vm391, %v2541, 0
  %v2575 = vsel %vm391, %v2542, 0
  %v2578 = vsel %vm391, %v2543, 0
  %v2581 = vsel %vm391, %v2544, 0
  %v2584 = vsel %vm391, %v2545, 0
  %v2587 = vsel %vm391, %v2546, 0
  %v2590 = vsel %vm391, %v2547, 0
  %v2593 = vsel %vm391, %v2548, 0
  %v2596 = vsel %vm391, %v2549, 0
  %v2599 = vsel %vm391, %v2550, 0
  %v2602 = vsel %vm391, %v2551, 0
  %v2605 = vsel %vm391, %v2552, 0
  %2607 = vmatpush.msra.mxu0 0.0
  %2608 = vmatpush.msra.mxu0 0.0
  %2609 = vmatpush.msra.mxu0 0.0
  %2610 = vmatpush.msra.mxu0 0.0
  %2611 = vmatpush.msra.mxu0 0.0
  %2612 = vmatpush.msra.mxu0 0.0
  %2613 = vmatpush.msra.mxu0 0.0
  %2614 = vmatpush.msra.mxu0 0.0
  %2615 = vmatpush.msra.mxu0 0.0
  %2616 = vmatpush.msra.mxu0 0.0
  %2617 = vmatpush.msra.mxu0 0.0
  %2618 = vmatpush.msra.mxu0 0.0
  %2619 = vmatpush.msra.mxu0 0.0
  %2620 = vmatpush.msra.mxu0 0.0
  %2621 = vmatpush.msra.mxu0 %v2554
  %2622 = vmatpush.msra.mxu0 %v2553
  %2623 = vmatmul.f32.gmra.mxu0 %v2560
  %v2624 = vpop.f32.mrf.mxu0
  %v2625 = vadd.f32 %v2557, %v2624
  %2626 = vmatmul.f32.gmra.mxu0 %v2563
  %v2627 = vpop.f32.mrf.mxu0
  %v2628 = vadd.f32 %v2557, %v2627
  %2629 = vmatmul.f32.gmra.mxu0 %v2566
  %v2630 = vpop.f32.mrf.mxu0
  %v2631 = vadd.f32 %v2557, %v2630
  %2632 = vmatmul.f32.gmra.mxu0 %v2569
  %v2633 = vpop.f32.mrf.mxu0
  %v2634 = vadd.f32 %v2557, %v2633
  %2635 = vmatmul.f32.gmra.mxu0 %v2572
  %v2636 = vpop.f32.mrf.mxu0
  %v2637 = vadd.f32 %v2557, %v2636
  %2638 = vmatmul.f32.gmra.mxu0 %v2575
  %v2639 = vpop.f32.mrf.mxu0
  %v2640 = vadd.f32 %v2557, %v2639
  %2641 = vmatmul.f32.gmra.mxu0 %v2578
  %v2642 = vpop.f32.mrf.mxu0
  %v2643 = vadd.f32 %v2557, %v2642
  %2644 = vmatmul.f32.gmra.mxu0 %v2581
  %v2645 = vpop.f32.mrf.mxu0
  %v2646 = vadd.f32 %v2557, %v2645
  %2647 = vmatmul.f32.gmra.mxu0 %v2584
  %v2648 = vpop.f32.mrf.mxu0
  %v2649 = vadd.f32 %v2557, %v2648
  %2650 = vmatmul.f32.gmra.mxu0 %v2587
  %v2651 = vpop.f32.mrf.mxu0
  %v2652 = vadd.f32 %v2557, %v2651
  %2653 = vmatmul.f32.gmra.mxu0 %v2590
  %v2654 = vpop.f32.mrf.mxu0
  %v2655 = vadd.f32 %v2557, %v2654
  %2656 = vmatmul.f32.gmra.mxu0 %v2593
  %v2657 = vpop.f32.mrf.mxu0
  %v2658 = vadd.f32 %v2557, %v2657
  %2659 = vmatmul.f32.gmra.mxu0 %v2596
  %v2660 = vpop.f32.mrf.mxu0
  %v2661 = vadd.f32 %v2557, %v2660
  %2662 = vmatmul.f32.gmra.mxu0 %v2599
  %v2663 = vpop.f32.mrf.mxu0
  %v2664 = vadd.f32 %v2557, %v2663
  %2665 = vmatmul.f32.gmra.mxu0 %v2602
  %v2666 = vpop.f32.mrf.mxu0
  %v2667 = vadd.f32 %v2557, %v2666
  %2668 = vmatmul.f32.gmra.mxu0 %v2605
  %v2669 = vpop.f32.mrf.mxu0
  %v2670 = vadd.f32 %v2557, %v2669
  %2671 = vdwg.mxu0
  %2672 = vst.msk [vmem:[#allocation2] sm:$0xff] %vm505, %v2625
  %2673 = vst.msk [vmem:[#allocation2 + $0x8] sm:$0xff] %vm505, %v2628
  %2674 = vst.msk [vmem:[#allocation2 + $0x10] sm:$0xff] %vm505, %v2631
  %2675 = vst.msk [vmem:[#allocation2 + $0x18] sm:$0xff] %vm505, %v2634
  %2676 = vst.msk [vmem:[#allocation2 + $0x20] sm:$0xff] %vm505, %v2637
  %2677 = vst.msk [vmem:[#allocation2 + $0x28] sm:$0xff] %vm505, %v2640
  %2678 = vst.msk [vmem:[#allocation2 + $0x30] sm:$0xff] %vm505, %v2643
  %2679 = vst.msk [vmem:[#allocation2 + $0x38] sm:$0xff] %vm505, %v2646
  %2680 = vst.msk [vmem:[#allocation2 + $0x40] sm:$0xff] %vm505, %v2649
  %2681 = vst.msk [vmem:[#allocation2 + $0x48] sm:$0xff] %vm505, %v2652
  %2682 = vst.msk [vmem:[#allocation2 + $0x50] sm:$0xff] %vm505, %v2655
  %2683 = vst.msk [vmem:[#allocation2 + $0x58] sm:$0xff] %vm505, %v2658
  %2684 = vst.msk [vmem:[#allocation2 + $0x60] sm:$0xff] %vm505, %v2661
  %2685 = vst.msk [vmem:[#allocation2 + $0x68] sm:$0xff] %vm505, %v2664
  %2686 = vst.msk [vmem:[#allocation2 + $0x70] sm:$0xff] %vm505, %v2667
  %2687 = vst.msk [vmem:[#allocation2 + $0x78] sm:$0xff] %vm505, %v2670
  %v2688 = vld [vmem:[%s16] sm:$0xff]
  %v2689 = vld [vmem:[%s16 + $0x8] sm:$0xff]
  %v2690 = vld [vmem:[%s16 + $0x10] sm:$0xff]
  %v2691 = vld [vmem:[%s16 + $0x18] sm:$0xff]
  %v2692 = vld [vmem:[%s17] sm:$0x1]
  %v2693 = vld [vmem:[#allocation2] sm:$0xff]
  %v2694 = vld [vmem:[#allocation2 + $0x8] sm:$0xff]
  %v2696 = vperm.slane %v2692, 0
  %2698 = vmatpush.msra.mxu0 0.0
  %2699 = vmatpush.msra.mxu0 0.0
  %2700 = vmatpush.msra.mxu0 0.0
  %2701 = vmatpush.msra.mxu0 0.0
  %2702 = vmatpush.msra.mxu0 0.0
  %2703 = vmatpush.msra.mxu0 0.0
  %2704 = vmatpush.msra.mxu0 0.0
  %2705 = vmatpush.msra.mxu0 0.0
  %2706 = vmatpush.msra.mxu0 0.0
  %2707 = vmatpush.msra.mxu0 0.0
  %2708 = vmatpush.msra.mxu0 0.0
  %2709 = vmatpush.msra.mxu0 0.0
  %2710 = vmatpush.msra.mxu0 %v2691
  %2711 = vmatpush.msra.mxu0 %v2690
  %2712 = vmatpush.msra.mxu0 %v2689
  %2713 = vmatpush.msra.mxu0 %v2688
  %2714 = vmatmul.f32.gmra.mxu0 %v533
  %v2715 = vpop.f32.mrf.mxu0
  %v2716 = vadd.f32 %v2696, %v2715
  %2717 = vmatmul.f32.gmra.mxu0 %v533
  %v2718 = vpop.f32.mrf.mxu0
  %v2719 = vadd.f32 %v2696, %v2718
  %2720 = vdwg.mxu0
  %v2721 = vadd.f32 %v2693, %v2716
  %v2722 = vadd.f32 %v2694, %v2719
  %v2723 = vxor.u32 %v2721, 2147483648
  %v2724 = vxor.u32 %v2722, 2147483648
  %v2725 = vmul.f32 %v2723, 1.442695
  %v2726 = vpow.pop %v2725
  %v2727 = vmul.f32 %v2724, 1.442695
  %v2728 = vpow.pop %v2727
  %v2729 = vadd.f32 %v2726, 1.0
  %v2730 = vadd.f32 %v2728, 1.0
  %v2731 = vrcp.pop %v2729
  %v2732 = vmul.f32 %v2729, %v2731
  %v2733 = vsub.f32 1.0, %v2732
  %v2734 = vmul.f32 %v2731, %v2733
  %v2735 = vadd.f32 %v2731, %v2734
  %vm2736 = vweird.f32 %v2729
  %vm2737 = vweird.f32 %v2731
  %vm2738 = vmor %vm2736, %vm2737
  %v2739 = vsel %vm2738, %v2731, %v2735
  %v2740 = vand.u32 2147483647, %v2729
  %vm2741 = vcmp.eq.f32.partialorder %v2740, 8.507059e+37
  %v2742 = vand.u32 %v2729, 2147483648
  %v2743 = vor.u32 1.1754944e-38, %v2742
  %v2744 = vsel %vm2741, %v2743, %v2739
  %v2745 = vmul.f32 1.0, %v2744
  %v2746 = vrcp.pop %v2730
  %v2747 = vmul.f32 %v2730, %v2746
  %v2748 = vsub.f32 1.0, %v2747
  %v2749 = vmul.f32 %v2746, %v2748
  %v2750 = vadd.f32 %v2746, %v2749
  %vm2751 = vweird.f32 %v2730
  %vm2752 = vweird.f32 %v2746
  %vm2753 = vmor %vm2751, %vm2752
  %v2754 = vsel %vm2753, %v2746, %v2750
  %v2755 = vand.u32 2147483647, %v2730
  %vm2756 = vcmp.eq.f32.partialorder %v2755, 8.507059e+37
  %v2757 = vand.u32 %v2730, 2147483648
  %v2758 = vor.u32 1.1754944e-38, %v2757
  %v2759 = vsel %vm2756, %v2758, %v2754
  %v2760 = vmul.f32 1.0, %v2759
  %2763 = vrot.lane.b32.xlu0 %v2716, 64
  %v2764 = vpop.permute.xlu0 %2763
  %2765 = vrot.lane.b32.xlu0 %v2719, 64
  %v2766 = vpop.permute.xlu0 %2765
  %v2769 = vmul.f32 %v2745, %v2764
  %v2770 = vmul.f32 %v2760, %v2766
  %2773 = vrot.lane.b32.xlu0 %v2769, 64
  %v2774 = vpop.permute.xlu0 %2773
  %2775 = vrot.lane.b32.xlu0 %v2770, 64
  %v2776 = vpop.permute.xlu0 %2775
  %v2779 = vadd.f32 %v2693, %v2774
  %v2780 = vadd.f32 %v2694, %v2776
  %v2781 = vtanh.pop %v2779
  %v2782 = vtanh.pop %v2780
  %v2783 = vsub.f32 1.0, %v2745
  %v2784 = vsub.f32 1.0, %v2760
  %2787 = vrot.lane.b32.xlu0 %v2781, 96
  %v2788 = vpop.permute.xlu0 %2787
  %2789 = vrot.lane.b32.xlu0 %v2782, 96
  %v2790 = vpop.permute.xlu0 %2789
  %v2793 = vmul.f32 %v2783, %v2788
  %v2794 = vmul.f32 %v2784, %v2790
  %v2795 = vmul.f32 %v2745, 0.0
  %v2796 = vmul.f32 %v2760, 0.0
  %v2797 = vadd.f32 %v2793, %v2795
  %v2798 = vadd.f32 %v2794, %v2796
  %2801 = vrot.lane.b32.xlu0 %v2797, 112
  %v2802 = vpop.permute.xlu0 %2801
  %2803 = vrot.lane.b32.xlu0 %v2798, 112
  %v2804 = vpop.permute.xlu0 %2803
  %v2807 = vadd.f32 %v2797, %v2802
  %v2808 = vadd.f32 %v2798, %v2804
  %v2809 = vmul.f32 %v2807, 0.5
  %v2810 = vmul.f32 %v2808, 0.5
  %v2811 = vld [vmem:[#allocation3] sm:$0xff]
  %v2812 = vld [vmem:[#allocation3 + $0x8] sm:$0xff]
  %2815 = vrot.lane.b32.xlu0 %v2809, 96
  %v2816 = vpop.permute.xlu0 %2815
  %2817 = vrot.lane.b32.xlu0 %v2810, 96
  %v2818 = vpop.permute.xlu0 %2817
  %v2821 = vadd.f32 %v2811, %v2816
  %v2822 = vadd.f32 %v2812, %v2818
  %v2823 = vld [vmem:[%s658] sm:$0xff]
  %v2824 = vld [vmem:[%s658 + $0x8] sm:$0xff]
  %2825 = vrot.lane.b32.xlu0 %v2797, 96
  %v2826 = vpop.permute.xlu0 %2825
  %2827 = vrot.lane.b32.xlu0 %v2798, 96
  %v2828 = vpop.permute.xlu0 %2827
  %v2829 = vsel %vm532, %v2826, 0
  %v2831 = vsel %vm532, %v2828, 0
  %2833 = vmatpush.msra.mxu0 0.0
  %2834 = vmatpush.msra.mxu0 0.0
  %2835 = vmatpush.msra.mxu0 0.0
  %2836 = vmatpush.msra.mxu0 0.0
  %2837 = vmatpush.msra.mxu0 0.0
  %2838 = vmatpush.msra.mxu0 0.0
  %2839 = vmatpush.msra.mxu0 0.0
  %2840 = vmatpush.msra.mxu0 0.0
  %2841 = vmatpush.msra.mxu0 0.0
  %2842 = vmatpush.msra.mxu0 0.0
  %2843 = vmatpush.msra.mxu0 0.0
  %2844 = vmatpush.msra.mxu0 0.0
  %2845 = vmatpush.msra.mxu0 %v2691
  %2846 = vmatpush.msra.mxu0 %v2690
  %2847 = vmatpush.msra.mxu0 %v2689
  %2848 = vmatpush.msra.mxu0 %v2688
  %2849 = vmatmul.f32.gmra.mxu0 %v2829
  %v2850 = vpop.f32.mrf.mxu0
  %v2851 = vadd.f32 %v2696, %v2850
  %2852 = vmatmul.f32.gmra.mxu0 %v2831
  %v2853 = vpop.f32.mrf.mxu0
  %v2854 = vadd.f32 %v2696, %v2853
  %2855 = vdwg.mxu0
  %v2856 = vadd.f32 %v2823, %v2851
  %v2857 = vadd.f32 %v2824, %v2854
  %v2858 = vxor.u32 %v2856, 2147483648
  %v2859 = vxor.u32 %v2857, 2147483648
  %v2860 = vmul.f32 %v2858, 1.442695
  %v2861 = vpow.pop %v2860
  %v2862 = vmul.f32 %v2859, 1.442695
  %v2863 = vpow.pop %v2862
  %v2864 = vadd.f32 %v2861, 1.0
  %v2865 = vadd.f32 %v2863, 1.0
  %v2866 = vrcp.pop %v2864
  %v2867 = vmul.f32 %v2864, %v2866
  %v2868 = vsub.f32 1.0, %v2867
  %v2869 = vmul.f32 %v2866, %v2868
  %v2870 = vadd.f32 %v2866, %v2869
  %vm2871 = vweird.f32 %v2864
  %vm2872 = vweird.f32 %v2866
  %vm2873 = vmor %vm2871, %vm2872
  %v2874 = vsel %vm2873, %v2866, %v2870
  %v2875 = vand.u32 2147483647, %v2864
  %vm2876 = vcmp.eq.f32.partialorder %v2875, 8.507059e+37
  %v2877 = vand.u32 %v2864, 2147483648
  %v2878 = vor.u32 1.1754944e-38, %v2877
  %v2879 = vsel %vm2876, %v2878, %v2874
  %v2880 = vmul.f32 1.0, %v2879
  %v2881 = vrcp.pop %v2865
  %v2882 = vmul.f32 %v2865, %v2881
  %v2883 = vsub.f32 1.0, %v2882
  %v2884 = vmul.f32 %v2881, %v2883
  %v2885 = vadd.f32 %v2881, %v2884
  %vm2886 = vweird.f32 %v2865
  %vm2887 = vweird.f32 %v2881
  %vm2888 = vmor %vm2886, %vm2887
  %v2889 = vsel %vm2888, %v2881, %v2885
  %v2890 = vand.u32 2147483647, %v2865
  %vm2891 = vcmp.eq.f32.partialorder %v2890, 8.507059e+37
  %v2892 = vand.u32 %v2865, 2147483648
  %v2893 = vor.u32 1.1754944e-38, %v2892
  %v2894 = vsel %vm2891, %v2893, %v2889
  %v2895 = vmul.f32 1.0, %v2894
  %2898 = vrot.lane.b32.xlu0 %v2851, 64
  %v2899 = vpop.permute.xlu0 %2898
  %2900 = vrot.lane.b32.xlu0 %v2854, 64
  %v2901 = vpop.permute.xlu0 %2900
  %v2904 = vmul.f32 %v2880, %v2899
  %v2905 = vmul.f32 %v2895, %v2901
  %2908 = vrot.lane.b32.xlu0 %v2904, 64
  %v2909 = vpop.permute.xlu0 %2908
  %2910 = vrot.lane.b32.xlu0 %v2905, 64
  %v2911 = vpop.permute.xlu0 %2910
  %v2914 = vadd.f32 %v2823, %v2909
  %v2915 = vadd.f32 %v2824, %v2911
  %v2916 = vtanh.pop %v2914
  %v2917 = vtanh.pop %v2915
  %v2918 = vsub.f32 1.0, %v2880
  %v2919 = vsub.f32 1.0, %v2895
  %2922 = vrot.lane.b32.xlu0 %v2916, 96
  %v2923 = vpop.permute.xlu0 %2922
  %2924 = vrot.lane.b32.xlu0 %v2917, 96
  %v2925 = vpop.permute.xlu0 %2924
  %v2928 = vmul.f32 %v2918, %v2923
  %v2929 = vmul.f32 %v2919, %v2925
  %v2930 = vmul.f32 %v2880, %v2797
  %v2931 = vmul.f32 %v2895, %v2798
  %v2932 = vadd.f32 %v2928, %v2930
  %v2933 = vadd.f32 %v2929, %v2931
  %2936 = vrot.lane.b32.xlu0 %v2932, 112
  %v2937 = vpop.permute.xlu0 %2936
  %2938 = vrot.lane.b32.xlu0 %v2933, 112
  %v2939 = vpop.permute.xlu0 %2938
  %v2942 = vadd.f32 %v2932, %v2937
  %v2943 = vadd.f32 %v2933, %v2939
  %v2944 = vmul.f32 %v2942, 0.5
  %v2945 = vmul.f32 %v2943, 0.5
  %v2946 = vld [vmem:[%s790] sm:$0xff]
  %v2947 = vld [vmem:[%s790 + $0x8] sm:$0xff]
  %2950 = vrot.lane.b32.xlu0 %v2944, 96
  %v2951 = vpop.permute.xlu0 %2950
  %2952 = vrot.lane.b32.xlu0 %v2945, 96
  %v2953 = vpop.permute.xlu0 %2952
  %v2956 = vadd.f32 %v2946, %v2951
  %v2957 = vadd.f32 %v2947, %v2953
  %v2958 = vmax.f32 %v2821, %v2956
  %v2959 = vmax.f32 %v2822, %v2957
  %v2960 = vld [vmem:[%s793] sm:$0xff]
  %v2961 = vld [vmem:[%s793 + $0x8] sm:$0xff]
  %2962 = vrot.lane.b32.xlu0 %v2932, 96
  %v2963 = vpop.permute.xlu0 %2962
  %2964 = vrot.lane.b32.xlu0 %v2933, 96
  %v2965 = vpop.permute.xlu0 %2964
  %v2966 = vsel %vm532, %v2963, 0
  %v2968 = vsel %vm532, %v2965, 0
  %2970 = vmatpush.msra.mxu0 0.0
  %2971 = vmatpush.msra.mxu0 0.0
  %2972 = vmatpush.msra.mxu0 0.0
  %2973 = vmatpush.msra.mxu0 0.0
  %2974 = vmatpush.msra.mxu0 0.0
  %2975 = vmatpush.msra.mxu0 0.0
  %2976 = vmatpush.msra.mxu0 0.0
  %2977 = vmatpush.msra.mxu0 0.0
  %2978 = vmatpush.msra.mxu0 0.0
  %2979 = vmatpush.msra.mxu0 0.0
  %2980 = vmatpush.msra.mxu0 0.0
  %2981 = vmatpush.msra.mxu0 0.0
  %2982 = vmatpush.msra.mxu0 %v2691
  %2983 = vmatpush.msra.mxu0 %v2690
  %2984 = vmatpush.msra.mxu0 %v2689
  %2985 = vmatpush.msra.mxu0 %v2688
  %2986 = vmatmul.f32.gmra.mxu0 %v2966
  %v2987 = vpop.f32.mrf.mxu0
  %v2988 = vadd.f32 %v2696, %v2987
  %2989 = vmatmul.f32.gmra.mxu0 %v2968
  %v2990 = vpop.f32.mrf.mxu0
  %v2991 = vadd.f32 %v2696, %v2990
  %2992 = vdwg.mxu0
  %v2993 = vadd.f32 %v2960, %v2988
  %v2994 = vadd.f32 %v2961, %v2991
  %v2995 = vxor.u32 %v2993, 2147483648
  %v2996 = vxor.u32 %v2994, 2147483648
  %v2997 = vmul.f32 %v2995, 1.442695
  %v2998 = vpow.pop %v2997
  %v2999 = vmul.f32 %v2996, 1.442695
  %v3000 = vpow.pop %v2999
  %v3001 = vadd.f32 %v2998, 1.0
  %v3002 = vadd.f32 %v3000, 1.0
  %v3003 = vrcp.pop %v3001
  %v3004 = vmul.f32 %v3001, %v3003
  %v3005 = vsub.f32 1.0, %v3004
  %v3006 = vmul.f32 %v3003, %v3005
  %v3007 = vadd.f32 %v3003, %v3006
  %vm3008 = vweird.f32 %v3001
  %vm3009 = vweird.f32 %v3003
  %vm3010 = vmor %vm3008, %vm3009
  %v3011 = vsel %vm3010, %v3003, %v3007
  %v3012 = vand.u32 2147483647, %v3001
  %vm3013 = vcmp.eq.f32.partialorder %v3012, 8.507059e+37
  %v3014 = vand.u32 %v3001, 2147483648
  %v3015 = vor.u32 1.1754944e-38, %v3014
  %v3016 = vsel %vm3013, %v3015, %v3011
  %v3017 = vmul.f32 1.0, %v3016
  %v3018 = vrcp.pop %v3002
  %v3019 = vmul.f32 %v3002, %v3018
  %v3020 = vsub.f32 1.0, %v3019
  %v3021 = vmul.f32 %v3018, %v3020
  %v3022 = vadd.f32 %v3018, %v3021
  %vm3023 = vweird.f32 %v3002
  %vm3024 = vweird.f32 %v3018
  %vm3025 = vmor %vm3023, %vm3024
  %v3026 = vsel %vm3025, %v3018, %v3022
  %v3027 = vand.u32 2147483647, %v3002
  %vm3028 = vcmp.eq.f32.partialorder %v3027, 8.507059e+37
  %v3029 = vand.u32 %v3002, 2147483648
  %v3030 = vor.u32 1.1754944e-38, %v3029
  %v3031 = vsel %vm3028, %v3030, %v3026
  %v3032 = vmul.f32 1.0, %v3031
  %3035 = vrot.lane.b32.xlu0 %v2988, 64
  %v3036 = vpop.permute.xlu0 %3035
  %3037 = vrot.lane.b32.xlu0 %v2991, 64
  %v3038 = vpop.permute.xlu0 %3037
  %v3041 = vmul.f32 %v3017, %v3036
  %v3042 = vmul.f32 %v3032, %v3038
  %3045 = vrot.lane.b32.xlu0 %v3041, 64
  %v3046 = vpop.permute.xlu0 %3045
  %3047 = vrot.lane.b32.xlu0 %v3042, 64
  %v3048 = vpop.permute.xlu0 %3047
  %v3051 = vadd.f32 %v2960, %v3046
  %v3052 = vadd.f32 %v2961, %v3048
  %v3053 = vtanh.pop %v3051
  %v3054 = vtanh.pop %v3052
  %v3055 = vsub.f32 1.0, %v3017
  %v3056 = vsub.f32 1.0, %v3032
  %3059 = vrot.lane.b32.xlu0 %v3053, 96
  %v3060 = vpop.permute.xlu0 %3059
  %3061 = vrot.lane.b32.xlu0 %v3054, 96
  %v3062 = vpop.permute.xlu0 %3061
  %v3065 = vmul.f32 %v3055, %v3060
  %v3066 = vmul.f32 %v3056, %v3062
  %v3067 = vmul.f32 %v3017, %v2932
  %v3068 = vmul.f32 %v3032, %v2933
  %v3069 = vadd.f32 %v3065, %v3067
  %v3070 = vadd.f32 %v3066, %v3068
  %3073 = vrot.lane.b32.xlu0 %v3069, 112
  %v3074 = vpop.permute.xlu0 %3073
  %3075 = vrot.lane.b32.xlu0 %v3070, 112
  %v3076 = vpop.permute.xlu0 %3075
  %v3079 = vadd.f32 %v3069, %v3074
  %v3080 = vadd.f32 %v3070, %v3076
  %v3081 = vmul.f32 %v3079, 0.5
  %v3082 = vmul.f32 %v3080, 0.5
  %v3083 = vld [vmem:[%s925] sm:$0xff]
  %v3084 = vld [vmem:[%s925 + $0x8] sm:$0xff]
  %3087 = vrot.lane.b32.xlu0 %v3081, 96
  %v3088 = vpop.permute.xlu0 %3087
  %3089 = vrot.lane.b32.xlu0 %v3082, 96
  %v3090 = vpop.permute.xlu0 %3089
  %v3093 = vadd.f32 %v3083, %v3088
  %v3094 = vadd.f32 %v3084, %v3090
  %v3095 = vmax.f32 %v2958, %v3093
  %v3096 = vmax.f32 %v2959, %v3094
  %v3097 = vld [vmem:[%s928] sm:$0xff]
  %v3098 = vld [vmem:[%s928 + $0x8] sm:$0xff]
  %3099 = vrot.lane.b32.xlu0 %v3069, 96
  %v3100 = vpop.permute.xlu0 %3099
  %3101 = vrot.lane.b32.xlu0 %v3070, 96
  %v3102 = vpop.permute.xlu0 %3101
  %v3103 = vsel %vm532, %v3100, 0
  %v3105 = vsel %vm532, %v3102, 0
  %3107 = vmatpush.msra.mxu0 0.0
  %3108 = vmatpush.msra.mxu0 0.0
  %3109 = vmatpush.msra.mxu0 0.0
  %3110 = vmatpush.msra.mxu0 0.0
  %3111 = vmatpush.msra.mxu0 0.0
  %3112 = vmatpush.msra.mxu0 0.0
  %3113 = vmatpush.msra.mxu0 0.0
  %3114 = vmatpush.msra.mxu0 0.0
  %3115 = vmatpush.msra.mxu0 0.0
  %3116 = vmatpush.msra.mxu0 0.0
  %3117 = vmatpush.msra.mxu0 0.0
  %3118 = vmatpush.msra.mxu0 0.0
  %3119 = vmatpush.msra.mxu0 %v2691
  %3120 = vmatpush.msra.mxu0 %v2690
  %3121 = vmatpush.msra.mxu0 %v2689
  %3122 = vmatpush.msra.mxu0 %v2688
  %3123 = vmatmul.f32.gmra.mxu0 %v3103
  %v3124 = vpop.f32.mrf.mxu0
  %v3125 = vadd.f32 %v2696, %v3124
  %3126 = vmatmul.f32.gmra.mxu0 %v3105
  %v3127 = vpop.f32.mrf.mxu0
  %v3128 = vadd.f32 %v2696, %v3127
  %3129 = vdwg.mxu0
  %v3130 = vadd.f32 %v3097, %v3125
  %v3131 = vadd.f32 %v3098, %v3128
  %v3132 = vxor.u32 %v3130, 2147483648
  %v3133 = vxor.u32 %v3131, 2147483648
  %v3134 = vmul.f32 %v3132, 1.442695
  %v3135 = vpow.pop %v3134
  %v3136 = vmul.f32 %v3133, 1.442695
  %v3137 = vpow.pop %v3136
  %v3138 = vadd.f32 %v3135, 1.0
  %v3139 = vadd.f32 %v3137, 1.0
  %v3140 = vrcp.pop %v3138
  %v3141 = vmul.f32 %v3138, %v3140
  %v3142 = vsub.f32 1.0, %v3141
  %v3143 = vmul.f32 %v3140, %v3142
  %v3144 = vadd.f32 %v3140, %v3143
  %vm3145 = vweird.f32 %v3138
  %vm3146 = vweird.f32 %v3140
  %vm3147 = vmor %vm3145, %vm3146
  %v3148 = vsel %vm3147, %v3140, %v3144
  %v3149 = vand.u32 2147483647, %v3138
  %vm3150 = vcmp.eq.f32.partialorder %v3149, 8.507059e+37
  %v3151 = vand.u32 %v3138, 2147483648
  %v3152 = vor.u32 1.1754944e-38, %v3151
  %v3153 = vsel %vm3150, %v3152, %v3148
  %v3154 = vmul.f32 1.0, %v3153
  %v3155 = vrcp.pop %v3139
  %v3156 = vmul.f32 %v3139, %v3155
  %v3157 = vsub.f32 1.0, %v3156
  %v3158 = vmul.f32 %v3155, %v3157
  %v3159 = vadd.f32 %v3155, %v3158
  %vm3160 = vweird.f32 %v3139
  %vm3161 = vweird.f32 %v3155
  %vm3162 = vmor %vm3160, %vm3161
  %v3163 = vsel %vm3162, %v3155, %v3159
  %v3164 = vand.u32 2147483647, %v3139
  %vm3165 = vcmp.eq.f32.partialorder %v3164, 8.507059e+37
  %v3166 = vand.u32 %v3139, 2147483648
  %v3167 = vor.u32 1.1754944e-38, %v3166
  %v3168 = vsel %vm3165, %v3167, %v3163
  %v3169 = vmul.f32 1.0, %v3168
  %3172 = vrot.lane.b32.xlu0 %v3125, 64
  %v3173 = vpop.permute.xlu0 %3172
  %3174 = vrot.lane.b32.xlu0 %v3128, 64
  %v3175 = vpop.permute.xlu0 %3174
  %v3178 = vmul.f32 %v3154, %v3173
  %v3179 = vmul.f32 %v3169, %v3175
  %3182 = vrot.lane.b32.xlu0 %v3178, 64
  %v3183 = vpop.permute.xlu0 %3182
  %3184 = vrot.lane.b32.xlu0 %v3179, 64
  %v3185 = vpop.permute.xlu0 %3184
  %v3188 = vadd.f32 %v3097, %v3183
  %v3189 = vadd.f32 %v3098, %v3185
  %v3190 = vtanh.pop %v3188
  %v3191 = vtanh.pop %v3189
  %v3192 = vsub.f32 1.0, %v3154
  %v3193 = vsub.f32 1.0, %v3169
  %3196 = vrot.lane.b32.xlu0 %v3190, 96
  %v3197 = vpop.permute.xlu0 %3196
  %3198 = vrot.lane.b32.xlu0 %v3191, 96
  %v3199 = vpop.permute.xlu0 %3198
  %v3202 = vmul.f32 %v3192, %v3197
  %v3203 = vmul.f32 %v3193, %v3199
  %v3204 = vmul.f32 %v3154, %v3069
  %v3205 = vmul.f32 %v3169, %v3070
  %v3206 = vadd.f32 %v3202, %v3204
  %v3207 = vadd.f32 %v3203, %v3205
  %3210 = vrot.lane.b32.xlu0 %v3206, 112
  %v3211 = vpop.permute.xlu0 %3210
  %3212 = vrot.lane.b32.xlu0 %v3207, 112
  %v3213 = vpop.permute.xlu0 %3212
  %v3216 = vadd.f32 %v3206, %v3211
  %v3217 = vadd.f32 %v3207, %v3213
  %v3218 = vmul.f32 %v3216, 0.5
  %v3219 = vmul.f32 %v3217, 0.5
  %v3220 = vld [vmem:[%s1060] sm:$0xff]
  %v3221 = vld [vmem:[%s1060 + $0x8] sm:$0xff]
  %3224 = vrot.lane.b32.xlu0 %v3218, 96
  %v3225 = vpop.permute.xlu0 %3224
  %3226 = vrot.lane.b32.xlu0 %v3219, 96
  %v3227 = vpop.permute.xlu0 %3226
  %v3230 = vadd.f32 %v3220, %v3225
  %v3231 = vadd.f32 %v3221, %v3227
  %v3232 = vmax.f32 %v3095, %v3230
  %v3233 = vmax.f32 %v3096, %v3231
  %v3234 = vld [vmem:[%s1063] sm:$0xff]
  %v3235 = vld [vmem:[%s1063 + $0x8] sm:$0xff]
  %3236 = vrot.lane.b32.xlu0 %v3206, 96
  %v3237 = vpop.permute.xlu0 %3236
  %3238 = vrot.lane.b32.xlu0 %v3207, 96
  %v3239 = vpop.permute.xlu0 %3238
  %v3240 = vsel %vm532, %v3237, 0
  %v3242 = vsel %vm532, %v3239, 0
  %3244 = vmatpush.msra.mxu0 0.0
  %3245 = vmatpush.msra.mxu0 0.0
  %3246 = vmatpush.msra.mxu0 0.0
  %3247 = vmatpush.msra.mxu0 0.0
  %3248 = vmatpush.msra.mxu0 0.0
  %3249 = vmatpush.msra.mxu0 0.0
  %3250 = vmatpush.msra.mxu0 0.0
  %3251 = vmatpush.msra.mxu0 0.0
  %3252 = vmatpush.msra.mxu0 0.0
  %3253 = vmatpush.msra.mxu0 0.0
  %3254 = vmatpush.msra.mxu0 0.0
  %3255 = vmatpush.msra.mxu0 0.0
  %3256 = vmatpush.msra.mxu0 %v2691
  %3257 = vmatpush.msra.mxu0 %v2690
  %3258 = vmatpush.msra.mxu0 %v2689
  %3259 = vmatpush.msra.mxu0 %v2688
  %3260 = vmatmul.f32.gmra.mxu0 %v3240
  %v3261 = vpop.f32.mrf.mxu0
  %v3262 = vadd.f32 %v2696, %v3261
  %3263 = vmatmul.f32.gmra.mxu0 %v3242
  %v3264 = vpop.f32.mrf.mxu0
  %v3265 = vadd.f32 %v2696, %v3264
  %3266 = vdwg.mxu0
  %v3267 = vadd.f32 %v3234, %v3262
  %v3268 = vadd.f32 %v3235, %v3265
  %v3269 = vxor.u32 %v3267, 2147483648
  %v3270 = vxor.u32 %v3268, 2147483648
  %v3271 = vmul.f32 %v3269, 1.442695
  %v3272 = vpow.pop %v3271
  %v3273 = vmul.f32 %v3270, 1.442695
  %v3274 = vpow.pop %v3273
  %v3275 = vadd.f32 %v3272, 1.0
  %v3276 = vadd.f32 %v3274, 1.0
  %v3277 = vrcp.pop %v3275
  %v3278 = vmul.f32 %v3275, %v3277
  %v3279 = vsub.f32 1.0, %v3278
  %v3280 = vmul.f32 %v3277, %v3279
  %v3281 = vadd.f32 %v3277, %v3280
  %vm3282 = vweird.f32 %v3275
  %vm3283 = vweird.f32 %v3277
  %vm3284 = vmor %vm3282, %vm3283
  %v3285 = vsel %vm3284, %v3277, %v3281
  %v3286 = vand.u32 2147483647, %v3275
  %vm3287 = vcmp.eq.f32.partialorder %v3286, 8.507059e+37
  %v3288 = vand.u32 %v3275, 2147483648
  %v3289 = vor.u32 1.1754944e-38, %v3288
  %v3290 = vsel %vm3287, %v3289, %v3285
  %v3291 = vmul.f32 1.0, %v3290
  %v3292 = vrcp.pop %v3276
  %v3293 = vmul.f32 %v3276, %v3292
  %v3294 = vsub.f32 1.0, %v3293
  %v3295 = vmul.f32 %v3292, %v3294
  %v3296 = vadd.f32 %v3292, %v3295
  %vm3297 = vweird.f32 %v3276
  %vm3298 = vweird.f32 %v3292
  %vm3299 = vmor %vm3297, %vm3298
  %v3300 = vsel %vm3299, %v3292, %v3296
  %v3301 = vand.u32 2147483647, %v3276
  %vm3302 = vcmp.eq.f32.partialorder %v3301, 8.507059e+37
  %v3303 = vand.u32 %v3276, 2147483648
  %v3304 = vor.u32 1.1754944e-38, %v3303
  %v3305 = vsel %vm3302, %v3304, %v3300
  %v3306 = vmul.f32 1.0, %v3305
  %3309 = vrot.lane.b32.xlu0 %v3262, 64
  %v3310 = vpop.permute.xlu0 %3309
  %3311 = vrot.lane.b32.xlu0 %v3265, 64
  %v3312 = vpop.permute.xlu0 %3311
  %v3315 = vmul.f32 %v3291, %v3310
  %v3316 = vmul.f32 %v3306, %v3312
  %3319 = vrot.lane.b32.xlu0 %v3315, 64
  %v3320 = vpop.permute.xlu0 %3319
  %3321 = vrot.lane.b32.xlu0 %v3316, 64
  %v3322 = vpop.permute.xlu0 %3321
  %v3325 = vadd.f32 %v3234, %v3320
  %v3326 = vadd.f32 %v3235, %v3322
  %v3327 = vtanh.pop %v3325
  %v3328 = vtanh.pop %v3326
  %v3329 = vsub.f32 1.0, %v3291
  %v3330 = vsub.f32 1.0, %v3306
  %3333 = vrot.lane.b32.xlu0 %v3327, 96
  %v3334 = vpop.permute.xlu0 %3333
  %3335 = vrot.lane.b32.xlu0 %v3328, 96
  %v3336 = vpop.permute.xlu0 %3335
  %v3339 = vmul.f32 %v3329, %v3334
  %v3340 = vmul.f32 %v3330, %v3336
  %v3341 = vmul.f32 %v3291, %v3206
  %v3342 = vmul.f32 %v3306, %v3207
  %v3343 = vadd.f32 %v3339, %v3341
  %v3344 = vadd.f32 %v3340, %v3342
  %3347 = vrot.lane.b32.xlu0 %v3343, 112
  %v3348 = vpop.permute.xlu0 %3347
  %3349 = vrot.lane.b32.xlu0 %v3344, 112
  %v3350 = vpop.permute.xlu0 %3349
  %v3353 = vadd.f32 %v3343, %v3348
  %v3354 = vadd.f32 %v3344, %v3350
  %v3355 = vmul.f32 %v3353, 0.5
  %v3356 = vmul.f32 %v3354, 0.5
  %v3357 = vld [vmem:[%s1195] sm:$0xff]
  %v3358 = vld [vmem:[%s1195 + $0x8] sm:$0xff]
  %3361 = vrot.lane.b32.xlu0 %v3355, 96
  %v3362 = vpop.permute.xlu0 %3361
  %3363 = vrot.lane.b32.xlu0 %v3356, 96
  %v3364 = vpop.permute.xlu0 %3363
  %v3367 = vadd.f32 %v3357, %v3362
  %v3368 = vadd.f32 %v3358, %v3364
  %v3369 = vmax.f32 %v3232, %v3367
  %v3370 = vmax.f32 %v3233, %v3368
  %v3371 = vld [vmem:[%s1198] sm:$0xff]
  %v3372 = vld [vmem:[%s1198 + $0x8] sm:$0xff]
  %3373 = vrot.lane.b32.xlu0 %v3343, 96
  %v3374 = vpop.permute.xlu0 %3373
  %3375 = vrot.lane.b32.xlu0 %v3344, 96
  %v3376 = vpop.permute.xlu0 %3375
  %v3377 = vsel %vm532, %v3374, 0
  %v3379 = vsel %vm532, %v3376, 0
  %3381 = vmatpush.msra.mxu0 0.0
  %3382 = vmatpush.msra.mxu0 0.0
  %3383 = vmatpush.msra.mxu0 0.0
  %3384 = vmatpush.msra.mxu0 0.0
  %3385 = vmatpush.msra.mxu0 0.0
  %3386 = vmatpush.msra.mxu0 0.0
  %3387 = vmatpush.msra.mxu0 0.0
  %3388 = vmatpush.msra.mxu0 0.0
  %3389 = vmatpush.msra.mxu0 0.0
  %3390 = vmatpush.msra.mxu0 0.0
  %3391 = vmatpush.msra.mxu0 0.0
  %3392 = vmatpush.msra.mxu0 0.0
  %3393 = vmatpush.msra.mxu0 %v2691
  %3394 = vmatpush.msra.mxu0 %v2690
  %3395 = vmatpush.msra.mxu0 %v2689
  %3396 = vmatpush.msra.mxu0 %v2688
  %3397 = vmatmul.f32.gmra.mxu0 %v3377
  %v3398 = vpop.f32.mrf.mxu0
  %v3399 = vadd.f32 %v2696, %v3398
  %3400 = vmatmul.f32.gmra.mxu0 %v3379
  %v3401 = vpop.f32.mrf.mxu0
  %v3402 = vadd.f32 %v2696, %v3401
  %3403 = vdwg.mxu0
  %v3404 = vadd.f32 %v3371, %v3399
  %v3405 = vadd.f32 %v3372, %v3402
  %v3406 = vxor.u32 %v3404, 2147483648
  %v3407 = vxor.u32 %v3405, 2147483648
  %v3408 = vmul.f32 %v3406, 1.442695
  %v3409 = vpow.pop %v3408
  %v3410 = vmul.f32 %v3407, 1.442695
  %v3411 = vpow.pop %v3410
  %v3412 = vadd.f32 %v3409, 1.0
  %v3413 = vadd.f32 %v3411, 1.0
  %v3414 = vrcp.pop %v3412
  %v3415 = vmul.f32 %v3412, %v3414
  %v3416 = vsub.f32 1.0, %v3415
  %v3417 = vmul.f32 %v3414, %v3416
  %v3418 = vadd.f32 %v3414, %v3417
  %vm3419 = vweird.f32 %v3412
  %vm3420 = vweird.f32 %v3414
  %vm3421 = vmor %vm3419, %vm3420
  %v3422 = vsel %vm3421, %v3414, %v3418
  %v3423 = vand.u32 2147483647, %v3412
  %vm3424 = vcmp.eq.f32.partialorder %v3423, 8.507059e+37
  %v3425 = vand.u32 %v3412, 2147483648
  %v3426 = vor.u32 1.1754944e-38, %v3425
  %v3427 = vsel %vm3424, %v3426, %v3422
  %v3428 = vmul.f32 1.0, %v3427
  %v3429 = vrcp.pop %v3413
  %v3430 = vmul.f32 %v3413, %v3429
  %v3431 = vsub.f32 1.0, %v3430
  %v3432 = vmul.f32 %v3429, %v3431
  %v3433 = vadd.f32 %v3429, %v3432
  %vm3434 = vweird.f32 %v3413
  %vm3435 = vweird.f32 %v3429
  %vm3436 = vmor %vm3434, %vm3435
  %v3437 = vsel %vm3436, %v3429, %v3433
  %v3438 = vand.u32 2147483647, %v3413
  %vm3439 = vcmp.eq.f32.partialorder %v3438, 8.507059e+37
  %v3440 = vand.u32 %v3413, 2147483648
  %v3441 = vor.u32 1.1754944e-38, %v3440
  %v3442 = vsel %vm3439, %v3441, %v3437
  %v3443 = vmul.f32 1.0, %v3442
  %3446 = vrot.lane.b32.xlu0 %v3399, 64
  %v3447 = vpop.permute.xlu0 %3446
  %3448 = vrot.lane.b32.xlu0 %v3402, 64
  %v3449 = vpop.permute.xlu0 %3448
  %v3452 = vmul.f32 %v3428, %v3447
  %v3453 = vmul.f32 %v3443, %v3449
  %3456 = vrot.lane.b32.xlu0 %v3452, 64
  %v3457 = vpop.permute.xlu0 %3456
  %3458 = vrot.lane.b32.xlu0 %v3453, 64
  %v3459 = vpop.permute.xlu0 %3458
  %v3462 = vadd.f32 %v3371, %v3457
  %v3463 = vadd.f32 %v3372, %v3459
  %v3464 = vtanh.pop %v3462
  %v3465 = vtanh.pop %v3463
  %v3466 = vsub.f32 1.0, %v3428
  %v3467 = vsub.f32 1.0, %v3443
  %3470 = vrot.lane.b32.xlu0 %v3464, 96
  %v3471 = vpop.permute.xlu0 %3470
  %3472 = vrot.lane.b32.xlu0 %v3465, 96
  %v3473 = vpop.permute.xlu0 %3472
  %v3476 = vmul.f32 %v3466, %v3471
  %v3477 = vmul.f32 %v3467, %v3473
  %v3478 = vmul.f32 %v3428, %v3343
  %v3479 = vmul.f32 %v3443, %v3344
  %v3480 = vadd.f32 %v3476, %v3478
  %v3481 = vadd.f32 %v3477, %v3479
  %3484 = vrot.lane.b32.xlu0 %v3480, 112
  %v3485 = vpop.permute.xlu0 %3484
  %3486 = vrot.lane.b32.xlu0 %v3481, 112
  %v3487 = vpop.permute.xlu0 %3486
  %v3490 = vadd.f32 %v3480, %v3485
  %v3491 = vadd.f32 %v3481, %v3487
  %v3492 = vmul.f32 %v3490, 0.5
  %v3493 = vmul.f32 %v3491, 0.5
  %v3494 = vld [vmem:[%s1330] sm:$0xff]
  %v3495 = vld [vmem:[%s1330 + $0x8] sm:$0xff]
  %3498 = vrot.lane.b32.xlu0 %v3492, 96
  %v3499 = vpop.permute.xlu0 %3498
  %3500 = vrot.lane.b32.xlu0 %v3493, 96
  %v3501 = vpop.permute.xlu0 %3500
  %v3504 = vadd.f32 %v3494, %v3499
  %v3505 = vadd.f32 %v3495, %v3501
  %v3506 = vmax.f32 %v3369, %v3504
  %v3507 = vmax.f32 %v3370, %v3505
  %v3508 = vld [vmem:[%s1333] sm:$0xff]
  %v3509 = vld [vmem:[%s1333 + $0x8] sm:$0xff]
  %3510 = vrot.lane.b32.xlu0 %v3480, 96
  %v3511 = vpop.permute.xlu0 %3510
  %3512 = vrot.lane.b32.xlu0 %v3481, 96
  %v3513 = vpop.permute.xlu0 %3512
  %v3514 = vsel %vm532, %v3511, 0
  %v3516 = vsel %vm532, %v3513, 0
  %3518 = vmatpush.msra.mxu0 0.0
  %3519 = vmatpush.msra.mxu0 0.0
  %3520 = vmatpush.msra.mxu0 0.0
  %3521 = vmatpush.msra.mxu0 0.0
  %3522 = vmatpush.msra.mxu0 0.0
  %3523 = vmatpush.msra.mxu0 0.0
  %3524 = vmatpush.msra.mxu0 0.0
  %3525 = vmatpush.msra.mxu0 0.0
  %3526 = vmatpush.msra.mxu0 0.0
  %3527 = vmatpush.msra.mxu0 0.0
  %3528 = vmatpush.msra.mxu0 0.0
  %3529 = vmatpush.msra.mxu0 0.0
  %3530 = vmatpush.msra.mxu0 %v2691
  %3531 = vmatpush.msra.mxu0 %v2690
  %3532 = vmatpush.msra.mxu0 %v2689
  %3533 = vmatpush.msra.mxu0 %v2688
  %3534 = vmatmul.f32.gmra.mxu0 %v3514
  %v3535 = vpop.f32.mrf.mxu0
  %v3536 = vadd.f32 %v2696, %v3535
  %3537 = vmatmul.f32.gmra.mxu0 %v3516
  %v3538 = vpop.f32.mrf.mxu0
  %v3539 = vadd.f32 %v2696, %v3538
  %3540 = vdwg.mxu0
  %v3541 = vadd.f32 %v3508, %v3536
  %v3542 = vadd.f32 %v3509, %v3539
  %v3543 = vxor.u32 %v3541, 2147483648
  %v3544 = vxor.u32 %v3542, 2147483648
  %v3545 = vmul.f32 %v3543, 1.442695
  %v3546 = vpow.pop %v3545
  %v3547 = vmul.f32 %v3544, 1.442695
  %v3548 = vpow.pop %v3547
  %v3549 = vadd.f32 %v3546, 1.0
  %v3550 = vadd.f32 %v3548, 1.0
  %v3551 = vrcp.pop %v3549
  %v3552 = vmul.f32 %v3549, %v3551
  %v3553 = vsub.f32 1.0, %v3552
  %v3554 = vmul.f32 %v3551, %v3553
  %v3555 = vadd.f32 %v3551, %v3554
  %vm3556 = vweird.f32 %v3549
  %vm3557 = vweird.f32 %v3551
  %vm3558 = vmor %vm3556, %vm3557
  %v3559 = vsel %vm3558, %v3551, %v3555
  %v3560 = vand.u32 2147483647, %v3549
  %vm3561 = vcmp.eq.f32.partialorder %v3560, 8.507059e+37
  %v3562 = vand.u32 %v3549, 2147483648
  %v3563 = vor.u32 1.1754944e-38, %v3562
  %v3564 = vsel %vm3561, %v3563, %v3559
  %v3565 = vmul.f32 1.0, %v3564
  %v3566 = vrcp.pop %v3550
  %v3567 = vmul.f32 %v3550, %v3566
  %v3568 = vsub.f32 1.0, %v3567
  %v3569 = vmul.f32 %v3566, %v3568
  %v3570 = vadd.f32 %v3566, %v3569
  %vm3571 = vweird.f32 %v3550
  %vm3572 = vweird.f32 %v3566
  %vm3573 = vmor %vm3571, %vm3572
  %v3574 = vsel %vm3573, %v3566, %v3570
  %v3575 = vand.u32 2147483647, %v3550
  %vm3576 = vcmp.eq.f32.partialorder %v3575, 8.507059e+37
  %v3577 = vand.u32 %v3550, 2147483648
  %v3578 = vor.u32 1.1754944e-38, %v3577
  %v3579 = vsel %vm3576, %v3578, %v3574
  %v3580 = vmul.f32 1.0, %v3579
  %3583 = vrot.lane.b32.xlu0 %v3536, 64
  %v3584 = vpop.permute.xlu0 %3583
  %3585 = vrot.lane.b32.xlu0 %v3539, 64
  %v3586 = vpop.permute.xlu0 %3585
  %v3589 = vmul.f32 %v3565, %v3584
  %v3590 = vmul.f32 %v3580, %v3586
  %3593 = vrot.lane.b32.xlu0 %v3589, 64
  %v3594 = vpop.permute.xlu0 %3593
  %3595 = vrot.lane.b32.xlu0 %v3590, 64
  %v3596 = vpop.permute.xlu0 %3595
  %v3599 = vadd.f32 %v3508, %v3594
  %v3600 = vadd.f32 %v3509, %v3596
  %v3601 = vtanh.pop %v3599
  %v3602 = vtanh.pop %v3600
  %v3603 = vsub.f32 1.0, %v3565
  %v3604 = vsub.f32 1.0, %v3580
  %3607 = vrot.lane.b32.xlu0 %v3601, 96
  %v3608 = vpop.permute.xlu0 %3607
  %3609 = vrot.lane.b32.xlu0 %v3602, 96
  %v3610 = vpop.permute.xlu0 %3609
  %v3613 = vmul.f32 %v3603, %v3608
  %v3614 = vmul.f32 %v3604, %v3610
  %v3615 = vmul.f32 %v3565, %v3480
  %v3616 = vmul.f32 %v3580, %v3481
  %v3617 = vadd.f32 %v3613, %v3615
  %v3618 = vadd.f32 %v3614, %v3616
  %3621 = vrot.lane.b32.xlu0 %v3617, 112
  %v3622 = vpop.permute.xlu0 %3621
  %3623 = vrot.lane.b32.xlu0 %v3618, 112
  %v3624 = vpop.permute.xlu0 %3623
  %v3627 = vadd.f32 %v3617, %v3622
  %v3628 = vadd.f32 %v3618, %v3624
  %v3629 = vmul.f32 %v3627, 0.5
  %v3630 = vmul.f32 %v3628, 0.5
  %v3631 = vld [vmem:[%s1465] sm:$0xff]
  %v3632 = vld [vmem:[%s1465 + $0x8] sm:$0xff]
  %3635 = vrot.lane.b32.xlu0 %v3629, 96
  %v3636 = vpop.permute.xlu0 %3635
  %3637 = vrot.lane.b32.xlu0 %v3630, 96
  %v3638 = vpop.permute.xlu0 %3637
  %v3641 = vadd.f32 %v3631, %v3636
  %v3642 = vadd.f32 %v3632, %v3638
  %v3643 = vmax.f32 %v3506, %v3641
  %v3644 = vmax.f32 %v3507, %v3642
  %v3645 = vld [vmem:[%s1468] sm:$0xff]
  %v3646 = vld [vmem:[%s1468 + $0x8] sm:$0xff]
  %3647 = vrot.lane.b32.xlu0 %v3617, 96
  %v3648 = vpop.permute.xlu0 %3647
  %3649 = vrot.lane.b32.xlu0 %v3618, 96
  %v3650 = vpop.permute.xlu0 %3649
  %v3651 = vsel %vm532, %v3648, 0
  %v3653 = vsel %vm532, %v3650, 0
  %3655 = vmatpush.msra.mxu0 0.0
  %3656 = vmatpush.msra.mxu0 0.0
  %3657 = vmatpush.msra.mxu0 0.0
  %3658 = vmatpush.msra.mxu0 0.0
  %3659 = vmatpush.msra.mxu0 0.0
  %3660 = vmatpush.msra.mxu0 0.0
  %3661 = vmatpush.msra.mxu0 0.0
  %3662 = vmatpush.msra.mxu0 0.0
  %3663 = vmatpush.msra.mxu0 0.0
  %3664 = vmatpush.msra.mxu0 0.0
  %3665 = vmatpush.msra.mxu0 0.0
  %3666 = vmatpush.msra.mxu0 0.0
  %3667 = vmatpush.msra.mxu0 %v2691
  %3668 = vmatpush.msra.mxu0 %v2690
  %3669 = vmatpush.msra.mxu0 %v2689
  %3670 = vmatpush.msra.mxu0 %v2688
  %3671 = vmatmul.f32.gmra.mxu0 %v3651
  %v3672 = vpop.f32.mrf.mxu0
  %v3673 = vadd.f32 %v2696, %v3672
  %3674 = vmatmul.f32.gmra.mxu0 %v3653
  %v3675 = vpop.f32.mrf.mxu0
  %v3676 = vadd.f32 %v2696, %v3675
  %3677 = vdwg.mxu0
  %v3678 = vadd.f32 %v3645, %v3673
  %v3679 = vadd.f32 %v3646, %v3676
  %v3680 = vxor.u32 %v3678, 2147483648
  %v3681 = vxor.u32 %v3679, 2147483648
  %v3682 = vmul.f32 %v3680, 1.442695
  %v3683 = vpow.pop %v3682
  %v3684 = vmul.f32 %v3681, 1.442695
  %v3685 = vpow.pop %v3684
  %v3686 = vadd.f32 %v3683, 1.0
  %v3687 = vadd.f32 %v3685, 1.0
  %v3688 = vrcp.pop %v3686
  %v3689 = vmul.f32 %v3686, %v3688
  %v3690 = vsub.f32 1.0, %v3689
  %v3691 = vmul.f32 %v3688, %v3690
  %v3692 = vadd.f32 %v3688, %v3691
  %vm3693 = vweird.f32 %v3686
  %vm3694 = vweird.f32 %v3688
  %vm3695 = vmor %vm3693, %vm3694
  %v3696 = vsel %vm3695, %v3688, %v3692
  %v3697 = vand.u32 2147483647, %v3686
  %vm3698 = vcmp.eq.f32.partialorder %v3697, 8.507059e+37
  %v3699 = vand.u32 %v3686, 2147483648
  %v3700 = vor.u32 1.1754944e-38, %v3699
  %v3701 = vsel %vm3698, %v3700, %v3696
  %v3702 = vmul.f32 1.0, %v3701
  %v3703 = vrcp.pop %v3687
  %v3704 = vmul.f32 %v3687, %v3703
  %v3705 = vsub.f32 1.0, %v3704
  %v3706 = vmul.f32 %v3703, %v3705
  %v3707 = vadd.f32 %v3703, %v3706
  %vm3708 = vweird.f32 %v3687
  %vm3709 = vweird.f32 %v3703
  %vm3710 = vmor %vm3708, %vm3709
  %v3711 = vsel %vm3710, %v3703, %v3707
  %v3712 = vand.u32 2147483647, %v3687
  %vm3713 = vcmp.eq.f32.partialorder %v3712, 8.507059e+37
  %v3714 = vand.u32 %v3687, 2147483648
  %v3715 = vor.u32 1.1754944e-38, %v3714
  %v3716 = vsel %vm3713, %v3715, %v3711
  %v3717 = vmul.f32 1.0, %v3716
  %3720 = vrot.lane.b32.xlu0 %v3673, 64
  %v3721 = vpop.permute.xlu0 %3720
  %3722 = vrot.lane.b32.xlu0 %v3676, 64
  %v3723 = vpop.permute.xlu0 %3722
  %v3726 = vmul.f32 %v3702, %v3721
  %v3727 = vmul.f32 %v3717, %v3723
  %3730 = vrot.lane.b32.xlu0 %v3726, 64
  %v3731 = vpop.permute.xlu0 %3730
  %3732 = vrot.lane.b32.xlu0 %v3727, 64
  %v3733 = vpop.permute.xlu0 %3732
  %v3736 = vadd.f32 %v3645, %v3731
  %v3737 = vadd.f32 %v3646, %v3733
  %v3738 = vtanh.pop %v3736
  %v3739 = vtanh.pop %v3737
  %v3740 = vsub.f32 1.0, %v3702
  %v3741 = vsub.f32 1.0, %v3717
  %3744 = vrot.lane.b32.xlu0 %v3738, 96
  %v3745 = vpop.permute.xlu0 %3744
  %3746 = vrot.lane.b32.xlu0 %v3739, 96
  %v3747 = vpop.permute.xlu0 %3746
  %v3750 = vmul.f32 %v3740, %v3745
  %v3751 = vmul.f32 %v3741, %v3747
  %v3752 = vmul.f32 %v3702, %v3617
  %v3753 = vmul.f32 %v3717, %v3618
  %v3754 = vadd.f32 %v3750, %v3752
  %v3755 = vadd.f32 %v3751, %v3753
  %3758 = vrot.lane.b32.xlu0 %v3754, 112
  %v3759 = vpop.permute.xlu0 %3758
  %3760 = vrot.lane.b32.xlu0 %v3755, 112
  %v3761 = vpop.permute.xlu0 %3760
  %v3764 = vadd.f32 %v3754, %v3759
  %v3765 = vadd.f32 %v3755, %v3761
  %v3766 = vmul.f32 %v3764, 0.5
  %v3767 = vmul.f32 %v3765, 0.5
  %v3768 = vld [vmem:[%s1600] sm:$0xff]
  %v3769 = vld [vmem:[%s1600 + $0x8] sm:$0xff]
  %3772 = vrot.lane.b32.xlu0 %v3766, 96
  %v3773 = vpop.permute.xlu0 %3772
  %3774 = vrot.lane.b32.xlu0 %v3767, 96
  %v3775 = vpop.permute.xlu0 %3774
  %v3778 = vadd.f32 %v3768, %v3773
  %v3779 = vadd.f32 %v3769, %v3775
  %v3780 = vmax.f32 %v3643, %v3778
  %v3781 = vmax.f32 %v3644, %v3779
  %v3782 = vld [vmem:[%s18] sm:$0xff]
  %v3783 = vld [vmem:[%s18 + $0x8] sm:$0xff]
  %v3784 = vld [vmem:[%s19] sm:$0x1]
  %v3786 = vperm.slane %v3784, 0
  %v3789 = vsel %vm391, %v3780, 0
  %v3792 = vsel %vm391, %v3781, 0
  %3794 = vmatpush.msra.mxu0 0.0
  %3795 = vmatpush.msra.mxu0 0.0
  %3796 = vmatpush.msra.mxu0 0.0
  %3797 = vmatpush.msra.mxu0 0.0
  %3798 = vmatpush.msra.mxu0 0.0
  %3799 = vmatpush.msra.mxu0 0.0
  %3800 = vmatpush.msra.mxu0 0.0
  %3801 = vmatpush.msra.mxu0 0.0
  %3802 = vmatpush.msra.mxu0 0.0
  %3803 = vmatpush.msra.mxu0 0.0
  %3804 = vmatpush.msra.mxu0 0.0
  %3805 = vmatpush.msra.mxu0 0.0
  %3806 = vmatpush.msra.mxu0 0.0
  %3807 = vmatpush.msra.mxu0 0.0
  %3808 = vmatpush.msra.mxu0 %v3783
  %3809 = vmatpush.msra.mxu0 %v3782
  %3810 = vmatmul.f32.gmra.mxu0 %v3789
  %v3811 = vpop.f32.mrf.mxu0
  %v3812 = vadd.f32 %v3786, %v3811
  %3813 = vmatmul.f32.gmra.mxu0 %v3792
  %v3814 = vpop.f32.mrf.mxu0
  %v3815 = vadd.f32 %v3786, %v3814
  %3816 = vdwg.mxu0
  %3817 = vst [vmem:[%s20] sm:$0xff] %v3812
  %3818 = vst [vmem:[%s20 + $0x8] sm:$0xff] %v3815
  // Predicated region
  $region82: #{_forward_impl.1} parent=0 // pred_check
    _
  $region83: #{_forward_impl.1} parent=0 // pred_check_branch
    %3820 = sbr.rel (0) target = $region85
  $region84: #{_forward_impl.1} parent=0 // pred_region
    _
  $region85: #{_forward_impl.1} parent=0 // pred_fallthru
    _
  // Predicated region
  $region86: #{_forward_impl.1} parent=0 // pred_check
    _
  $region87: #{_forward_impl.1} parent=0 // pred_check_branch
    %3822 = sbr.rel (0) target = $region89
  $region88: #{_forward_impl.1} parent=0 // pred_region
    _
  $region89: #{_forward_impl.1} parent=0 // pred_fallthru
    _

</llo_original>
